<compile_context>
chip_gen: v7x
topology: tpu7x:2x2x1
jax: 0.10.0
libtpu: 0.0.40
codegen_flags: <defaults>
</compile_context>

<pallas_src>
import functools

import jax
import jax.numpy as jnp
from jax.experimental import pallas as pl
from jax.experimental.pallas import tpu as pltpu


def _siren_kernel(x_ref, *refs, num_hidden):
    """refs = (w0, b0, wh_0, bh_0, ..., wh_{L-1}, bh_{L-1}, wf, bf, o_ref).

    x_ref : [in_dims, tile_n]             coords (feature-major)
    w0    : [C, in_dims],  b0  : [C, 1]   omega_0 folded in
    wh_i  : [C, C],        bh_i: [C, 1]   omega_0 folded in
    wf    : [out_ch, C],   bf  : [out_ch, 1]
    o_ref : [out_ch, tile_n]
    """
    o_ref = refs[-1]
    p = refs[:-1]

    x = x_ref[...]                        # [in_dims, tile_n]
    w0 = p[0][...]                        # [C, in_dims]
    b0 = p[1][...]                        # [C, 1]

    # First sine layer.  K = in_dims is tiny (2): skip the MXU and use VPU
    # broadcast FMAs:  acc[c, n] = sum_d w0[c, d] * x[d, n].
    in_dims = x.shape[0]
    acc = w0[:, 0:1] * x[0:1, :]          # [C, tile_n]
    for d in range(1, in_dims):
        acc = acc + w0[:, d:d + 1] * x[d:d + 1, :]
    h = jnp.sin(acc + b0)                 # omega already folded into w0/b0

    # Hidden sine layers on the MXU: sin(W' @ h + b'), omega folded into W'/b'.
    for i in range(num_hidden):
        w = p[2 + 2 * i][...]             # [C, C]
        b = p[3 + 2 * i][...]             # [C, 1]
        h = jnp.sin(jnp.dot(w, h, preferred_element_type=jnp.float32) + b)

    # Final (outermost) linear layer, no activation.
    wf = p[2 + 2 * num_hidden][...]       # [out_ch, C]
    bf = p[3 + 2 * num_hidden][...]       # [out_ch, 1]
    out = jnp.dot(wf, h, preferred_element_type=jnp.float32) + bf
    o_ref[...] = out.astype(o_ref.dtype)


def siren_forward(coords, kernel_params, *, tile_n=2048):
    """coords: [N, in_dims] float32.

    kernel_params: flat list produced by `fold_and_transpose_params`:
      (w0 [C,in], b0 [C,1], wh_i [C,C], bh_i [C,1], ..., wf [out,C], bf [out,1])
    with omega_0 already folded into the sine-layer weights/biases.
    Returns [N, out_channels].
    """
    N, in_dims = coords.shape
    out_channels = kernel_params[-1].shape[0]
    num_hidden = (len(kernel_params) - 4) // 2

    # Choose a lane-aligned tile; keep it as large as reasonable (big tiles
    # amortize per-grid-step overhead) but never larger than the point count,
    # and prefer >= 2 grid steps so the ("parallel",) axis can shard across
    # TensorCores on multi-TC chips (v7x).
    tile_n = max(128, (int(tile_n) // 128) * 128)
    n128 = pl.cdiv(N, 128) * 128
    tile_n = min(tile_n, n128)
    if n128 >= 2 * 128 and tile_n > n128 // 2:
        tile_n = max(128, ((n128 // 2) // 128) * 128)
    n_pad = pl.cdiv(N, tile_n) * tile_n

    # Feature-major coords: [in_dims, n_pad] (points on the lane axis).
    x_t = coords.T
    if n_pad != N:
        x_t = jnp.pad(x_t, ((0, 0), (0, n_pad - N)))

    # Parameters are small and fully resident in VMEM (constant index map).
    param_specs = [pl.BlockSpec(p.shape, lambda i: (0, 0)) for p in kernel_params]

    kernel = functools.partial(_siren_kernel, num_hidden=num_hidden)

    out_t = pl.pallas_call(
        kernel,
        out_shape=jax.ShapeDtypeStruct((out_channels, n_pad), coords.dtype),
        grid_spec=pltpu.PrefetchScalarGridSpec(
            num_scalar_prefetch=0,
            grid=(n_pad // tile_n,),
            in_specs=[pl.BlockSpec((in_dims, tile_n), lambda i: (0, i))]
                     + param_specs,
            out_specs=pl.BlockSpec((out_channels, tile_n), lambda i: (0, i)),
        ),
        compiler_params=pltpu.CompilerParams(
            dimension_semantics=("parallel",),
        ),
    )(x_t, *kernel_params)

    # Drop padded points and return in the module's [N, out_channels] layout.
    return out_t[:, :N].T


def init_siren_params(key, *, C=32, in_dims=2, out_channels=3, layers=3,
                      hidden_omega_0=30.0):
    """Deterministic SIREN init matching the PyTorch module ("math" layout).

    Weights are returned transposed to [in, out], biases as [1, out]:
      - first layer:  U(-1/in_dims, 1/in_dims)
      - hidden/final: U(-sqrt(6/fan_in)/omega, +sqrt(6/fan_in)/omega)
    Biases keep the PyTorch nn.Linear default: U(-1/sqrt(fan_in), 1/sqrt(fan_in)).
    """
    params = []
    keys = jax.random.split(key, 2 * (layers + 2))
    ki = 0

    def uniform(k, shape, bound):
        return jax.random.uniform(k, shape, jnp.float32, -bound, bound)

    # First sine layer.
    params.append(uniform(keys[ki], (in_dims, C), 1.0 / in_dims)); ki += 1
    params.append(uniform(keys[ki], (1, C), 1.0 / float(jnp.sqrt(in_dims)))); ki += 1
    # Hidden sine layers.
    hidden_bound = float(jnp.sqrt(6.0 / C) / hidden_omega_0)
    for _ in range(layers):
        params.append(uniform(keys[ki], (C, C), hidden_bound)); ki += 1
        params.append(uniform(keys[ki], (1, C), 1.0 / float(jnp.sqrt(C)))); ki += 1
    # Final linear layer.
    params.append(uniform(keys[ki], (C, out_channels), hidden_bound)); ki += 1
    params.append(uniform(keys[ki], (1, out_channels), 1.0 / float(jnp.sqrt(C)))); ki += 1
    return params


def fold_and_transpose_params(params, *, first_omega_0=30.0, hidden_omega_0=30.0):
    """One-time parameter transform for the kernel layout.

    Folds omega_0 into the sine-layer weights/biases (sin(omega*(Wx+b)) ==
    sin((omega*W)x + omega*b)) and transposes everything to feature-major:
    weights [out, in], biases [out, 1].
    """
    num_hidden = (len(params) - 4) // 2
    kp = [(first_omega_0 * params[0]).T, (first_omega_0 * params[1]).T]
    for i in range(num_hidden):
        kp.append((hidden_omega_0 * params[2 + 2 * i]).T)
        kp.append((hidden_omega_0 * params[3 + 2 * i]).T)
    kp.append(params[-2].T)
    kp.append(params[-1].T)
    return kp


def siren_reference(coords, params, *, first_omega_0=30.0, hidden_omega_0=30.0):
    """Pure-JAX reference (math layout, matches the PyTorch module)."""
    num_hidden = (len(params) - 4) // 2
    h = jnp.sin(first_omega_0 * (coords @ params[0] + params[1]))
    for i in range(num_hidden):
        w = params[2 + 2 * i]
        b = params[3 + 2 * i]
        h = jnp.sin(hidden_omega_0 * (h @ w + b))
    return h @ params[-2] + params[-1]


if __name__ == "__main__":
    # Small shapes consistent with the module: C=32 hidden units, 2-D coords,
    # 3 output channels, 3 hidden sine layers.  N is deliberately NOT a
    # multiple of the tile to exercise the padding path, and tile_n=256 gives
    # a multi-step grid at this small size (the default tile is 2048).
    C, in_dims, out_channels, layers = 32, 2, 3, 3
    N = 640
    first_omega_0 = 30.0
    hidden_omega_0 = 30.0

    key = jax.random.PRNGKey(0)
    k_params, k_coords = jax.random.split(key)
    params = init_siren_params(k_params, C=C, in_dims=in_dims,
                               out_channels=out_channels, layers=layers,
                               hidden_omega_0=hidden_omega_0)
    kparams = fold_and_transpose_params(params,
                                        first_omega_0=first_omega_0,
                                        hidden_omega_0=hidden_omega_0)
    coords = jax.random.uniform(k_coords, (N, in_dims), jnp.float32, -1.0, 1.0)

    out = siren_forward(coords, kparams, tile_n=256)
    out = jax.block_until_ready(out)

    ref = siren_reference(coords, params,
                          first_omega_0=first_omega_0,
                          hidden_omega_0=hidden_omega_0)
    assert out.shape == (N, out_channels)
    # Tolerance is slightly looser than before: folding omega into the weights
    # and the transposed matmul order change f32 rounding, amplified by sin(30*x).
    assert jnp.allclose(out, ref, atol=2e-3, rtol=2e-3), "mismatch vs reference"

    print("KERNEL_OK")
</pallas_src>

<mosaic_0001>
module attributes {stable_mosaic.version = 11 : i64} {
  func.func @_siren_kernel(%arg0: i32, %arg1: memref<2x256xf32, #tpu.memory_space<vmem>>, %arg2: memref<32x2xf32, #tpu.memory_space<vmem>>, %arg3: memref<32x1xf32, #tpu.memory_space<vmem>>, %arg4: memref<32x32xf32, #tpu.memory_space<vmem>>, %arg5: memref<32x1xf32, #tpu.memory_space<vmem>>, %arg6: memref<32x32xf32, #tpu.memory_space<vmem>>, %arg7: memref<32x1xf32, #tpu.memory_space<vmem>>, %arg8: memref<32x32xf32, #tpu.memory_space<vmem>>, %arg9: memref<32x1xf32, #tpu.memory_space<vmem>>, %arg10: memref<3x32xf32, #tpu.memory_space<vmem>>, %arg11: memref<3x1xf32, #tpu.memory_space<vmem>>, %arg12: memref<3x256xf32, #tpu.memory_space<vmem>>) attributes {dimension_semantics = [#tpu.dimension_semantics<parallel>], iteration_bounds = array<i64: 3>, scalar_prefetch = 0 : i64, scratch_operands = 0 : i64, tpu.core_type = #tpu.core_type<tc>, window_params = [{transform_indices = @transform_0, window_bounds = array<i64: 2, 256>}, {pipeline_mode = #tpu.pipeline_mode<synchronous>, transform_indices = @transform_1, window_bounds = array<i64: 32, 2>}, {pipeline_mode = #tpu.pipeline_mode<synchronous>, transform_indices = @transform_2, window_bounds = array<i64: 32, 1>}, {pipeline_mode = #tpu.pipeline_mode<synchronous>, transform_indices = @transform_3, window_bounds = array<i64: 32, 32>}, {pipeline_mode = #tpu.pipeline_mode<synchronous>, transform_indices = @transform_4, window_bounds = array<i64: 32, 1>}, {pipeline_mode = #tpu.pipeline_mode<synchronous>, transform_indices = @transform_5, window_bounds = array<i64: 32, 32>}, {pipeline_mode = #tpu.pipeline_mode<synchronous>, transform_indices = @transform_6, window_bounds = array<i64: 32, 1>}, {pipeline_mode = #tpu.pipeline_mode<synchronous>, transform_indices = @transform_7, window_bounds = array<i64: 32, 32>}, {pipeline_mode = #tpu.pipeline_mode<synchronous>, transform_indices = @transform_8, window_bounds = array<i64: 32, 1>}, {pipeline_mode = #tpu.pipeline_mode<synchronous>, transform_indices = @transform_9, window_bounds = array<i64: 3, 32>}, {pipeline_mode = #tpu.pipeline_mode<synchronous>, transform_indices = @transform_10, window_bounds = array<i64: 3, 1>}, {transform_indices = @transform_11, window_bounds = array<i64: 3, 256>}]} {
    %c0 = arith.constant 0 : index
    %c0_0 = arith.constant 0 : index
    %0 = vector.load %arg1[%c0, %c0_0] : memref<2x256xf32, #tpu.memory_space<vmem>>, vector<2x256xf32>
    %c0_1 = arith.constant 0 : index
    %c0_2 = arith.constant 0 : index
    %1 = vector.load %arg2[%c0_1, %c0_2] : memref<32x2xf32, #tpu.memory_space<vmem>>, vector<32x2xf32>
    %c0_3 = arith.constant 0 : index
    %c0_4 = arith.constant 0 : index
    %2 = vector.load %arg3[%c0_3, %c0_4] : memref<32x1xf32, #tpu.memory_space<vmem>>, vector<32x1xf32>
    %3 = vector.extract_strided_slice %1 {offsets = [0, 0], sizes = [32, 1], strides = [1, 1]} : vector<32x2xf32> to vector<32x1xf32>
    %4 = vector.extract_strided_slice %0 {offsets = [0, 0], sizes = [1, 256], strides = [1, 1]} : vector<2x256xf32> to vector<1x256xf32>
    %5 = vector.broadcast %3 : vector<32x1xf32> to vector<32x256xf32>
    %6 = vector.broadcast %4 : vector<1x256xf32> to vector<32x256xf32>
    %7 = arith.mulf %5, %6 : vector<32x256xf32>
    %8 = vector.extract_strided_slice %1 {offsets = [0, 1], sizes = [32, 1], strides = [1, 1]} : vector<32x2xf32> to vector<32x1xf32>
    %9 = vector.extract_strided_slice %0 {offsets = [1, 0], sizes = [1, 256], strides = [1, 1]} : vector<2x256xf32> to vector<1x256xf32>
    %10 = vector.broadcast %8 : vector<32x1xf32> to vector<32x256xf32>
    %11 = vector.broadcast %9 : vector<1x256xf32> to vector<32x256xf32>
    %12 = arith.mulf %10, %11 : vector<32x256xf32>
    %13 = arith.addf %7, %12 : vector<32x256xf32>
    %14 = vector.broadcast %2 : vector<32x1xf32> to vector<32x256xf32>
    %15 = arith.addf %13, %14 : vector<32x256xf32>
    %16 = math.sin %15 : vector<32x256xf32>
    %c0_5 = arith.constant 0 : index
    %c0_6 = arith.constant 0 : index
    %17 = vector.load %arg4[%c0_5, %c0_6] : memref<32x32xf32, #tpu.memory_space<vmem>>, vector<32x32xf32>
    %c0_7 = arith.constant 0 : index
    %c0_8 = arith.constant 0 : index
    %18 = vector.load %arg5[%c0_7, %c0_8] : memref<32x1xf32, #tpu.memory_space<vmem>>, vector<32x1xf32>
    %cst = arith.constant dense<0.000000e+00> : vector<32x256xf32>
    %19 = tpu.matmul %17, %16, %cst {dimension_numbers = #tpu.dot_dimension_numbers<[1], [0], [0], [1], [0, 0, 1, 1], [], []>} : vector<32x32xf32>, vector<32x256xf32>, vector<32x256xf32> -> vector<32x256xf32>
    %20 = vector.broadcast %18 : vector<32x1xf32> to vector<32x256xf32>
    %21 = arith.addf %19, %20 : vector<32x256xf32>
    %22 = math.sin %21 : vector<32x256xf32>
    %c0_9 = arith.constant 0 : index
    %c0_10 = arith.constant 0 : index
    %23 = vector.load %arg6[%c0_9, %c0_10] : memref<32x32xf32, #tpu.memory_space<vmem>>, vector<32x32xf32>
    %c0_11 = arith.constant 0 : index
    %c0_12 = arith.constant 0 : index
    %24 = vector.load %arg7[%c0_11, %c0_12] : memref<32x1xf32, #tpu.memory_space<vmem>>, vector<32x1xf32>
    %cst_13 = arith.constant dense<0.000000e+00> : vector<32x256xf32>
    %25 = tpu.matmul %23, %22, %cst_13 {dimension_numbers = #tpu.dot_dimension_numbers<[1], [0], [0], [1], [0, 0, 1, 1], [], []>} : vector<32x32xf32>, vector<32x256xf32>, vector<32x256xf32> -> vector<32x256xf32>
    %26 = vector.broadcast %24 : vector<32x1xf32> to vector<32x256xf32>
    %27 = arith.addf %25, %26 : vector<32x256xf32>
    %28 = math.sin %27 : vector<32x256xf32>
    %c0_14 = arith.constant 0 : index
    %c0_15 = arith.constant 0 : index
    %29 = vector.load %arg8[%c0_14, %c0_15] : memref<32x32xf32, #tpu.memory_space<vmem>>, vector<32x32xf32>
    %c0_16 = arith.constant 0 : index
    %c0_17 = arith.constant 0 : index
    %30 = vector.load %arg9[%c0_16, %c0_17] : memref<32x1xf32, #tpu.memory_space<vmem>>, vector<32x1xf32>
    %cst_18 = arith.constant dense<0.000000e+00> : vector<32x256xf32>
    %31 = tpu.matmul %29, %28, %cst_18 {dimension_numbers = #tpu.dot_dimension_numbers<[1], [0], [0], [1], [0, 0, 1, 1], [], []>} : vector<32x32xf32>, vector<32x256xf32>, vector<32x256xf32> -> vector<32x256xf32>
    %32 = vector.broadcast %30 : vector<32x1xf32> to vector<32x256xf32>
    %33 = arith.addf %31, %32 : vector<32x256xf32>
    %34 = math.sin %33 : vector<32x256xf32>
    %c0_19 = arith.constant 0 : index
    %c0_20 = arith.constant 0 : index
    %35 = vector.load %arg10[%c0_19, %c0_20] : memref<3x32xf32, #tpu.memory_space<vmem>>, vector<3x32xf32>
    %c0_21 = arith.constant 0 : index
    %c0_22 = arith.constant 0 : index
    %36 = vector.load %arg11[%c0_21, %c0_22] : memref<3x1xf32, #tpu.memory_space<vmem>>, vector<3x1xf32>
    %cst_23 = arith.constant dense<0.000000e+00> : vector<3x256xf32>
    %37 = tpu.matmul %35, %34, %cst_23 {dimension_numbers = #tpu.dot_dimension_numbers<[1], [0], [0], [1], [0, 0, 1, 1], [], []>} : vector<3x32xf32>, vector<32x256xf32>, vector<3x256xf32> -> vector<3x256xf32>
    %38 = vector.broadcast %36 : vector<3x1xf32> to vector<3x256xf32>
    %39 = arith.addf %37, %38 : vector<3x256xf32>
    %c0_24 = arith.constant 0 : index
    %c0_25 = arith.constant 0 : index
    %40 = vector.load %arg12[%c0_24, %c0_25] : memref<3x256xf32, #tpu.memory_space<vmem>>, vector<3x256xf32>
    tpu.vector_store %arg12[%c0_24, %c0_25], %39 {strides = array<i32>} : memref<3x256xf32, #tpu.memory_space<vmem>>, vector<3x256xf32>,
    return
  }
  func.func @transform_0(%arg0: i32) -> (i32, i32) {
    %c0_i32 = arith.constant 0 : i32
    %c0_i32_0 = arith.constant 0 : i32
    return %c0_i32, %arg0 : i32, i32
  }
  func.func @transform_1(%arg0: i32) -> (i32, i32) {
    %c0_i32 = arith.constant 0 : i32
    %c0_i32_0 = arith.constant 0 : i32
    %c0_i32_1 = arith.constant 0 : i32
    return %c0_i32, %c0_i32_0 : i32, i32
  }
  func.func @transform_2(%arg0: i32) -> (i32, i32) {
    %c0_i32 = arith.constant 0 : i32
    %c0_i32_0 = arith.constant 0 : i32
    %c0_i32_1 = arith.constant 0 : i32
    return %c0_i32, %c0_i32_0 : i32, i32
  }
  func.func @transform_3(%arg0: i32) -> (i32, i32) {
    %c0_i32 = arith.constant 0 : i32
    %c0_i32_0 = arith.constant 0 : i32
    %c0_i32_1 = arith.constant 0 : i32
    return %c0_i32, %c0_i32_0 : i32, i32
  }
  func.func @transform_4(%arg0: i32) -> (i32, i32) {
    %c0_i32 = arith.constant 0 : i32
    %c0_i32_0 = arith.constant 0 : i32
    %c0_i32_1 = arith.constant 0 : i32
    return %c0_i32, %c0_i32_0 : i32, i32
  }
  func.func @transform_5(%arg0: i32) -> (i32, i32) {
    %c0_i32 = arith.constant 0 : i32
    %c0_i32_0 = arith.constant 0 : i32
    %c0_i32_1 = arith.constant 0 : i32
    return %c0_i32, %c0_i32_0 : i32, i32
  }
  func.func @transform_6(%arg0: i32) -> (i32, i32) {
    %c0_i32 = arith.constant 0 : i32
    %c0_i32_0 = arith.constant 0 : i32
    %c0_i32_1 = arith.constant 0 : i32
    return %c0_i32, %c0_i32_0 : i32, i32
  }
  func.func @transform_7(%arg0: i32) -> (i32, i32) {
    %c0_i32 = arith.constant 0 : i32
    %c0_i32_0 = arith.constant 0 : i32
    %c0_i32_1 = arith.constant 0 : i32
    return %c0_i32, %c0_i32_0 : i32, i32
  }
  func.func @transform_8(%arg0: i32) -> (i32, i32) {
    %c0_i32 = arith.constant 0 : i32
    %c0_i32_0 = arith.constant 0 : i32
    %c0_i32_1 = arith.constant 0 : i32
    return %c0_i32, %c0_i32_0 : i32, i32
  }
  func.func @transform_9(%arg0: i32) -> (i32, i32) {
    %c0_i32 = arith.constant 0 : i32
    %c0_i32_0 = arith.constant 0 : i32
    %c0_i32_1 = arith.constant 0 : i32
    return %c0_i32, %c0_i32_0 : i32, i32
  }
  func.func @transform_10(%arg0: i32) -> (i32, i32) {
    %c0_i32 = arith.constant 0 : i32
    %c0_i32_0 = arith.constant 0 : i32
    %c0_i32_1 = arith.constant 0 : i32
    return %c0_i32, %c0_i32_0 : i32, i32
  }
  func.func @transform_11(%arg0: i32) -> (i32, i32) {
    %c0_i32 = arith.constant 0 : i32
    %c0_i32_0 = arith.constant 0 : i32
    return %c0_i32, %arg0 : i32, i32
  }
}

</mosaic_0001>

<llo_original>
// kernel: tpu_custom_call.1
$region0: #{tpu_custom_call.1}
  #allocation0 [shape = 'u32[]', space=smem, size = 0x4, offset = 0x4, fixed_abs, tag = 'smem constant byte address 0x4 - core index']
  #allocation1 [shape = 'u32[144,128]{1,0:T(1,128)}', space=vmem, size = 0x12000, scoped, tag = 'internal scratch']
  %s0 = inlined_call_operand.vmem [shape: f32[2,768], index: 0, kind: input, shape index: {}]
  %s1 = inlined_call_operand.vmem [shape: f32[32,2], index: 1, kind: input, shape index: {}]
  %s2 = inlined_call_operand.vmem [shape: f32[32,1], index: 2, kind: input, shape index: {}]
  %s3 = inlined_call_operand.vmem [shape: f32[32,32], index: 3, kind: input, shape index: {}]
  %s4 = inlined_call_operand.vmem [shape: f32[32,1], index: 4, kind: input, shape index: {}]
  %s5 = inlined_call_operand.vmem [shape: f32[32,32], index: 5, kind: input, shape index: {}]
  %s6 = inlined_call_operand.vmem [shape: f32[32,1], index: 6, kind: input, shape index: {}]
  %s7 = inlined_call_operand.vmem [shape: f32[32,32], index: 7, kind: input, shape index: {}]
  %s8 = inlined_call_operand.vmem [shape: f32[32,1], index: 8, kind: input, shape index: {}]
  %s9 = inlined_call_operand.vmem [shape: f32[3,32], index: 9, kind: input, shape index: {}]
  %s10 = inlined_call_operand.vmem [shape: f32[3,1], index: 10, kind: input, shape index: {}]
  %s11 = inlined_call_operand.hbm [shape: f32[3,768], index: 11, kind: output, shape index: {}]
  %s12 = sld [smem:[#allocation0]]
  $region77: #{tpu_custom_call.1} parent=0
    _
  %s14 = ssub.s32 1, %s12
  %s15 = scalar_select 0, %s14, %s12
  $region1: #{tpu_custom_call.1} parent=0
    #allocation2 [shape = 'u8[8192]{0}', space=vmem, size = 0x2000, scoped, tag = 'output window, operand 0']
    #allocation3 [shape = 's32[2]{0}', space=sflag, size = 0x8, scoped, tag = 'scoped memory for tpu_custom_call.1']
    %16 = vsyncpa [#allocation3], 0
    %s17 = scalar_lea.sflag [#allocation3], 1
    %18 = vsyncpa %s17, 0
    loop: start=0, step=1, limit=5
    $region2: #{tpu_custom_call.1} parent=1 // loop_pre_header
      _
    $region3: #{tpu_custom_call.1} parent=1 // loop_header
      %s20 = sphi 0, %s24
      %p21 = scmp.ge.s32.totalorder %s20, 5
      %s30 = sphi 0, %s32
      %s33 = sphi 0, %s30
      %s34 = sphi 0, %s33
      %s50 = sphi 0, %s34
      %s54 = sphi 0, %s54
      %s56 = sphi 0, %s54
      %s57 = sphi 0, %s56
      %s71 = sphi 0, %s57
      %s75 = sphi 0, %s75
      %s77 = sphi 0, %s75
      %s78 = sphi 0, %s77
      %s92 = sphi 0, %s78
      %s96 = sphi 0, %s96
      %s98 = sphi 0, %s96
      %s99 = sphi 0, %s98
      %s113 = sphi 0, %s99
      %s117 = sphi 0, %s117
      %s119 = sphi 0, %s117
      %s120 = sphi 0, %s119
      %s134 = sphi 0, %s120
      %s138 = sphi 0, %s138
      %s140 = sphi 0, %s138
      %s141 = sphi 0, %s140
      %s155 = sphi 0, %s141
      %s159 = sphi 0, %s159
      %s161 = sphi 0, %s159
      %s162 = sphi 0, %s161
      %s176 = sphi 0, %s162
      %s180 = sphi 0, %s180
      %s182 = sphi 0, %s180
      %s183 = sphi 0, %s182
      %s197 = sphi 0, %s183
      %s201 = sphi 0, %s201
      %s203 = sphi 0, %s201
      %s204 = sphi 0, %s203
      %s218 = sphi 0, %s204
      %s222 = sphi 0, %s222
      %s224 = sphi 0, %s222
      %s225 = sphi 0, %s224
      %s239 = sphi 0, %s225
      %s243 = sphi 0, %s243
      %s245 = sphi 0, %s243
      %s246 = sphi 0, %s245
      %s260 = sphi 0, %s246
      %s266 = sphi 0, %s268
      %s269 = sphi 0, %s266
      %s270 = sphi 0, %s269
      %s286 = sphi 0, %s270
    $region4: #{tpu_custom_call.1} parent=1 // loop_header_branch
      %23 = sbr.rel (%p21) target = $region8
    $region5: #{tpu_custom_call.1} parent=1 // loop_body
      %s25 = ssub.s32 %s20, 1
      %s26 = ssub.s32 %s20, 2
      %s27 = sadd.s32 %s20, 1
      %s28 = ssub.s32 %s20, %s27
      %p29 = scmp.eq.s32.totalorder %s28, 0
      %s31 = sadd.s32 %s30, 1
      %s32 = scalar_select %p29, %s30, %s31
      %p35 = pneg %p29
      %p36 = scmp.eq.s32.totalorder %s20, 2
      %p37 = por %p35, %p36
      %p38 = scmp.ne.s32.totalorder %s30, %s33
      %p39 = scmp.eq.s32.totalorder %s20, 0
      %p40 = por %p38, %p39
      %p41 = scmp.ne.s32.totalorder %s30, %s33
      %p42 = scmp.eq.s32.totalorder %s25, 2
      %p43 = por %p41, %p42
      %p44 = scmp.ne.s32.totalorder %s33, %s34
      %p45 = scmp.eq.s32.totalorder %s25, 0
      %p46 = por %p44, %p45
      %p47 = scmp.ne.s32.totalorder %s33, %s34
      %p48 = scmp.eq.s32.totalorder %s26, 2
      %p49 = por %p47, %p48
      %p51 = scmp.ne.s32.totalorder %s34, %s50
      %p52 = scmp.eq.s32.totalorder %s26, 0
      %p53 = por %p51, %p52
      %s55 = sadd.s32 %s54, 1
      %p58 = scmp.eq.s32.totalorder %s20, 2
      %p59 = scmp.ne.s32.totalorder %s54, %s56
      %p60 = scmp.eq.s32.totalorder %s20, 0
      %p61 = por %p59, %p60
      %p62 = scmp.ne.s32.totalorder %s54, %s56
      %p63 = scmp.eq.s32.totalorder %s25, 2
      %p64 = por %p62, %p63
      %p65 = scmp.ne.s32.totalorder %s56, %s57
      %p66 = scmp.eq.s32.totalorder %s25, 0
      %p67 = por %p65, %p66
      %p68 = scmp.ne.s32.totalorder %s56, %s57
      %p69 = scmp.eq.s32.totalorder %s26, 2
      %p70 = por %p68, %p69
      %p72 = scmp.ne.s32.totalorder %s57, %s71
      %p73 = scmp.eq.s32.totalorder %s26, 0
      %p74 = por %p72, %p73
      %s76 = sadd.s32 %s75, 1
      %p79 = scmp.eq.s32.totalorder %s20, 2
      %p80 = scmp.ne.s32.totalorder %s75, %s77
      %p81 = scmp.eq.s32.totalorder %s20, 0
      %p82 = por %p80, %p81
      %p83 = scmp.ne.s32.totalorder %s75, %s77
      %p84 = scmp.eq.s32.totalorder %s25, 2
      %p85 = por %p83, %p84
      %p86 = scmp.ne.s32.totalorder %s77, %s78
      %p87 = scmp.eq.s32.totalorder %s25, 0
      %p88 = por %p86, %p87
      %p89 = scmp.ne.s32.totalorder %s77, %s78
      %p90 = scmp.eq.s32.totalorder %s26, 2
      %p91 = por %p89, %p90
      %p93 = scmp.ne.s32.totalorder %s78, %s92
      %p94 = scmp.eq.s32.totalorder %s26, 0
      %p95 = por %p93, %p94
      %s97 = sadd.s32 %s96, 1
      %p100 = scmp.eq.s32.totalorder %s20, 2
      %p101 = scmp.ne.s32.totalorder %s96, %s98
      %p102 = scmp.eq.s32.totalorder %s20, 0
      %p103 = por %p101, %p102
      %p104 = scmp.ne.s32.totalorder %s96, %s98
      %p105 = scmp.eq.s32.totalorder %s25, 2
      %p106 = por %p104, %p105
      %p107 = scmp.ne.s32.totalorder %s98, %s99
      %p108 = scmp.eq.s32.totalorder %s25, 0
      %p109 = por %p107, %p108
      %p110 = scmp.ne.s32.totalorder %s98, %s99
      %p111 = scmp.eq.s32.totalorder %s26, 2
      %p112 = por %p110, %p111
      %p114 = scmp.ne.s32.totalorder %s99, %s113
      %p115 = scmp.eq.s32.totalorder %s26, 0
      %p116 = por %p114, %p115
      %s118 = sadd.s32 %s117, 1
      %p121 = scmp.eq.s32.totalorder %s20, 2
      %p122 = scmp.ne.s32.totalorder %s117, %s119
      %p123 = scmp.eq.s32.totalorder %s20, 0
      %p124 = por %p122, %p123
      %p125 = scmp.ne.s32.totalorder %s117, %s119
      %p126 = scmp.eq.s32.totalorder %s25, 2
      %p127 = por %p125, %p126
      %p128 = scmp.ne.s32.totalorder %s119, %s120
      %p129 = scmp.eq.s32.totalorder %s25, 0
      %p130 = por %p128, %p129
      %p131 = scmp.ne.s32.totalorder %s119, %s120
      %p132 = scmp.eq.s32.totalorder %s26, 2
      %p133 = por %p131, %p132
      %p135 = scmp.ne.s32.totalorder %s120, %s134
      %p136 = scmp.eq.s32.totalorder %s26, 0
      %p137 = por %p135, %p136
      %s139 = sadd.s32 %s138, 1
      %p142 = scmp.eq.s32.totalorder %s20, 2
      %p143 = scmp.ne.s32.totalorder %s138, %s140
      %p144 = scmp.eq.s32.totalorder %s20, 0
      %p145 = por %p143, %p144
      %p146 = scmp.ne.s32.totalorder %s138, %s140
      %p147 = scmp.eq.s32.totalorder %s25, 2
      %p148 = por %p146, %p147
      %p149 = scmp.ne.s32.totalorder %s140, %s141
      %p150 = scmp.eq.s32.totalorder %s25, 0
      %p151 = por %p149, %p150
      %p152 = scmp.ne.s32.totalorder %s140, %s141
      %p153 = scmp.eq.s32.totalorder %s26, 2
      %p154 = por %p152, %p153
      %p156 = scmp.ne.s32.totalorder %s141, %s155
      %p157 = scmp.eq.s32.totalorder %s26, 0
      %p158 = por %p156, %p157
      %s160 = sadd.s32 %s159, 1
      %p163 = scmp.eq.s32.totalorder %s20, 2
      %p164 = scmp.ne.s32.totalorder %s159, %s161
      %p165 = scmp.eq.s32.totalorder %s20, 0
      %p166 = por %p164, %p165
      %p167 = scmp.ne.s32.totalorder %s159, %s161
      %p168 = scmp.eq.s32.totalorder %s25, 2
      %p169 = por %p167, %p168
      %p170 = scmp.ne.s32.totalorder %s161, %s162
      %p171 = scmp.eq.s32.totalorder %s25, 0
      %p172 = por %p170, %p171
      %p173 = scmp.ne.s32.totalorder %s161, %s162
      %p174 = scmp.eq.s32.totalorder %s26, 2
      %p175 = por %p173, %p174
      %p177 = scmp.ne.s32.totalorder %s162, %s176
      %p178 = scmp.eq.s32.totalorder %s26, 0
      %p179 = por %p177, %p178
      %s181 = sadd.s32 %s180, 1
      %p184 = scmp.eq.s32.totalorder %s20, 2
      %p185 = scmp.ne.s32.totalorder %s180, %s182
      %p186 = scmp.eq.s32.totalorder %s20, 0
      %p187 = por %p185, %p186
      %p188 = scmp.ne.s32.totalorder %s180, %s182
      %p189 = scmp.eq.s32.totalorder %s25, 2
      %p190 = por %p188, %p189
      %p191 = scmp.ne.s32.totalorder %s182, %s183
      %p192 = scmp.eq.s32.totalorder %s25, 0
      %p193 = por %p191, %p192
      %p194 = scmp.ne.s32.totalorder %s182, %s183
      %p195 = scmp.eq.s32.totalorder %s26, 2
      %p196 = por %p194, %p195
      %p198 = scmp.ne.s32.totalorder %s183, %s197
      %p199 = scmp.eq.s32.totalorder %s26, 0
      %p200 = por %p198, %p199
      %s202 = sadd.s32 %s201, 1
      %p205 = scmp.eq.s32.totalorder %s20, 2
      %p206 = scmp.ne.s32.totalorder %s201, %s203
      %p207 = scmp.eq.s32.totalorder %s20, 0
      %p208 = por %p206, %p207
      %p209 = scmp.ne.s32.totalorder %s201, %s203
      %p210 = scmp.eq.s32.totalorder %s25, 2
      %p211 = por %p209, %p210
      %p212 = scmp.ne.s32.totalorder %s203, %s204
      %p213 = scmp.eq.s32.totalorder %s25, 0
      %p214 = por %p212, %p213
      %p215 = scmp.ne.s32.totalorder %s203, %s204
      %p216 = scmp.eq.s32.totalorder %s26, 2
      %p217 = por %p215, %p216
      %p219 = scmp.ne.s32.totalorder %s204, %s218
      %p220 = scmp.eq.s32.totalorder %s26, 0
      %p221 = por %p219, %p220
      %s223 = sadd.s32 %s222, 1
      %p226 = scmp.eq.s32.totalorder %s20, 2
      %p227 = scmp.ne.s32.totalorder %s222, %s224
      %p228 = scmp.eq.s32.totalorder %s20, 0
      %p229 = por %p227, %p228
      %p230 = scmp.ne.s32.totalorder %s222, %s224
      %p231 = scmp.eq.s32.totalorder %s25, 2
      %p232 = por %p230, %p231
      %p233 = scmp.ne.s32.totalorder %s224, %s225
      %p234 = scmp.eq.s32.totalorder %s25, 0
      %p235 = por %p233, %p234
      %p236 = scmp.ne.s32.totalorder %s224, %s225
      %p237 = scmp.eq.s32.totalorder %s26, 2
      %p238 = por %p236, %p237
      %p240 = scmp.ne.s32.totalorder %s225, %s239
      %p241 = scmp.eq.s32.totalorder %s26, 0
      %p242 = por %p240, %p241
      %s244 = sadd.s32 %s243, 1
      %p247 = scmp.eq.s32.totalorder %s20, 2
      %p248 = scmp.ne.s32.totalorder %s243, %s245
      %p249 = scmp.eq.s32.totalorder %s20, 0
      %p250 = por %p248, %p249
      %p251 = scmp.ne.s32.totalorder %s243, %s245
      %p252 = scmp.eq.s32.totalorder %s25, 2
      %p253 = por %p251, %p252
      %p254 = scmp.ne.s32.totalorder %s245, %s246
      %p255 = scmp.eq.s32.totalorder %s25, 0
      %p256 = por %p254, %p255
      %p257 = scmp.ne.s32.totalorder %s245, %s246
      %p258 = scmp.eq.s32.totalorder %s26, 2
      %p259 = por %p257, %p258
      %p261 = scmp.ne.s32.totalorder %s246, %s260
      %p262 = scmp.eq.s32.totalorder %s26, 0
      %p263 = por %p261, %p262
      %s264 = ssub.s32 %s20, %s27
      %p265 = scmp.eq.s32.totalorder %s264, 0
      %s267 = sadd.s32 %s266, 1
      %s268 = scalar_select %p265, %s266, %s267
      %p271 = pneg %p265
      %p272 = scmp.eq.s32.totalorder %s20, 2
      %p273 = por %p271, %p272
      %p274 = scmp.ne.s32.totalorder %s266, %s269
      %p275 = scmp.eq.s32.totalorder %s20, 0
      %p276 = por %p274, %p275
      %p277 = scmp.ne.s32.totalorder %s266, %s269
      %p278 = scmp.eq.s32.totalorder %s25, 2
      %p279 = por %p277, %p278
      %p280 = scmp.ne.s32.totalorder %s269, %s270
      %p281 = scmp.eq.s32.totalorder %s25, 0
      %p282 = por %p280, %p281
      %p283 = scmp.ne.s32.totalorder %s269, %s270
      %p284 = scmp.eq.s32.totalorder %s26, 2
      %p285 = por %p283, %p284
      %p287 = scmp.ne.s32.totalorder %s270, %s286
      %p288 = scmp.eq.s32.totalorder %s26, 0
      %p289 = por %p287, %p288
      %p290 = scmp.le.s32.totalorder 1, %s20
      %p291 = scmp.lt.s32.totalorder %s20, 4
      %p292 = pnand %p290, %p291
      %p293 = pneg %p292
      // Predicated region
      $region9: #{tpu_custom_call.1} parent=5 // pred_check
        _
      $region10: #{tpu_custom_call.1} parent=5 // pred_check_branch
        %295 = sbr.rel (%p292) target = $region12
      $region11: #{tpu_custom_call.1} parent=5 // pred_region
        %s296 = ssub.s32 %s20, 1
        // Predicated region
        $region13: #{tpu_custom_call.1} parent=11 // pred_check
          %p297 = pneg %p67
        $region14: #{tpu_custom_call.1} parent=11 // pred_check_branch
          %299 = sbr.rel (%p297) target = $region16
        $region15: #{tpu_custom_call.1} parent=11 // pred_region
          _
        $region16: #{tpu_custom_call.1} parent=11 // pred_fallthru
          _
        // Predicated region
        $region17: #{tpu_custom_call.1} parent=11 // pred_check
          %p300 = pneg %p88
        $region18: #{tpu_custom_call.1} parent=11 // pred_check_branch
          %302 = sbr.rel (%p300) target = $region20
        $region19: #{tpu_custom_call.1} parent=11 // pred_region
          _
        $region20: #{tpu_custom_call.1} parent=11 // pred_fallthru
          _
        // Predicated region
        $region21: #{tpu_custom_call.1} parent=11 // pred_check
          %p303 = pneg %p109
        $region22: #{tpu_custom_call.1} parent=11 // pred_check_branch
          %305 = sbr.rel (%p303) target = $region24
        $region23: #{tpu_custom_call.1} parent=11 // pred_region
          _
        $region24: #{tpu_custom_call.1} parent=11 // pred_fallthru
          _
        // Predicated region
        $region25: #{tpu_custom_call.1} parent=11 // pred_check
          %p306 = pneg %p130
        $region26: #{tpu_custom_call.1} parent=11 // pred_check_branch
          %308 = sbr.rel (%p306) target = $region28
        $region27: #{tpu_custom_call.1} parent=11 // pred_region
          _
        $region28: #{tpu_custom_call.1} parent=11 // pred_fallthru
          _
        // Predicated region
        $region29: #{tpu_custom_call.1} parent=11 // pred_check
          %p309 = pneg %p151
        $region30: #{tpu_custom_call.1} parent=11 // pred_check_branch
          %311 = sbr.rel (%p309) target = $region32
        $region31: #{tpu_custom_call.1} parent=11 // pred_region
          _
        $region32: #{tpu_custom_call.1} parent=11 // pred_fallthru
          _
        // Predicated region
        $region33: #{tpu_custom_call.1} parent=11 // pred_check
          %p312 = pneg %p172
        $region34: #{tpu_custom_call.1} parent=11 // pred_check_branch
          %314 = sbr.rel (%p312) target = $region36
        $region35: #{tpu_custom_call.1} parent=11 // pred_region
          _
        $region36: #{tpu_custom_call.1} parent=11 // pred_fallthru
          _
        // Predicated region
        $region37: #{tpu_custom_call.1} parent=11 // pred_check
          %p315 = pneg %p193
        $region38: #{tpu_custom_call.1} parent=11 // pred_check_branch
          %317 = sbr.rel (%p315) target = $region40
        $region39: #{tpu_custom_call.1} parent=11 // pred_region
          _
        $region40: #{tpu_custom_call.1} parent=11 // pred_fallthru
          _
        // Predicated region
        $region41: #{tpu_custom_call.1} parent=11 // pred_check
          %p318 = pneg %p214
        $region42: #{tpu_custom_call.1} parent=11 // pred_check_branch
          %320 = sbr.rel (%p318) target = $region44
        $region43: #{tpu_custom_call.1} parent=11 // pred_region
          _
        $region44: #{tpu_custom_call.1} parent=11 // pred_fallthru
          _
        // Predicated region
        $region45: #{tpu_custom_call.1} parent=11 // pred_check
          %p321 = pneg %p235
        $region46: #{tpu_custom_call.1} parent=11 // pred_check_branch
          %323 = sbr.rel (%p321) target = $region48
        $region47: #{tpu_custom_call.1} parent=11 // pred_region
          _
        $region48: #{tpu_custom_call.1} parent=11 // pred_fallthru
          _
        // Predicated region
        $region49: #{tpu_custom_call.1} parent=11 // pred_check
          %p324 = pneg %p256
        $region50: #{tpu_custom_call.1} parent=11 // pred_check_branch
          %326 = sbr.rel (%p324) target = $region52
        $region51: #{tpu_custom_call.1} parent=11 // pred_region
          _
        $region52: #{tpu_custom_call.1} parent=11 // pred_fallthru
          _
      $region12: #{tpu_custom_call.1} parent=5 // pred_fallthru
        _
      %p327 = scmp.lt.s32.totalorder %s20, 3
      // Predicated region
      $region53: #{tpu_custom_call.1} parent=5 // pred_check
        %p328 = pneg %p327
      $region54: #{tpu_custom_call.1} parent=5 // pred_check_branch
        %330 = sbr.rel (%p328) target = $region56
      $region55: #{tpu_custom_call.1} parent=5 // pred_region
        // Predicated region
        $region57: #{tpu_custom_call.1} parent=55 // pred_check
          %p331 = pneg %p40
        $region58: #{tpu_custom_call.1} parent=55 // pred_check_branch
          %333 = sbr.rel (%p331) target = $region60
        $region59: #{tpu_custom_call.1} parent=55 // pred_region
          %s334 = smul.u32 2, %s20
          %p335 = scmp.lt.s32.totalorder %s334, 5
          %s336 = scalar_select %p335, %s334, 5
          %s337 = smul.addr %s336, 2
          %s338 = scalar_lea.vmem %s0, %s337
          %s339 = smul.u32 2, %s20
        $region60: #{tpu_custom_call.1} parent=55 // pred_fallthru
          _
      $region56: #{tpu_custom_call.1} parent=5 // pred_fallthru
        _
      %p340 = scmp.le.s32.totalorder 1, %s20
      %p341 = scmp.lt.s32.totalorder %s20, 4
      %p342 = pnand %p340, %p341
      %p343 = pneg %p342
      // Predicated region
      $region61: #{tpu_custom_call.1} parent=5 // pred_check
        _
      $region62: #{tpu_custom_call.1} parent=5 // pred_check_branch
        %345 = sbr.rel (%p342) target = $region64
      $region63: #{tpu_custom_call.1} parent=5 // pred_region
        %s346 = ssub.s32 %s20, 1
        %s347 = smul.u32 2, %s25
        %p348 = scmp.lt.s32.totalorder %s347, 5
        %s349 = scalar_select %p348, %s347, 5
        %s350 = smul.addr %s349, 2
        %s351 = scalar_lea.vmem %s0, %s350
        %p352 = pneg %p46
        %p353 = pneg %p43
        %p354 = pneg %p67
        %p355 = pneg %p64
        %p356 = pneg %p88
        %p357 = pneg %p85
        %p358 = pneg %p109
        %p359 = pneg %p106
        %p360 = pneg %p130
        %p361 = pneg %p127
        %p362 = pneg %p151
        %p363 = pneg %p148
        %p364 = pneg %p172
        %p365 = pneg %p169
        %p366 = pneg %p193
        %p367 = pneg %p190
        %p368 = pneg %p214
        %p369 = pneg %p211
        %p370 = pneg %p235
        %p371 = pneg %p232
        %p372 = pneg %p256
        %p373 = pneg %p253
        %p374 = pneg %p282
        %p375 = pneg %p279
        %s376 = sand.u32 %s269, 1
        %s377 = scalar_lea.sflag [#allocation3], %s376
        %s378 = sand.u32 %s269, 1
        %s379 = smul.addr %s378, 8
        %s380 = scalar_lea.vmem [#allocation2], %s379
        %s381 = smul.u32 2, %s25
        %p382 = scmp.lt.s32.totalorder %s381, 5
        %s383 = scalar_select %p382, %s381, 5
        %s384 = smul.addr %s383, 2
        %s385 = scalar_lea.vmem %s0, %s384
        %s386 = smul.u32 2, %s25
        %s387 = smul.u32 2, %s25
        %v388 = vld [vmem:[%s385] sm:$0xf]
        %v389 = vld [vmem:[%s1] sm:$0xff]
        %v390 = vld [vmem:[%s1 + $0x8] sm:$0xff]
        %v391 = vld [vmem:[%s1 + $0x10] sm:$0xff]
        %v392 = vld [vmem:[%s1 + $0x18] sm:$0xff]
        %v393 = vld [vmem:[%s2] sm:$0xff]
        %v394 = vld [vmem:[%s2 + $0x8] sm:$0xff]
        %v395 = vld [vmem:[%s2 + $0x10] sm:$0xff]
        %v396 = vld [vmem:[%s2 + $0x18] sm:$0xff]
        %398 = vset.pattern.permute.xlu0 0
        %399 = vperm.xlu0 %398, %v389
        %v400 = vpop.permute.xlu0 %399
        %403 = vset.pattern.permute.xlu0 0
        %404 = vperm.xlu0 %403, %v390
        %v405 = vpop.permute.xlu0 %404
        %408 = vset.pattern.permute.xlu0 0
        %409 = vperm.xlu0 %408, %v391
        %v410 = vpop.permute.xlu0 %409
        %413 = vset.pattern.permute.xlu0 0
        %414 = vperm.xlu0 %413, %v392
        %v415 = vpop.permute.xlu0 %414
        %v418 = vlaneseq
        %v419 = vshrl.u32 %v418, 7
        %v420 = vsub.s32 0, %v419
        %v421 = vrot.slane %v388, %v420
        %v422 = vlaneseq
        %v423 = vshrl.u32 %v422, 7
        %v424 = vsub.s32 2, %v423
        %v425 = vrot.slane %v388, %v424
        %v428 = vlaneseq
        %v429 = vshrl.u32 %v428, 7
        %v430 = vsub.s32 0, %v429
        %v431 = vrot.slane %v421, %v430
        %v432 = vlaneseq
        %v433 = vshrl.u32 %v432, 7
        %v434 = vsub.s32 0, %v433
        %v435 = vrot.slane %v425, %v434
        %v436 = vmul.f32 %v400, %v431
        %v437 = vmul.f32 %v400, %v435
        %v438 = vmul.f32 %v405, %v431
        %v439 = vmul.f32 %v405, %v435
        %v440 = vmul.f32 %v410, %v431
        %v441 = vmul.f32 %v410, %v435
        %v442 = vmul.f32 %v415, %v431
        %v443 = vmul.f32 %v415, %v435
        %444 = vset.pattern.permute.xlu0 1
        %445 = vperm.xlu0 %444, %v389
        %v446 = vpop.permute.xlu0 %445
        %448 = vset.pattern.permute.xlu0 1
        %449 = vperm.xlu0 %448, %v390
        %v450 = vpop.permute.xlu0 %449
        %452 = vset.pattern.permute.xlu0 1
        %453 = vperm.xlu0 %452, %v391
        %v454 = vpop.permute.xlu0 %453
        %456 = vset.pattern.permute.xlu0 1
        %457 = vperm.xlu0 %456, %v392
        %v458 = vpop.permute.xlu0 %457
        %v460 = vlaneseq
        %v461 = vshrl.u32 %v460, 7
        %v462 = vsub.s32 1, %v461
        %v463 = vrot.slane %v388, %v462
        %v464 = vlaneseq
        %v465 = vshrl.u32 %v464, 7
        %v466 = vsub.s32 3, %v465
        %v467 = vrot.slane %v388, %v466
        %v470 = vlaneseq
        %v471 = vshrl.u32 %v470, 7
        %v472 = vsub.s32 1, %v471
        %v473 = vrot.slane %v463, %v472
        %v474 = vlaneseq
        %v475 = vshrl.u32 %v474, 7
        %v476 = vsub.s32 1, %v475
        %v477 = vrot.slane %v467, %v476
        %v478 = vmul.f32 %v446, %v473
        %v479 = vmul.f32 %v446, %v477
        %v480 = vmul.f32 %v450, %v473
        %v481 = vmul.f32 %v450, %v477
        %v482 = vmul.f32 %v454, %v473
        %v483 = vmul.f32 %v454, %v477
        %v484 = vmul.f32 %v458, %v473
        %v485 = vmul.f32 %v458, %v477
        %v486 = vadd.f32 %v436, %v478
        %v487 = vadd.f32 %v437, %v479
        %v488 = vadd.f32 %v438, %v480
        %v489 = vadd.f32 %v439, %v481
        %v490 = vadd.f32 %v440, %v482
        %v491 = vadd.f32 %v441, %v483
        %v492 = vadd.f32 %v442, %v484
        %v493 = vadd.f32 %v443, %v485
        %495 = vset.pattern.permute.xlu0 0
        %496 = vperm.xlu0 %495, %v393
        %v497 = vpop.permute.xlu0 %496
        %500 = vset.pattern.permute.xlu0 0
        %501 = vperm.xlu0 %500, %v394
        %v502 = vpop.permute.xlu0 %501
        %505 = vset.pattern.permute.xlu0 0
        %506 = vperm.xlu0 %505, %v395
        %v507 = vpop.permute.xlu0 %506
        %510 = vset.pattern.permute.xlu0 0
        %511 = vperm.xlu0 %510, %v396
        %v512 = vpop.permute.xlu0 %511
        %v514 = vadd.f32 %v486, %v497
        %v515 = vadd.f32 %v487, %v497
        %v516 = vadd.f32 %v488, %v502
        %v517 = vadd.f32 %v489, %v502
        %v518 = vadd.f32 %v490, %v507
        %v519 = vadd.f32 %v491, %v507
        %v520 = vadd.f32 %v492, %v512
        %v521 = vadd.f32 %v493, %v512
        %v522 = vand.u32 2147483647, %v514
        %vm523 = vcmp.le.f32.partialorder %v522, 0.7853982
        %vm524 = vcmp.lt.s32.totalorder %v514, 0
        %v525 = vand.u32 %v514, 2139095040
        %v526 = vshrl.u32 %v525, 23
        %v527 = vsub.s32 %v526, 127
        %v528 = vand.u32 2147483647, %v514
        %v529 = vand.u32 %v528, 8388607
        %v530 = vor.u32 %v529, 8388608
        %v531 = vsub.s32 0, %v530
        %v532 = vadd.s32 %v527, 1
        %vm533 = vcmp.gt.s32.totalorder %v532, 0
        %v534 = vsel %vm533, %v532, 0
        %v535 = vshrl.u32 %v534, 5
        %v536 = vand.u32 %v534, 31
        %v537 = vsub.s32 32, %v536
        %v538 = vshrl.u32 683565275, %v537
        %v539 = vshll.u32 683565275, %v536
        %v540 = vshrl.u32 2475754826, %v537
        %v541 = vor.u32 %v539, %v540
        %v542 = vshll.u32 2475754826, %v536
        %v543 = vshrl.u32 2131351028, %v537
        %v544 = vor.u32 %v542, %v543
        %v545 = vshll.u32 2131351028, %v536
        %v546 = vshrl.u32 2102212464, %v537
        %v547 = vor.u32 %v545, %v546
        %v548 = vshll.u32 2102212464, %v536
        %v549 = vshrl.u32 920167782, %v537
        %v550 = vor.u32 %v548, %v549
        %v551 = vshll.u32 920167782, %v536
        %v552 = vshrl.u32 1326507024, %v537
        %v553 = vor.u32 %v551, %v552
        %vm554 = vcmp.lt.s32.totalorder %v535, 1
        %vm555 = vcmp.lt.s32.totalorder %v535, 2
        %vm556 = vcmp.lt.s32.totalorder %v535, 3
        %vm557 = vcmp.lt.s32.totalorder %v535, 4
        %v558 = vsel %vm554, %v538, %v541
        %v559 = vsel %vm557, %v547, 2102212464
        %v560 = vsel %vm556, %v544, %v559
        %v561 = vsel %vm555, %v558, %v560
        %v562 = vsel %vm554, %v541, %v544
        %v563 = vsel %vm557, %v550, 920167782
        %v564 = vsel %vm556, %v547, %v563
        %v565 = vsel %vm555, %v562, %v564
        %v566 = vsel %vm554, %v544, %v547
        %v567 = vsel %vm557, %v553, 1326507024
        %v568 = vsel %vm556, %v550, %v567
        %v569 = vsel %vm555, %v566, %v568
        %v570 = vshll.u32 %v530, 8
        %v571 = vmul.u32.u64.compose %v570, %v569
        %v572 = vextract.low.u32 %v571
        %v573 = vextract.high.u32 %v571
        %v574 = vmul.u32.u64.compose %v570, %v565
        %v575 = vextract.low.u32 %v574
        %v576 = vextract.high.u32 %v574
        %v577 = vmul.u32 %v570, %v561
        %v578 = vadd.s32 %v573, %v575
        %vm579 = vc.u32 %v573, %v575
        %v580 = vadd.s32 %v576, 1
        %v581 = vsel %vm579, %v580, %v576
        %v582 = vadd.s32 %v577, %v581
        %v583 = vadd.s32 %v582, 536870912
        %v584 = vshrl.u32 %v583, 30
        %v585 = vshll.u32 %v584, 30
        %v586 = vsub.s32 %v582, %v585
        %vm587 = vcmp.lt.s32.totalorder %v586, 0
        %v588 = vsub.s32 0, %v586
        %v589 = vsel %vm587, %v588, %v586
        %v590 = vclz %v589
        %v591 = vsub.s32 %v590, 2
        %vm592 = vcmp.gt.s32.totalorder 0, %v591
        %v593 = vsel %vm592, 0, %v591
        %v594 = vsub.s32 32, %v593
        %v595 = vshll.u32 %v586, %v593
        %v596 = vshrl.u32 %v578, %v594
        %v597 = vor.u32 %v595, %v596
        %v598 = vsub.s32 4294967266, %v593
        %v599 = vadd.s32 %v598, 127
        %v600 = vshll.u32 %v599, 23
        %v601 = vor.u32 4788187, %v600
        %v602 = vand.u32 2147483647, %v601
        %v604 = vcvt.s32.f32 %v597
        %v605 = vmul.f32 %v604, %v602
        %v606 = vxor.u32 %v605, 2147483648
        %v607 = vsel %vm524, %v606, %v605
        %v608 = vsub.s32 4, %v584
        %v609 = vsel %vm524, %v608, %v584
        %v610 = vsel %vm523, %v514, %v607
        %v611 = vsel %vm523, 0, %v609
        %v612 = vcosq.f32.pop %v610
        %v613 = vsinq.f32.pop %v610
        %vm614 = vweird.f32 %v514
        %v615 = vadd.s32 %v611, 3
        %v616 = vand.u32 %v615, 3
        %vm617 = vcmp.lt.s32.totalorder %v616, 2
        %vm618 = vcmp.eq.s32.totalorder %v616, 0
        %v619 = vxor.u32 %v613, 2147483648
        %v620 = vsel %vm618, %v612, %v619
        %vm621 = vcmp.eq.s32.totalorder %v616, 2
        %v622 = vxor.u32 %v612, 2147483648
        %v623 = vsel %vm621, %v622, %v613
        %v624 = vsel %vm617, %v620, %v623
        %v625 = vsel %vm614, nan, %v624
        %v626 = vand.u32 2147483647, %v515
        %vm627 = vcmp.le.f32.partialorder %v626, 0.7853982
        %vm628 = vcmp.lt.s32.totalorder %v515, 0
        %v629 = vand.u32 %v515, 2139095040
        %v630 = vshrl.u32 %v629, 23
        %v631 = vsub.s32 %v630, 127
        %v632 = vand.u32 2147483647, %v515
        %v633 = vand.u32 %v632, 8388607
        %v634 = vor.u32 %v633, 8388608
        %v635 = vsub.s32 0, %v634
        %v636 = vadd.s32 %v631, 1
        %vm637 = vcmp.gt.s32.totalorder %v636, 0
        %v638 = vsel %vm637, %v636, 0
        %v639 = vshrl.u32 %v638, 5
        %v640 = vand.u32 %v638, 31
        %v641 = vsub.s32 32, %v640
        %v642 = vshrl.u32 683565275, %v641
        %v643 = vshll.u32 683565275, %v640
        %v644 = vshrl.u32 2475754826, %v641
        %v645 = vor.u32 %v643, %v644
        %v646 = vshll.u32 2475754826, %v640
        %v647 = vshrl.u32 2131351028, %v641
        %v648 = vor.u32 %v646, %v647
        %v649 = vshll.u32 2131351028, %v640
        %v650 = vshrl.u32 2102212464, %v641
        %v651 = vor.u32 %v649, %v650
        %v652 = vshll.u32 2102212464, %v640
        %v653 = vshrl.u32 920167782, %v641
        %v654 = vor.u32 %v652, %v653
        %v655 = vshll.u32 920167782, %v640
        %v656 = vshrl.u32 1326507024, %v641
        %v657 = vor.u32 %v655, %v656
        %vm658 = vcmp.lt.s32.totalorder %v639, 1
        %vm659 = vcmp.lt.s32.totalorder %v639, 2
        %vm660 = vcmp.lt.s32.totalorder %v639, 3
        %vm661 = vcmp.lt.s32.totalorder %v639, 4
        %v662 = vsel %vm658, %v642, %v645
        %v663 = vsel %vm661, %v651, 2102212464
        %v664 = vsel %vm660, %v648, %v663
        %v665 = vsel %vm659, %v662, %v664
        %v666 = vsel %vm658, %v645, %v648
        %v667 = vsel %vm661, %v654, 920167782
        %v668 = vsel %vm660, %v651, %v667
        %v669 = vsel %vm659, %v666, %v668
        %v670 = vsel %vm658, %v648, %v651
        %v671 = vsel %vm661, %v657, 1326507024
        %v672 = vsel %vm660, %v654, %v671
        %v673 = vsel %vm659, %v670, %v672
        %v674 = vshll.u32 %v634, 8
        %v675 = vmul.u32.u64.compose %v674, %v673
        %v676 = vextract.low.u32 %v675
        %v677 = vextract.high.u32 %v675
        %v678 = vmul.u32.u64.compose %v674, %v669
        %v679 = vextract.low.u32 %v678
        %v680 = vextract.high.u32 %v678
        %v681 = vmul.u32 %v674, %v665
        %v682 = vadd.s32 %v677, %v679
        %vm683 = vc.u32 %v677, %v679
        %v684 = vadd.s32 %v680, 1
        %v685 = vsel %vm683, %v684, %v680
        %v686 = vadd.s32 %v681, %v685
        %v687 = vadd.s32 %v686, 536870912
        %v688 = vshrl.u32 %v687, 30
        %v689 = vshll.u32 %v688, 30
        %v690 = vsub.s32 %v686, %v689
        %vm691 = vcmp.lt.s32.totalorder %v690, 0
        %v692 = vsub.s32 0, %v690
        %v693 = vsel %vm691, %v692, %v690
        %v694 = vclz %v693
        %v695 = vsub.s32 %v694, 2
        %vm696 = vcmp.gt.s32.totalorder 0, %v695
        %v697 = vsel %vm696, 0, %v695
        %v698 = vsub.s32 32, %v697
        %v699 = vshll.u32 %v690, %v697
        %v700 = vshrl.u32 %v682, %v698
        %v701 = vor.u32 %v699, %v700
        %v702 = vsub.s32 4294967266, %v697
        %v703 = vadd.s32 %v702, 127
        %v704 = vshll.u32 %v703, 23
        %v705 = vor.u32 4788187, %v704
        %v706 = vand.u32 2147483647, %v705
        %v708 = vcvt.s32.f32 %v701
        %v709 = vmul.f32 %v708, %v706
        %v710 = vxor.u32 %v709, 2147483648
        %v711 = vsel %vm628, %v710, %v709
        %v712 = vsub.s32 4, %v688
        %v713 = vsel %vm628, %v712, %v688
        %v714 = vsel %vm627, %v515, %v711
        %v715 = vsel %vm627, 0, %v713
        %v716 = vcosq.f32.pop %v714
        %v717 = vsinq.f32.pop %v714
        %vm718 = vweird.f32 %v515
        %v719 = vadd.s32 %v715, 3
        %v720 = vand.u32 %v719, 3
        %vm721 = vcmp.lt.s32.totalorder %v720, 2
        %vm722 = vcmp.eq.s32.totalorder %v720, 0
        %v723 = vxor.u32 %v717, 2147483648
        %v724 = vsel %vm722, %v716, %v723
        %vm725 = vcmp.eq.s32.totalorder %v720, 2
        %v726 = vxor.u32 %v716, 2147483648
        %v727 = vsel %vm725, %v726, %v717
        %v728 = vsel %vm721, %v724, %v727
        %v729 = vsel %vm718, nan, %v728
        %v730 = vand.u32 2147483647, %v516
        %vm731 = vcmp.le.f32.partialorder %v730, 0.7853982
        %vm732 = vcmp.lt.s32.totalorder %v516, 0
        %v733 = vand.u32 %v516, 2139095040
        %v734 = vshrl.u32 %v733, 23
        %v735 = vsub.s32 %v734, 127
        %v736 = vand.u32 2147483647, %v516
        %v737 = vand.u32 %v736, 8388607
        %v738 = vor.u32 %v737, 8388608
        %v739 = vsub.s32 0, %v738
        %v740 = vadd.s32 %v735, 1
        %vm741 = vcmp.gt.s32.totalorder %v740, 0
        %v742 = vsel %vm741, %v740, 0
        %v743 = vshrl.u32 %v742, 5
        %v744 = vand.u32 %v742, 31
        %v745 = vsub.s32 32, %v744
        %v746 = vshrl.u32 683565275, %v745
        %v747 = vshll.u32 683565275, %v744
        %v748 = vshrl.u32 2475754826, %v745
        %v749 = vor.u32 %v747, %v748
        %v750 = vshll.u32 2475754826, %v744
        %v751 = vshrl.u32 2131351028, %v745
        %v752 = vor.u32 %v750, %v751
        %v753 = vshll.u32 2131351028, %v744
        %v754 = vshrl.u32 2102212464, %v745
        %v755 = vor.u32 %v753, %v754
        %v756 = vshll.u32 2102212464, %v744
        %v757 = vshrl.u32 920167782, %v745
        %v758 = vor.u32 %v756, %v757
        %v759 = vshll.u32 920167782, %v744
        %v760 = vshrl.u32 1326507024, %v745
        %v761 = vor.u32 %v759, %v760
        %vm762 = vcmp.lt.s32.totalorder %v743, 1
        %vm763 = vcmp.lt.s32.totalorder %v743, 2
        %vm764 = vcmp.lt.s32.totalorder %v743, 3
        %vm765 = vcmp.lt.s32.totalorder %v743, 4
        %v766 = vsel %vm762, %v746, %v749
        %v767 = vsel %vm765, %v755, 2102212464
        %v768 = vsel %vm764, %v752, %v767
        %v769 = vsel %vm763, %v766, %v768
        %v770 = vsel %vm762, %v749, %v752
        %v771 = vsel %vm765, %v758, 920167782
        %v772 = vsel %vm764, %v755, %v771
        %v773 = vsel %vm763, %v770, %v772
        %v774 = vsel %vm762, %v752, %v755
        %v775 = vsel %vm765, %v761, 1326507024
        %v776 = vsel %vm764, %v758, %v775
        %v777 = vsel %vm763, %v774, %v776
        %v778 = vshll.u32 %v738, 8
        %v779 = vmul.u32.u64.compose %v778, %v777
        %v780 = vextract.low.u32 %v779
        %v781 = vextract.high.u32 %v779
        %v782 = vmul.u32.u64.compose %v778, %v773
        %v783 = vextract.low.u32 %v782
        %v784 = vextract.high.u32 %v782
        %v785 = vmul.u32 %v778, %v769
        %v786 = vadd.s32 %v781, %v783
        %vm787 = vc.u32 %v781, %v783
        %v788 = vadd.s32 %v784, 1
        %v789 = vsel %vm787, %v788, %v784
        %v790 = vadd.s32 %v785, %v789
        %v791 = vadd.s32 %v790, 536870912
        %v792 = vshrl.u32 %v791, 30
        %v793 = vshll.u32 %v792, 30
        %v794 = vsub.s32 %v790, %v793
        %vm795 = vcmp.lt.s32.totalorder %v794, 0
        %v796 = vsub.s32 0, %v794
        %v797 = vsel %vm795, %v796, %v794
        %v798 = vclz %v797
        %v799 = vsub.s32 %v798, 2
        %vm800 = vcmp.gt.s32.totalorder 0, %v799
        %v801 = vsel %vm800, 0, %v799
        %v802 = vsub.s32 32, %v801
        %v803 = vshll.u32 %v794, %v801
        %v804 = vshrl.u32 %v786, %v802
        %v805 = vor.u32 %v803, %v804
        %v806 = vsub.s32 4294967266, %v801
        %v807 = vadd.s32 %v806, 127
        %v808 = vshll.u32 %v807, 23
        %v809 = vor.u32 4788187, %v808
        %v810 = vand.u32 2147483647, %v809
        %v812 = vcvt.s32.f32 %v805
        %v813 = vmul.f32 %v812, %v810
        %v814 = vxor.u32 %v813, 2147483648
        %v815 = vsel %vm732, %v814, %v813
        %v816 = vsub.s32 4, %v792
        %v817 = vsel %vm732, %v816, %v792
        %v818 = vsel %vm731, %v516, %v815
        %v819 = vsel %vm731, 0, %v817
        %v820 = vcosq.f32.pop %v818
        %v821 = vsinq.f32.pop %v818
        %vm822 = vweird.f32 %v516
        %v823 = vadd.s32 %v819, 3
        %v824 = vand.u32 %v823, 3
        %vm825 = vcmp.lt.s32.totalorder %v824, 2
        %vm826 = vcmp.eq.s32.totalorder %v824, 0
        %v827 = vxor.u32 %v821, 2147483648
        %v828 = vsel %vm826, %v820, %v827
        %vm829 = vcmp.eq.s32.totalorder %v824, 2
        %v830 = vxor.u32 %v820, 2147483648
        %v831 = vsel %vm829, %v830, %v821
        %v832 = vsel %vm825, %v828, %v831
        %v833 = vsel %vm822, nan, %v832
        %v834 = vand.u32 2147483647, %v517
        %vm835 = vcmp.le.f32.partialorder %v834, 0.7853982
        %vm836 = vcmp.lt.s32.totalorder %v517, 0
        %v837 = vand.u32 %v517, 2139095040
        %v838 = vshrl.u32 %v837, 23
        %v839 = vsub.s32 %v838, 127
        %v840 = vand.u32 2147483647, %v517
        %v841 = vand.u32 %v840, 8388607
        %v842 = vor.u32 %v841, 8388608
        %v843 = vsub.s32 0, %v842
        %v844 = vadd.s32 %v839, 1
        %vm845 = vcmp.gt.s32.totalorder %v844, 0
        %v846 = vsel %vm845, %v844, 0
        %v847 = vshrl.u32 %v846, 5
        %v848 = vand.u32 %v846, 31
        %v849 = vsub.s32 32, %v848
        %v850 = vshrl.u32 683565275, %v849
        %v851 = vshll.u32 683565275, %v848
        %v852 = vshrl.u32 2475754826, %v849
        %v853 = vor.u32 %v851, %v852
        %v854 = vshll.u32 2475754826, %v848
        %v855 = vshrl.u32 2131351028, %v849
        %v856 = vor.u32 %v854, %v855
        %v857 = vshll.u32 2131351028, %v848
        %v858 = vshrl.u32 2102212464, %v849
        %v859 = vor.u32 %v857, %v858
        %v860 = vshll.u32 2102212464, %v848
        %v861 = vshrl.u32 920167782, %v849
        %v862 = vor.u32 %v860, %v861
        %v863 = vshll.u32 920167782, %v848
        %v864 = vshrl.u32 1326507024, %v849
        %v865 = vor.u32 %v863, %v864
        %vm866 = vcmp.lt.s32.totalorder %v847, 1
        %vm867 = vcmp.lt.s32.totalorder %v847, 2
        %vm868 = vcmp.lt.s32.totalorder %v847, 3
        %vm869 = vcmp.lt.s32.totalorder %v847, 4
        %v870 = vsel %vm866, %v850, %v853
        %v871 = vsel %vm869, %v859, 2102212464
        %v872 = vsel %vm868, %v856, %v871
        %v873 = vsel %vm867, %v870, %v872
        %v874 = vsel %vm866, %v853, %v856
        %v875 = vsel %vm869, %v862, 920167782
        %v876 = vsel %vm868, %v859, %v875
        %v877 = vsel %vm867, %v874, %v876
        %v878 = vsel %vm866, %v856, %v859
        %v879 = vsel %vm869, %v865, 1326507024
        %v880 = vsel %vm868, %v862, %v879
        %v881 = vsel %vm867, %v878, %v880
        %v882 = vshll.u32 %v842, 8
        %v883 = vmul.u32.u64.compose %v882, %v881
        %v884 = vextract.low.u32 %v883
        %v885 = vextract.high.u32 %v883
        %v886 = vmul.u32.u64.compose %v882, %v877
        %v887 = vextract.low.u32 %v886
        %v888 = vextract.high.u32 %v886
        %v889 = vmul.u32 %v882, %v873
        %v890 = vadd.s32 %v885, %v887
        %vm891 = vc.u32 %v885, %v887
        %v892 = vadd.s32 %v888, 1
        %v893 = vsel %vm891, %v892, %v888
        %v894 = vadd.s32 %v889, %v893
        %v895 = vadd.s32 %v894, 536870912
        %v896 = vshrl.u32 %v895, 30
        %v897 = vshll.u32 %v896, 30
        %v898 = vsub.s32 %v894, %v897
        %vm899 = vcmp.lt.s32.totalorder %v898, 0
        %v900 = vsub.s32 0, %v898
        %v901 = vsel %vm899, %v900, %v898
        %v902 = vclz %v901
        %v903 = vsub.s32 %v902, 2
        %vm904 = vcmp.gt.s32.totalorder 0, %v903
        %v905 = vsel %vm904, 0, %v903
        %v906 = vsub.s32 32, %v905
        %v907 = vshll.u32 %v898, %v905
        %v908 = vshrl.u32 %v890, %v906
        %v909 = vor.u32 %v907, %v908
        %v910 = vsub.s32 4294967266, %v905
        %v911 = vadd.s32 %v910, 127
        %v912 = vshll.u32 %v911, 23
        %v913 = vor.u32 4788187, %v912
        %v914 = vand.u32 2147483647, %v913
        %v916 = vcvt.s32.f32 %v909
        %v917 = vmul.f32 %v916, %v914
        %v918 = vxor.u32 %v917, 2147483648
        %v919 = vsel %vm836, %v918, %v917
        %v920 = vsub.s32 4, %v896
        %v921 = vsel %vm836, %v920, %v896
        %v922 = vsel %vm835, %v517, %v919
        %v923 = vsel %vm835, 0, %v921
        %v924 = vcosq.f32.pop %v922
        %v925 = vsinq.f32.pop %v922
        %vm926 = vweird.f32 %v517
        %v927 = vadd.s32 %v923, 3
        %v928 = vand.u32 %v927, 3
        %vm929 = vcmp.lt.s32.totalorder %v928, 2
        %vm930 = vcmp.eq.s32.totalorder %v928, 0
        %v931 = vxor.u32 %v925, 2147483648
        %v932 = vsel %vm930, %v924, %v931
        %vm933 = vcmp.eq.s32.totalorder %v928, 2
        %v934 = vxor.u32 %v924, 2147483648
        %v935 = vsel %vm933, %v934, %v925
        %v936 = vsel %vm929, %v932, %v935
        %v937 = vsel %vm926, nan, %v936
        %v938 = vand.u32 2147483647, %v518
        %vm939 = vcmp.le.f32.partialorder %v938, 0.7853982
        %vm940 = vcmp.lt.s32.totalorder %v518, 0
        %v941 = vand.u32 %v518, 2139095040
        %v942 = vshrl.u32 %v941, 23
        %v943 = vsub.s32 %v942, 127
        %v944 = vand.u32 2147483647, %v518
        %v945 = vand.u32 %v944, 8388607
        %v946 = vor.u32 %v945, 8388608
        %v947 = vsub.s32 0, %v946
        %v948 = vadd.s32 %v943, 1
        %vm949 = vcmp.gt.s32.totalorder %v948, 0
        %v950 = vsel %vm949, %v948, 0
        %v951 = vshrl.u32 %v950, 5
        %v952 = vand.u32 %v950, 31
        %v953 = vsub.s32 32, %v952
        %v954 = vshrl.u32 683565275, %v953
        %v955 = vshll.u32 683565275, %v952
        %v956 = vshrl.u32 2475754826, %v953
        %v957 = vor.u32 %v955, %v956
        %v958 = vshll.u32 2475754826, %v952
        %v959 = vshrl.u32 2131351028, %v953
        %v960 = vor.u32 %v958, %v959
        %v961 = vshll.u32 2131351028, %v952
        %v962 = vshrl.u32 2102212464, %v953
        %v963 = vor.u32 %v961, %v962
        %v964 = vshll.u32 2102212464, %v952
        %v965 = vshrl.u32 920167782, %v953
        %v966 = vor.u32 %v964, %v965
        %v967 = vshll.u32 920167782, %v952
        %v968 = vshrl.u32 1326507024, %v953
        %v969 = vor.u32 %v967, %v968
        %vm970 = vcmp.lt.s32.totalorder %v951, 1
        %vm971 = vcmp.lt.s32.totalorder %v951, 2
        %vm972 = vcmp.lt.s32.totalorder %v951, 3
        %vm973 = vcmp.lt.s32.totalorder %v951, 4
        %v974 = vsel %vm970, %v954, %v957
        %v975 = vsel %vm973, %v963, 2102212464
        %v976 = vsel %vm972, %v960, %v975
        %v977 = vsel %vm971, %v974, %v976
        %v978 = vsel %vm970, %v957, %v960
        %v979 = vsel %vm973, %v966, 920167782
        %v980 = vsel %vm972, %v963, %v979
        %v981 = vsel %vm971, %v978, %v980
        %v982 = vsel %vm970, %v960, %v963
        %v983 = vsel %vm973, %v969, 1326507024
        %v984 = vsel %vm972, %v966, %v983
        %v985 = vsel %vm971, %v982, %v984
        %v986 = vshll.u32 %v946, 8
        %v987 = vmul.u32.u64.compose %v986, %v985
        %v988 = vextract.low.u32 %v987
        %v989 = vextract.high.u32 %v987
        %v990 = vmul.u32.u64.compose %v986, %v981
        %v991 = vextract.low.u32 %v990
        %v992 = vextract.high.u32 %v990
        %v993 = vmul.u32 %v986, %v977
        %v994 = vadd.s32 %v989, %v991
        %vm995 = vc.u32 %v989, %v991
        %v996 = vadd.s32 %v992, 1
        %v997 = vsel %vm995, %v996, %v992
        %v998 = vadd.s32 %v993, %v997
        %v999 = vadd.s32 %v998, 536870912
        %v1000 = vshrl.u32 %v999, 30
        %v1001 = vshll.u32 %v1000, 30
        %v1002 = vsub.s32 %v998, %v1001
        %vm1003 = vcmp.lt.s32.totalorder %v1002, 0
        %v1004 = vsub.s32 0, %v1002
        %v1005 = vsel %vm1003, %v1004, %v1002
        %v1006 = vclz %v1005
        %v1007 = vsub.s32 %v1006, 2
        %vm1008 = vcmp.gt.s32.totalorder 0, %v1007
        %v1009 = vsel %vm1008, 0, %v1007
        %v1010 = vsub.s32 32, %v1009
        %v1011 = vshll.u32 %v1002, %v1009
        %v1012 = vshrl.u32 %v994, %v1010
        %v1013 = vor.u32 %v1011, %v1012
        %v1014 = vsub.s32 4294967266, %v1009
        %v1015 = vadd.s32 %v1014, 127
        %v1016 = vshll.u32 %v1015, 23
        %v1017 = vor.u32 4788187, %v1016
        %v1018 = vand.u32 2147483647, %v1017
        %v1020 = vcvt.s32.f32 %v1013
        %v1021 = vmul.f32 %v1020, %v1018
        %v1022 = vxor.u32 %v1021, 2147483648
        %v1023 = vsel %vm940, %v1022, %v1021
        %v1024 = vsub.s32 4, %v1000
        %v1025 = vsel %vm940, %v1024, %v1000
        %v1026 = vsel %vm939, %v518, %v1023
        %v1027 = vsel %vm939, 0, %v1025
        %v1028 = vcosq.f32.pop %v1026
        %v1029 = vsinq.f32.pop %v1026
        %vm1030 = vweird.f32 %v518
        %v1031 = vadd.s32 %v1027, 3
        %v1032 = vand.u32 %v1031, 3
        %vm1033 = vcmp.lt.s32.totalorder %v1032, 2
        %vm1034 = vcmp.eq.s32.totalorder %v1032, 0
        %v1035 = vxor.u32 %v1029, 2147483648
        %v1036 = vsel %vm1034, %v1028, %v1035
        %vm1037 = vcmp.eq.s32.totalorder %v1032, 2
        %v1038 = vxor.u32 %v1028, 2147483648
        %v1039 = vsel %vm1037, %v1038, %v1029
        %v1040 = vsel %vm1033, %v1036, %v1039
        %v1041 = vsel %vm1030, nan, %v1040
        %v1042 = vand.u32 2147483647, %v519
        %vm1043 = vcmp.le.f32.partialorder %v1042, 0.7853982
        %vm1044 = vcmp.lt.s32.totalorder %v519, 0
        %v1045 = vand.u32 %v519, 2139095040
        %v1046 = vshrl.u32 %v1045, 23
        %v1047 = vsub.s32 %v1046, 127
        %v1048 = vand.u32 2147483647, %v519
        %v1049 = vand.u32 %v1048, 8388607
        %v1050 = vor.u32 %v1049, 8388608
        %v1051 = vsub.s32 0, %v1050
        %v1052 = vadd.s32 %v1047, 1
        %vm1053 = vcmp.gt.s32.totalorder %v1052, 0
        %v1054 = vsel %vm1053, %v1052, 0
        %v1055 = vshrl.u32 %v1054, 5
        %v1056 = vand.u32 %v1054, 31
        %v1057 = vsub.s32 32, %v1056
        %v1058 = vshrl.u32 683565275, %v1057
        %v1059 = vshll.u32 683565275, %v1056
        %v1060 = vshrl.u32 2475754826, %v1057
        %v1061 = vor.u32 %v1059, %v1060
        %v1062 = vshll.u32 2475754826, %v1056
        %v1063 = vshrl.u32 2131351028, %v1057
        %v1064 = vor.u32 %v1062, %v1063
        %v1065 = vshll.u32 2131351028, %v1056
        %v1066 = vshrl.u32 2102212464, %v1057
        %v1067 = vor.u32 %v1065, %v1066
        %v1068 = vshll.u32 2102212464, %v1056
        %v1069 = vshrl.u32 920167782, %v1057
        %v1070 = vor.u32 %v1068, %v1069
        %v1071 = vshll.u32 920167782, %v1056
        %v1072 = vshrl.u32 1326507024, %v1057
        %v1073 = vor.u32 %v1071, %v1072
        %vm1074 = vcmp.lt.s32.totalorder %v1055, 1
        %vm1075 = vcmp.lt.s32.totalorder %v1055, 2
        %vm1076 = vcmp.lt.s32.totalorder %v1055, 3
        %vm1077 = vcmp.lt.s32.totalorder %v1055, 4
        %v1078 = vsel %vm1074, %v1058, %v1061
        %v1079 = vsel %vm1077, %v1067, 2102212464
        %v1080 = vsel %vm1076, %v1064, %v1079
        %v1081 = vsel %vm1075, %v1078, %v1080
        %v1082 = vsel %vm1074, %v1061, %v1064
        %v1083 = vsel %vm1077, %v1070, 920167782
        %v1084 = vsel %vm1076, %v1067, %v1083
        %v1085 = vsel %vm1075, %v1082, %v1084
        %v1086 = vsel %vm1074, %v1064, %v1067
        %v1087 = vsel %vm1077, %v1073, 1326507024
        %v1088 = vsel %vm1076, %v1070, %v1087
        %v1089 = vsel %vm1075, %v1086, %v1088
        %v1090 = vshll.u32 %v1050, 8
        %v1091 = vmul.u32.u64.compose %v1090, %v1089
        %v1092 = vextract.low.u32 %v1091
        %v1093 = vextract.high.u32 %v1091
        %v1094 = vmul.u32.u64.compose %v1090, %v1085
        %v1095 = vextract.low.u32 %v1094
        %v1096 = vextract.high.u32 %v1094
        %v1097 = vmul.u32 %v1090, %v1081
        %v1098 = vadd.s32 %v1093, %v1095
        %vm1099 = vc.u32 %v1093, %v1095
        %v1100 = vadd.s32 %v1096, 1
        %v1101 = vsel %vm1099, %v1100, %v1096
        %v1102 = vadd.s32 %v1097, %v1101
        %v1103 = vadd.s32 %v1102, 536870912
        %v1104 = vshrl.u32 %v1103, 30
        %v1105 = vshll.u32 %v1104, 30
        %v1106 = vsub.s32 %v1102, %v1105
        %vm1107 = vcmp.lt.s32.totalorder %v1106, 0
        %v1108 = vsub.s32 0, %v1106
        %v1109 = vsel %vm1107, %v1108, %v1106
        %v1110 = vclz %v1109
        %v1111 = vsub.s32 %v1110, 2
        %vm1112 = vcmp.gt.s32.totalorder 0, %v1111
        %v1113 = vsel %vm1112, 0, %v1111
        %v1114 = vsub.s32 32, %v1113
        %v1115 = vshll.u32 %v1106, %v1113
        %v1116 = vshrl.u32 %v1098, %v1114
        %v1117 = vor.u32 %v1115, %v1116
        %v1118 = vsub.s32 4294967266, %v1113
        %v1119 = vadd.s32 %v1118, 127
        %v1120 = vshll.u32 %v1119, 23
        %v1121 = vor.u32 4788187, %v1120
        %v1122 = vand.u32 2147483647, %v1121
        %v1124 = vcvt.s32.f32 %v1117
        %v1125 = vmul.f32 %v1124, %v1122
        %v1126 = vxor.u32 %v1125, 2147483648
        %v1127 = vsel %vm1044, %v1126, %v1125
        %v1128 = vsub.s32 4, %v1104
        %v1129 = vsel %vm1044, %v1128, %v1104
        %v1130 = vsel %vm1043, %v519, %v1127
        %v1131 = vsel %vm1043, 0, %v1129
        %v1132 = vcosq.f32.pop %v1130
        %v1133 = vsinq.f32.pop %v1130
        %vm1134 = vweird.f32 %v519
        %v1135 = vadd.s32 %v1131, 3
        %v1136 = vand.u32 %v1135, 3
        %vm1137 = vcmp.lt.s32.totalorder %v1136, 2
        %vm1138 = vcmp.eq.s32.totalorder %v1136, 0
        %v1139 = vxor.u32 %v1133, 2147483648
        %v1140 = vsel %vm1138, %v1132, %v1139
        %vm1141 = vcmp.eq.s32.totalorder %v1136, 2
        %v1142 = vxor.u32 %v1132, 2147483648
        %v1143 = vsel %vm1141, %v1142, %v1133
        %v1144 = vsel %vm1137, %v1140, %v1143
        %v1145 = vsel %vm1134, nan, %v1144
        %v1146 = vand.u32 2147483647, %v520
        %vm1147 = vcmp.le.f32.partialorder %v1146, 0.7853982
        %vm1148 = vcmp.lt.s32.totalorder %v520, 0
        %v1149 = vand.u32 %v520, 2139095040
        %v1150 = vshrl.u32 %v1149, 23
        %v1151 = vsub.s32 %v1150, 127
        %v1152 = vand.u32 2147483647, %v520
        %v1153 = vand.u32 %v1152, 8388607
        %v1154 = vor.u32 %v1153, 8388608
        %v1155 = vsub.s32 0, %v1154
        %v1156 = vadd.s32 %v1151, 1
        %vm1157 = vcmp.gt.s32.totalorder %v1156, 0
        %v1158 = vsel %vm1157, %v1156, 0
        %v1159 = vshrl.u32 %v1158, 5
        %v1160 = vand.u32 %v1158, 31
        %v1161 = vsub.s32 32, %v1160
        %v1162 = vshrl.u32 683565275, %v1161
        %v1163 = vshll.u32 683565275, %v1160
        %v1164 = vshrl.u32 2475754826, %v1161
        %v1165 = vor.u32 %v1163, %v1164
        %v1166 = vshll.u32 2475754826, %v1160
        %v1167 = vshrl.u32 2131351028, %v1161
        %v1168 = vor.u32 %v1166, %v1167
        %v1169 = vshll.u32 2131351028, %v1160
        %v1170 = vshrl.u32 2102212464, %v1161
        %v1171 = vor.u32 %v1169, %v1170
        %v1172 = vshll.u32 2102212464, %v1160
        %v1173 = vshrl.u32 920167782, %v1161
        %v1174 = vor.u32 %v1172, %v1173
        %v1175 = vshll.u32 920167782, %v1160
        %v1176 = vshrl.u32 1326507024, %v1161
        %v1177 = vor.u32 %v1175, %v1176
        %vm1178 = vcmp.lt.s32.totalorder %v1159, 1
        %vm1179 = vcmp.lt.s32.totalorder %v1159, 2
        %vm1180 = vcmp.lt.s32.totalorder %v1159, 3
        %vm1181 = vcmp.lt.s32.totalorder %v1159, 4
        %v1182 = vsel %vm1178, %v1162, %v1165
        %v1183 = vsel %vm1181, %v1171, 2102212464
        %v1184 = vsel %vm1180, %v1168, %v1183
        %v1185 = vsel %vm1179, %v1182, %v1184
        %v1186 = vsel %vm1178, %v1165, %v1168
        %v1187 = vsel %vm1181, %v1174, 920167782
        %v1188 = vsel %vm1180, %v1171, %v1187
        %v1189 = vsel %vm1179, %v1186, %v1188
        %v1190 = vsel %vm1178, %v1168, %v1171
        %v1191 = vsel %vm1181, %v1177, 1326507024
        %v1192 = vsel %vm1180, %v1174, %v1191
        %v1193 = vsel %vm1179, %v1190, %v1192
        %v1194 = vshll.u32 %v1154, 8
        %v1195 = vmul.u32.u64.compose %v1194, %v1193
        %v1196 = vextract.low.u32 %v1195
        %v1197 = vextract.high.u32 %v1195
        %v1198 = vmul.u32.u64.compose %v1194, %v1189
        %v1199 = vextract.low.u32 %v1198
        %v1200 = vextract.high.u32 %v1198
        %v1201 = vmul.u32 %v1194, %v1185
        %v1202 = vadd.s32 %v1197, %v1199
        %vm1203 = vc.u32 %v1197, %v1199
        %v1204 = vadd.s32 %v1200, 1
        %v1205 = vsel %vm1203, %v1204, %v1200
        %v1206 = vadd.s32 %v1201, %v1205
        %v1207 = vadd.s32 %v1206, 536870912
        %v1208 = vshrl.u32 %v1207, 30
        %v1209 = vshll.u32 %v1208, 30
        %v1210 = vsub.s32 %v1206, %v1209
        %vm1211 = vcmp.lt.s32.totalorder %v1210, 0
        %v1212 = vsub.s32 0, %v1210
        %v1213 = vsel %vm1211, %v1212, %v1210
        %v1214 = vclz %v1213
        %v1215 = vsub.s32 %v1214, 2
        %vm1216 = vcmp.gt.s32.totalorder 0, %v1215
        %v1217 = vsel %vm1216, 0, %v1215
        %v1218 = vsub.s32 32, %v1217
        %v1219 = vshll.u32 %v1210, %v1217
        %v1220 = vshrl.u32 %v1202, %v1218
        %v1221 = vor.u32 %v1219, %v1220
        %v1222 = vsub.s32 4294967266, %v1217
        %v1223 = vadd.s32 %v1222, 127
        %v1224 = vshll.u32 %v1223, 23
        %v1225 = vor.u32 4788187, %v1224
        %v1226 = vand.u32 2147483647, %v1225
        %v1228 = vcvt.s32.f32 %v1221
        %v1229 = vmul.f32 %v1228, %v1226
        %v1230 = vxor.u32 %v1229, 2147483648
        %v1231 = vsel %vm1148, %v1230, %v1229
        %v1232 = vsub.s32 4, %v1208
        %v1233 = vsel %vm1148, %v1232, %v1208
        %v1234 = vsel %vm1147, %v520, %v1231
        %v1235 = vsel %vm1147, 0, %v1233
        %v1236 = vcosq.f32.pop %v1234
        %v1237 = vsinq.f32.pop %v1234
        %vm1238 = vweird.f32 %v520
        %v1239 = vadd.s32 %v1235, 3
        %v1240 = vand.u32 %v1239, 3
        %vm1241 = vcmp.lt.s32.totalorder %v1240, 2
        %vm1242 = vcmp.eq.s32.totalorder %v1240, 0
        %v1243 = vxor.u32 %v1237, 2147483648
        %v1244 = vsel %vm1242, %v1236, %v1243
        %vm1245 = vcmp.eq.s32.totalorder %v1240, 2
        %v1246 = vxor.u32 %v1236, 2147483648
        %v1247 = vsel %vm1245, %v1246, %v1237
        %v1248 = vsel %vm1241, %v1244, %v1247
        %v1249 = vsel %vm1238, nan, %v1248
        %v1250 = vand.u32 2147483647, %v521
        %vm1251 = vcmp.le.f32.partialorder %v1250, 0.7853982
        %vm1252 = vcmp.lt.s32.totalorder %v521, 0
        %v1253 = vand.u32 %v521, 2139095040
        %v1254 = vshrl.u32 %v1253, 23
        %v1255 = vsub.s32 %v1254, 127
        %v1256 = vand.u32 2147483647, %v521
        %v1257 = vand.u32 %v1256, 8388607
        %v1258 = vor.u32 %v1257, 8388608
        %v1259 = vsub.s32 0, %v1258
        %v1260 = vadd.s32 %v1255, 1
        %vm1261 = vcmp.gt.s32.totalorder %v1260, 0
        %v1262 = vsel %vm1261, %v1260, 0
        %v1263 = vshrl.u32 %v1262, 5
        %v1264 = vand.u32 %v1262, 31
        %v1265 = vsub.s32 32, %v1264
        %v1266 = vshrl.u32 683565275, %v1265
        %v1267 = vshll.u32 683565275, %v1264
        %v1268 = vshrl.u32 2475754826, %v1265
        %v1269 = vor.u32 %v1267, %v1268
        %v1270 = vshll.u32 2475754826, %v1264
        %v1271 = vshrl.u32 2131351028, %v1265
        %v1272 = vor.u32 %v1270, %v1271
        %v1273 = vshll.u32 2131351028, %v1264
        %v1274 = vshrl.u32 2102212464, %v1265
        %v1275 = vor.u32 %v1273, %v1274
        %v1276 = vshll.u32 2102212464, %v1264
        %v1277 = vshrl.u32 920167782, %v1265
        %v1278 = vor.u32 %v1276, %v1277
        %v1279 = vshll.u32 920167782, %v1264
        %v1280 = vshrl.u32 1326507024, %v1265
        %v1281 = vor.u32 %v1279, %v1280
        %vm1282 = vcmp.lt.s32.totalorder %v1263, 1
        %vm1283 = vcmp.lt.s32.totalorder %v1263, 2
        %vm1284 = vcmp.lt.s32.totalorder %v1263, 3
        %vm1285 = vcmp.lt.s32.totalorder %v1263, 4
        %v1286 = vsel %vm1282, %v1266, %v1269
        %v1287 = vsel %vm1285, %v1275, 2102212464
        %v1288 = vsel %vm1284, %v1272, %v1287
        %v1289 = vsel %vm1283, %v1286, %v1288
        %v1290 = vsel %vm1282, %v1269, %v1272
        %v1291 = vsel %vm1285, %v1278, 920167782
        %v1292 = vsel %vm1284, %v1275, %v1291
        %v1293 = vsel %vm1283, %v1290, %v1292
        %v1294 = vsel %vm1282, %v1272, %v1275
        %v1295 = vsel %vm1285, %v1281, 1326507024
        %v1296 = vsel %vm1284, %v1278, %v1295
        %v1297 = vsel %vm1283, %v1294, %v1296
        %v1298 = vshll.u32 %v1258, 8
        %v1299 = vmul.u32.u64.compose %v1298, %v1297
        %v1300 = vextract.low.u32 %v1299
        %v1301 = vextract.high.u32 %v1299
        %v1302 = vmul.u32.u64.compose %v1298, %v1293
        %v1303 = vextract.low.u32 %v1302
        %v1304 = vextract.high.u32 %v1302
        %v1305 = vmul.u32 %v1298, %v1289
        %v1306 = vadd.s32 %v1301, %v1303
        %vm1307 = vc.u32 %v1301, %v1303
        %v1308 = vadd.s32 %v1304, 1
        %v1309 = vsel %vm1307, %v1308, %v1304
        %v1310 = vadd.s32 %v1305, %v1309
        %v1311 = vadd.s32 %v1310, 536870912
        %v1312 = vshrl.u32 %v1311, 30
        %v1313 = vshll.u32 %v1312, 30
        %v1314 = vsub.s32 %v1310, %v1313
        %vm1315 = vcmp.lt.s32.totalorder %v1314, 0
        %v1316 = vsub.s32 0, %v1314
        %v1317 = vsel %vm1315, %v1316, %v1314
        %v1318 = vclz %v1317
        %v1319 = vsub.s32 %v1318, 2
        %vm1320 = vcmp.gt.s32.totalorder 0, %v1319
        %v1321 = vsel %vm1320, 0, %v1319
        %v1322 = vsub.s32 32, %v1321
        %v1323 = vshll.u32 %v1314, %v1321
        %v1324 = vshrl.u32 %v1306, %v1322
        %v1325 = vor.u32 %v1323, %v1324
        %v1326 = vsub.s32 4294967266, %v1321
        %v1327 = vadd.s32 %v1326, 127
        %v1328 = vshll.u32 %v1327, 23
        %v1329 = vor.u32 4788187, %v1328
        %v1330 = vand.u32 2147483647, %v1329
        %v1332 = vcvt.s32.f32 %v1325
        %v1333 = vmul.f32 %v1332, %v1330
        %v1334 = vxor.u32 %v1333, 2147483648
        %v1335 = vsel %vm1252, %v1334, %v1333
        %v1336 = vsub.s32 4, %v1312
        %v1337 = vsel %vm1252, %v1336, %v1312
        %v1338 = vsel %vm1251, %v521, %v1335
        %v1339 = vsel %vm1251, 0, %v1337
        %v1340 = vcosq.f32.pop %v1338
        %v1341 = vsinq.f32.pop %v1338
        %vm1342 = vweird.f32 %v521
        %v1343 = vadd.s32 %v1339, 3
        %v1344 = vand.u32 %v1343, 3
        %vm1345 = vcmp.lt.s32.totalorder %v1344, 2
        %vm1346 = vcmp.eq.s32.totalorder %v1344, 0
        %v1347 = vxor.u32 %v1341, 2147483648
        %v1348 = vsel %vm1346, %v1340, %v1347
        %vm1349 = vcmp.eq.s32.totalorder %v1344, 2
        %v1350 = vxor.u32 %v1340, 2147483648
        %v1351 = vsel %vm1349, %v1350, %v1341
        %v1352 = vsel %vm1345, %v1348, %v1351
        %v1353 = vsel %vm1342, nan, %v1352
        %v1354 = vld [vmem:[%s3] sm:$0xff]
        %v1355 = vld [vmem:[%s3 + $0x8] sm:$0xff]
        %v1356 = vld [vmem:[%s3 + $0x10] sm:$0xff]
        %v1357 = vld [vmem:[%s3 + $0x18] sm:$0xff]
        %v1358 = vld [vmem:[%s4] sm:$0xff]
        %v1359 = vld [vmem:[%s4 + $0x8] sm:$0xff]
        %v1360 = vld [vmem:[%s4 + $0x10] sm:$0xff]
        %v1361 = vld [vmem:[%s4 + $0x18] sm:$0xff]
        %1363 = vset.pattern.permute.xlu0 0
        %1364 = vperm.xlu0 %1363, %v1358
        %v1365 = vpop.permute.xlu0 %1364
        %1368 = vset.pattern.permute.xlu0 0
        %1369 = vperm.xlu0 %1368, %v1359
        %v1370 = vpop.permute.xlu0 %1369
        %1373 = vset.pattern.permute.xlu0 0
        %1374 = vperm.xlu0 %1373, %v1360
        %v1375 = vpop.permute.xlu0 %1374
        %1378 = vset.pattern.permute.xlu0 0
        %1379 = vperm.xlu0 %1378, %v1361
        %v1380 = vpop.permute.xlu0 %1379
        %vm1382 = vcmask 261120
        %v1384 = vsel %vm1382, %v1354, 0
        %v1387 = vsel %vm1382, %v1355, 0
        %v1390 = vsel %vm1382, %v1356, 0
        %v1393 = vsel %vm1382, %v1357, 0
        %1395 = vmatprep.subr.mxu0 %v729
        %1396 = vmatpush1.msra.mxu0 %v625
        %1397 = vmatprep.subr.mxu0 %v937
        %1398 = vmatpush1.msra.mxu0 %v833
        %1399 = vmatprep.subr.mxu0 %v1145
        %1400 = vmatpush1.msra.mxu0 %v1041
        %1401 = vmatprep.subr.mxu0 %v1353
        %1402 = vmatpush1.msra.mxu0 %v1249
        %1403 = vmatprep.subr.mxu0 0.0
        %1404 = vmatpush1.msra.mxu0 0.0
        %1405 = vmatprep.subr.mxu0 0.0
        %1406 = vmatpush1.msra.mxu0 0.0
        %1407 = vmatprep.subr.mxu0 0.0
        %1408 = vmatpush1.msra.mxu0 0.0
        %1409 = vmatprep.subr.mxu0 0.0
        %1410 = vmatpush1.msra.mxu0 0.0
        %1411 = vmatprep.subr.mxu0 0.0
        %1412 = vmatpush1.msra.mxu0 0.0
        %1413 = vmatprep.subr.mxu0 0.0
        %1414 = vmatpush1.msra.mxu0 0.0
        %1415 = vmatprep.subr.mxu0 0.0
        %1416 = vmatpush1.msra.mxu0 0.0
        %1417 = vmatprep.subr.mxu0 0.0
        %1418 = vmatpush1.msra.mxu0 0.0
        %1419 = vmatprep.subr.mxu0 0.0
        %1420 = vmatpush1.msra.mxu0 0.0
        %1421 = vmatprep.subr.mxu0 0.0
        %1422 = vmatpush1.msra.mxu0 0.0
        %1423 = vmatprep.subr.mxu0 0.0
        %1424 = vmatpush1.msra.mxu0 0.0
        %1425 = vmatprep.subr.mxu0 0.0
        %1426 = vmatpush1.msra.mxu0 0.0
        %1427 = vmatprep.subr.mxu0 0.0
        %1428 = vmatpush1.msra.mxu0 0.0
        %1429 = vmatprep.subr.mxu0 0.0
        %1430 = vmatpush1.msra.mxu0 0.0
        %1431 = vmatprep.subr.mxu0 0.0
        %1432 = vmatpush1.msra.mxu0 0.0
        %1433 = vmatprep.subr.mxu0 0.0
        %1434 = vmatpush1.msra.mxu0 0.0
        %1435 = vmatprep.subr.mxu0 0.0
        %1436 = vmatpush1.msra.mxu0 0.0
        %1437 = vmatprep.subr.mxu0 0.0
        %1438 = vmatpush1.msra.mxu0 0.0
        %1439 = vmatprep.subr.mxu0 0.0
        %1440 = vmatpush1.msra.mxu0 0.0
        %1441 = vmatprep.subr.mxu0 0.0
        %1442 = vmatpush1.msra.mxu0 0.0
        %1443 = vmatprep.subr.mxu0 0.0
        %1444 = vmatpush1.msra.mxu0 0.0
        %1445 = vmatprep.subr.mxu0 0.0
        %1446 = vmatpush1.msra.mxu0 0.0
        %1447 = vmatprep.subr.mxu0 0.0
        %1448 = vmatpush1.msra.mxu0 0.0
        %1449 = vmatprep.subr.mxu0 0.0
        %1450 = vmatpush1.msra.mxu0 0.0
        %1451 = vmatprep.subr.mxu0 0.0
        %1452 = vmatpush1.msra.mxu0 0.0
        %1453 = vmatprep.subr.mxu0 0.0
        %1454 = vmatpush1.msra.mxu0 0.0
        %1455 = vmatprep.subr.mxu0 0.0
        %1456 = vmatpush1.msra.mxu0 0.0
        %1457 = vmatprep.subr.mxu0 0.0
        %1458 = vmatpush1.msra.mxu0 0.0
        %1459 = vmatprep.mubr.f32.mxu0 0.0
        %1460 = vmatmul.mubr.f32.gmra.mrb[0].mxu0 %v1384
        %v1461 = vpop.f32.mrb[0].mxu0
        %v1462 = vadd.f32 %v1365, %v1461
        %v1463 = vpop.f32.mrb[0].mxu0
        %v1464 = vadd.f32 %v1365, %v1463
        %1465 = vmatprep.mubr.f32.mxu0 0.0
        %1466 = vmatmul.mubr.f32.gmra.mrb[0].mxu0 %v1387
        %v1467 = vpop.f32.mrb[0].mxu0
        %v1468 = vadd.f32 %v1370, %v1467
        %v1469 = vpop.f32.mrb[0].mxu0
        %v1470 = vadd.f32 %v1370, %v1469
        %1471 = vmatprep.mubr.f32.mxu0 0.0
        %1472 = vmatmul.mubr.f32.gmra.mrb[0].mxu0 %v1390
        %v1473 = vpop.f32.mrb[0].mxu0
        %v1474 = vadd.f32 %v1375, %v1473
        %v1475 = vpop.f32.mrb[0].mxu0
        %v1476 = vadd.f32 %v1375, %v1475
        %1477 = vmatprep.mubr.f32.mxu0 0.0
        %1478 = vmatmul.mubr.f32.gmra.mrb[0].mxu0 %v1393
        %v1479 = vpop.f32.mrb[0].mxu0
        %v1480 = vadd.f32 %v1380, %v1479
        %v1481 = vpop.f32.mrb[0].mxu0
        %v1482 = vadd.f32 %v1380, %v1481
        %1483 = vdwg.mxu0
        %v1484 = vand.u32 2147483647, %v1462
        %vm1485 = vcmp.le.f32.partialorder %v1484, 0.7853982
        %vm1486 = vcmp.lt.s32.totalorder %v1462, 0
        %v1487 = vand.u32 %v1462, 2139095040
        %v1488 = vshrl.u32 %v1487, 23
        %v1489 = vsub.s32 %v1488, 127
        %v1490 = vand.u32 2147483647, %v1462
        %v1491 = vand.u32 %v1490, 8388607
        %v1492 = vor.u32 %v1491, 8388608
        %v1493 = vsub.s32 0, %v1492
        %v1494 = vadd.s32 %v1489, 1
        %vm1495 = vcmp.gt.s32.totalorder %v1494, 0
        %v1496 = vsel %vm1495, %v1494, 0
        %v1497 = vshrl.u32 %v1496, 5
        %v1498 = vand.u32 %v1496, 31
        %v1499 = vsub.s32 32, %v1498
        %v1500 = vshrl.u32 683565275, %v1499
        %v1501 = vshll.u32 683565275, %v1498
        %v1502 = vshrl.u32 2475754826, %v1499
        %v1503 = vor.u32 %v1501, %v1502
        %v1504 = vshll.u32 2475754826, %v1498
        %v1505 = vshrl.u32 2131351028, %v1499
        %v1506 = vor.u32 %v1504, %v1505
        %v1507 = vshll.u32 2131351028, %v1498
        %v1508 = vshrl.u32 2102212464, %v1499
        %v1509 = vor.u32 %v1507, %v1508
        %v1510 = vshll.u32 2102212464, %v1498
        %v1511 = vshrl.u32 920167782, %v1499
        %v1512 = vor.u32 %v1510, %v1511
        %v1513 = vshll.u32 920167782, %v1498
        %v1514 = vshrl.u32 1326507024, %v1499
        %v1515 = vor.u32 %v1513, %v1514
        %vm1516 = vcmp.lt.s32.totalorder %v1497, 1
        %vm1517 = vcmp.lt.s32.totalorder %v1497, 2
        %vm1518 = vcmp.lt.s32.totalorder %v1497, 3
        %vm1519 = vcmp.lt.s32.totalorder %v1497, 4
        %v1520 = vsel %vm1516, %v1500, %v1503
        %v1521 = vsel %vm1519, %v1509, 2102212464
        %v1522 = vsel %vm1518, %v1506, %v1521
        %v1523 = vsel %vm1517, %v1520, %v1522
        %v1524 = vsel %vm1516, %v1503, %v1506
        %v1525 = vsel %vm1519, %v1512, 920167782
        %v1526 = vsel %vm1518, %v1509, %v1525
        %v1527 = vsel %vm1517, %v1524, %v1526
        %v1528 = vsel %vm1516, %v1506, %v1509
        %v1529 = vsel %vm1519, %v1515, 1326507024
        %v1530 = vsel %vm1518, %v1512, %v1529
        %v1531 = vsel %vm1517, %v1528, %v1530
        %v1532 = vshll.u32 %v1492, 8
        %v1533 = vmul.u32.u64.compose %v1532, %v1531
        %v1534 = vextract.low.u32 %v1533
        %v1535 = vextract.high.u32 %v1533
        %v1536 = vmul.u32.u64.compose %v1532, %v1527
        %v1537 = vextract.low.u32 %v1536
        %v1538 = vextract.high.u32 %v1536
        %v1539 = vmul.u32 %v1532, %v1523
        %v1540 = vadd.s32 %v1535, %v1537
        %vm1541 = vc.u32 %v1535, %v1537
        %v1542 = vadd.s32 %v1538, 1
        %v1543 = vsel %vm1541, %v1542, %v1538
        %v1544 = vadd.s32 %v1539, %v1543
        %v1545 = vadd.s32 %v1544, 536870912
        %v1546 = vshrl.u32 %v1545, 30
        %v1547 = vshll.u32 %v1546, 30
        %v1548 = vsub.s32 %v1544, %v1547
        %vm1549 = vcmp.lt.s32.totalorder %v1548, 0
        %v1550 = vsub.s32 0, %v1548
        %v1551 = vsel %vm1549, %v1550, %v1548
        %v1552 = vclz %v1551
        %v1553 = vsub.s32 %v1552, 2
        %vm1554 = vcmp.gt.s32.totalorder 0, %v1553
        %v1555 = vsel %vm1554, 0, %v1553
        %v1556 = vsub.s32 32, %v1555
        %v1557 = vshll.u32 %v1548, %v1555
        %v1558 = vshrl.u32 %v1540, %v1556
        %v1559 = vor.u32 %v1557, %v1558
        %v1560 = vsub.s32 4294967266, %v1555
        %v1561 = vadd.s32 %v1560, 127
        %v1562 = vshll.u32 %v1561, 23
        %v1563 = vor.u32 4788187, %v1562
        %v1564 = vand.u32 2147483647, %v1563
        %v1566 = vcvt.s32.f32 %v1559
        %v1567 = vmul.f32 %v1566, %v1564
        %v1568 = vxor.u32 %v1567, 2147483648
        %v1569 = vsel %vm1486, %v1568, %v1567
        %v1570 = vsub.s32 4, %v1546
        %v1571 = vsel %vm1486, %v1570, %v1546
        %v1572 = vsel %vm1485, %v1462, %v1569
        %v1573 = vsel %vm1485, 0, %v1571
        %v1574 = vcosq.f32.pop %v1572
        %v1575 = vsinq.f32.pop %v1572
        %vm1576 = vweird.f32 %v1462
        %v1577 = vadd.s32 %v1573, 3
        %v1578 = vand.u32 %v1577, 3
        %vm1579 = vcmp.lt.s32.totalorder %v1578, 2
        %vm1580 = vcmp.eq.s32.totalorder %v1578, 0
        %v1581 = vxor.u32 %v1575, 2147483648
        %v1582 = vsel %vm1580, %v1574, %v1581
        %vm1583 = vcmp.eq.s32.totalorder %v1578, 2
        %v1584 = vxor.u32 %v1574, 2147483648
        %v1585 = vsel %vm1583, %v1584, %v1575
        %v1586 = vsel %vm1579, %v1582, %v1585
        %v1587 = vsel %vm1576, nan, %v1586
        %v1588 = vand.u32 2147483647, %v1464
        %vm1589 = vcmp.le.f32.partialorder %v1588, 0.7853982
        %vm1590 = vcmp.lt.s32.totalorder %v1464, 0
        %v1591 = vand.u32 %v1464, 2139095040
        %v1592 = vshrl.u32 %v1591, 23
        %v1593 = vsub.s32 %v1592, 127
        %v1594 = vand.u32 2147483647, %v1464
        %v1595 = vand.u32 %v1594, 8388607
        %v1596 = vor.u32 %v1595, 8388608
        %v1597 = vsub.s32 0, %v1596
        %v1598 = vadd.s32 %v1593, 1
        %vm1599 = vcmp.gt.s32.totalorder %v1598, 0
        %v1600 = vsel %vm1599, %v1598, 0
        %v1601 = vshrl.u32 %v1600, 5
        %v1602 = vand.u32 %v1600, 31
        %v1603 = vsub.s32 32, %v1602
        %v1604 = vshrl.u32 683565275, %v1603
        %v1605 = vshll.u32 683565275, %v1602
        %v1606 = vshrl.u32 2475754826, %v1603
        %v1607 = vor.u32 %v1605, %v1606
        %v1608 = vshll.u32 2475754826, %v1602
        %v1609 = vshrl.u32 2131351028, %v1603
        %v1610 = vor.u32 %v1608, %v1609
        %v1611 = vshll.u32 2131351028, %v1602
        %v1612 = vshrl.u32 2102212464, %v1603
        %v1613 = vor.u32 %v1611, %v1612
        %v1614 = vshll.u32 2102212464, %v1602
        %v1615 = vshrl.u32 920167782, %v1603
        %v1616 = vor.u32 %v1614, %v1615
        %v1617 = vshll.u32 920167782, %v1602
        %v1618 = vshrl.u32 1326507024, %v1603
        %v1619 = vor.u32 %v1617, %v1618
        %vm1620 = vcmp.lt.s32.totalorder %v1601, 1
        %vm1621 = vcmp.lt.s32.totalorder %v1601, 2
        %vm1622 = vcmp.lt.s32.totalorder %v1601, 3
        %vm1623 = vcmp.lt.s32.totalorder %v1601, 4
        %v1624 = vsel %vm1620, %v1604, %v1607
        %v1625 = vsel %vm1623, %v1613, 2102212464
        %v1626 = vsel %vm1622, %v1610, %v1625
        %v1627 = vsel %vm1621, %v1624, %v1626
        %v1628 = vsel %vm1620, %v1607, %v1610
        %v1629 = vsel %vm1623, %v1616, 920167782
        %v1630 = vsel %vm1622, %v1613, %v1629
        %v1631 = vsel %vm1621, %v1628, %v1630
        %v1632 = vsel %vm1620, %v1610, %v1613
        %v1633 = vsel %vm1623, %v1619, 1326507024
        %v1634 = vsel %vm1622, %v1616, %v1633
        %v1635 = vsel %vm1621, %v1632, %v1634
        %v1636 = vshll.u32 %v1596, 8
        %v1637 = vmul.u32.u64.compose %v1636, %v1635
        %v1638 = vextract.low.u32 %v1637
        %v1639 = vextract.high.u32 %v1637
        %v1640 = vmul.u32.u64.compose %v1636, %v1631
        %v1641 = vextract.low.u32 %v1640
        %v1642 = vextract.high.u32 %v1640
        %v1643 = vmul.u32 %v1636, %v1627
        %v1644 = vadd.s32 %v1639, %v1641
        %vm1645 = vc.u32 %v1639, %v1641
        %v1646 = vadd.s32 %v1642, 1
        %v1647 = vsel %vm1645, %v1646, %v1642
        %v1648 = vadd.s32 %v1643, %v1647
        %v1649 = vadd.s32 %v1648, 536870912
        %v1650 = vshrl.u32 %v1649, 30
        %v1651 = vshll.u32 %v1650, 30
        %v1652 = vsub.s32 %v1648, %v1651
        %vm1653 = vcmp.lt.s32.totalorder %v1652, 0
        %v1654 = vsub.s32 0, %v1652
        %v1655 = vsel %vm1653, %v1654, %v1652
        %v1656 = vclz %v1655
        %v1657 = vsub.s32 %v1656, 2
        %vm1658 = vcmp.gt.s32.totalorder 0, %v1657
        %v1659 = vsel %vm1658, 0, %v1657
        %v1660 = vsub.s32 32, %v1659
        %v1661 = vshll.u32 %v1652, %v1659
        %v1662 = vshrl.u32 %v1644, %v1660
        %v1663 = vor.u32 %v1661, %v1662
        %v1664 = vsub.s32 4294967266, %v1659
        %v1665 = vadd.s32 %v1664, 127
        %v1666 = vshll.u32 %v1665, 23
        %v1667 = vor.u32 4788187, %v1666
        %v1668 = vand.u32 2147483647, %v1667
        %v1670 = vcvt.s32.f32 %v1663
        %v1671 = vmul.f32 %v1670, %v1668
        %v1672 = vxor.u32 %v1671, 2147483648
        %v1673 = vsel %vm1590, %v1672, %v1671
        %v1674 = vsub.s32 4, %v1650
        %v1675 = vsel %vm1590, %v1674, %v1650
        %v1676 = vsel %vm1589, %v1464, %v1673
        %v1677 = vsel %vm1589, 0, %v1675
        %v1678 = vcosq.f32.pop %v1676
        %v1679 = vsinq.f32.pop %v1676
        %vm1680 = vweird.f32 %v1464
        %v1681 = vadd.s32 %v1677, 3
        %v1682 = vand.u32 %v1681, 3
        %vm1683 = vcmp.lt.s32.totalorder %v1682, 2
        %vm1684 = vcmp.eq.s32.totalorder %v1682, 0
        %v1685 = vxor.u32 %v1679, 2147483648
        %v1686 = vsel %vm1684, %v1678, %v1685
        %vm1687 = vcmp.eq.s32.totalorder %v1682, 2
        %v1688 = vxor.u32 %v1678, 2147483648
        %v1689 = vsel %vm1687, %v1688, %v1679
        %v1690 = vsel %vm1683, %v1686, %v1689
        %v1691 = vsel %vm1680, nan, %v1690
        %v1692 = vand.u32 2147483647, %v1468
        %vm1693 = vcmp.le.f32.partialorder %v1692, 0.7853982
        %vm1694 = vcmp.lt.s32.totalorder %v1468, 0
        %v1695 = vand.u32 %v1468, 2139095040
        %v1696 = vshrl.u32 %v1695, 23
        %v1697 = vsub.s32 %v1696, 127
        %v1698 = vand.u32 2147483647, %v1468
        %v1699 = vand.u32 %v1698, 8388607
        %v1700 = vor.u32 %v1699, 8388608
        %v1701 = vsub.s32 0, %v1700
        %v1702 = vadd.s32 %v1697, 1
        %vm1703 = vcmp.gt.s32.totalorder %v1702, 0
        %v1704 = vsel %vm1703, %v1702, 0
        %v1705 = vshrl.u32 %v1704, 5
        %v1706 = vand.u32 %v1704, 31
        %v1707 = vsub.s32 32, %v1706
        %v1708 = vshrl.u32 683565275, %v1707
        %v1709 = vshll.u32 683565275, %v1706
        %v1710 = vshrl.u32 2475754826, %v1707
        %v1711 = vor.u32 %v1709, %v1710
        %v1712 = vshll.u32 2475754826, %v1706
        %v1713 = vshrl.u32 2131351028, %v1707
        %v1714 = vor.u32 %v1712, %v1713
        %v1715 = vshll.u32 2131351028, %v1706
        %v1716 = vshrl.u32 2102212464, %v1707
        %v1717 = vor.u32 %v1715, %v1716
        %v1718 = vshll.u32 2102212464, %v1706
        %v1719 = vshrl.u32 920167782, %v1707
        %v1720 = vor.u32 %v1718, %v1719
        %v1721 = vshll.u32 920167782, %v1706
        %v1722 = vshrl.u32 1326507024, %v1707
        %v1723 = vor.u32 %v1721, %v1722
        %vm1724 = vcmp.lt.s32.totalorder %v1705, 1
        %vm1725 = vcmp.lt.s32.totalorder %v1705, 2
        %vm1726 = vcmp.lt.s32.totalorder %v1705, 3
        %vm1727 = vcmp.lt.s32.totalorder %v1705, 4
        %v1728 = vsel %vm1724, %v1708, %v1711
        %v1729 = vsel %vm1727, %v1717, 2102212464
        %v1730 = vsel %vm1726, %v1714, %v1729
        %v1731 = vsel %vm1725, %v1728, %v1730
        %v1732 = vsel %vm1724, %v1711, %v1714
        %v1733 = vsel %vm1727, %v1720, 920167782
        %v1734 = vsel %vm1726, %v1717, %v1733
        %v1735 = vsel %vm1725, %v1732, %v1734
        %v1736 = vsel %vm1724, %v1714, %v1717
        %v1737 = vsel %vm1727, %v1723, 1326507024
        %v1738 = vsel %vm1726, %v1720, %v1737
        %v1739 = vsel %vm1725, %v1736, %v1738
        %v1740 = vshll.u32 %v1700, 8
        %v1741 = vmul.u32.u64.compose %v1740, %v1739
        %v1742 = vextract.low.u32 %v1741
        %v1743 = vextract.high.u32 %v1741
        %v1744 = vmul.u32.u64.compose %v1740, %v1735
        %v1745 = vextract.low.u32 %v1744
        %v1746 = vextract.high.u32 %v1744
        %v1747 = vmul.u32 %v1740, %v1731
        %v1748 = vadd.s32 %v1743, %v1745
        %vm1749 = vc.u32 %v1743, %v1745
        %v1750 = vadd.s32 %v1746, 1
        %v1751 = vsel %vm1749, %v1750, %v1746
        %v1752 = vadd.s32 %v1747, %v1751
        %v1753 = vadd.s32 %v1752, 536870912
        %v1754 = vshrl.u32 %v1753, 30
        %v1755 = vshll.u32 %v1754, 30
        %v1756 = vsub.s32 %v1752, %v1755
        %vm1757 = vcmp.lt.s32.totalorder %v1756, 0
        %v1758 = vsub.s32 0, %v1756
        %v1759 = vsel %vm1757, %v1758, %v1756
        %v1760 = vclz %v1759
        %v1761 = vsub.s32 %v1760, 2
        %vm1762 = vcmp.gt.s32.totalorder 0, %v1761
        %v1763 = vsel %vm1762, 0, %v1761
        %v1764 = vsub.s32 32, %v1763
        %v1765 = vshll.u32 %v1756, %v1763
        %v1766 = vshrl.u32 %v1748, %v1764
        %v1767 = vor.u32 %v1765, %v1766
        %v1768 = vsub.s32 4294967266, %v1763
        %v1769 = vadd.s32 %v1768, 127
        %v1770 = vshll.u32 %v1769, 23
        %v1771 = vor.u32 4788187, %v1770
        %v1772 = vand.u32 2147483647, %v1771
        %v1774 = vcvt.s32.f32 %v1767
        %v1775 = vmul.f32 %v1774, %v1772
        %v1776 = vxor.u32 %v1775, 2147483648
        %v1777 = vsel %vm1694, %v1776, %v1775
        %v1778 = vsub.s32 4, %v1754
        %v1779 = vsel %vm1694, %v1778, %v1754
        %v1780 = vsel %vm1693, %v1468, %v1777
        %v1781 = vsel %vm1693, 0, %v1779
        %v1782 = vcosq.f32.pop %v1780
        %v1783 = vsinq.f32.pop %v1780
        %vm1784 = vweird.f32 %v1468
        %v1785 = vadd.s32 %v1781, 3
        %v1786 = vand.u32 %v1785, 3
        %vm1787 = vcmp.lt.s32.totalorder %v1786, 2
        %vm1788 = vcmp.eq.s32.totalorder %v1786, 0
        %v1789 = vxor.u32 %v1783, 2147483648
        %v1790 = vsel %vm1788, %v1782, %v1789
        %vm1791 = vcmp.eq.s32.totalorder %v1786, 2
        %v1792 = vxor.u32 %v1782, 2147483648
        %v1793 = vsel %vm1791, %v1792, %v1783
        %v1794 = vsel %vm1787, %v1790, %v1793
        %v1795 = vsel %vm1784, nan, %v1794
        %v1796 = vand.u32 2147483647, %v1470
        %vm1797 = vcmp.le.f32.partialorder %v1796, 0.7853982
        %vm1798 = vcmp.lt.s32.totalorder %v1470, 0
        %v1799 = vand.u32 %v1470, 2139095040
        %v1800 = vshrl.u32 %v1799, 23
        %v1801 = vsub.s32 %v1800, 127
        %v1802 = vand.u32 2147483647, %v1470
        %v1803 = vand.u32 %v1802, 8388607
        %v1804 = vor.u32 %v1803, 8388608
        %v1805 = vsub.s32 0, %v1804
        %v1806 = vadd.s32 %v1801, 1
        %vm1807 = vcmp.gt.s32.totalorder %v1806, 0
        %v1808 = vsel %vm1807, %v1806, 0
        %v1809 = vshrl.u32 %v1808, 5
        %v1810 = vand.u32 %v1808, 31
        %v1811 = vsub.s32 32, %v1810
        %v1812 = vshrl.u32 683565275, %v1811
        %v1813 = vshll.u32 683565275, %v1810
        %v1814 = vshrl.u32 2475754826, %v1811
        %v1815 = vor.u32 %v1813, %v1814
        %v1816 = vshll.u32 2475754826, %v1810
        %v1817 = vshrl.u32 2131351028, %v1811
        %v1818 = vor.u32 %v1816, %v1817
        %v1819 = vshll.u32 2131351028, %v1810
        %v1820 = vshrl.u32 2102212464, %v1811
        %v1821 = vor.u32 %v1819, %v1820
        %v1822 = vshll.u32 2102212464, %v1810
        %v1823 = vshrl.u32 920167782, %v1811
        %v1824 = vor.u32 %v1822, %v1823
        %v1825 = vshll.u32 920167782, %v1810
        %v1826 = vshrl.u32 1326507024, %v1811
        %v1827 = vor.u32 %v1825, %v1826
        %vm1828 = vcmp.lt.s32.totalorder %v1809, 1
        %vm1829 = vcmp.lt.s32.totalorder %v1809, 2
        %vm1830 = vcmp.lt.s32.totalorder %v1809, 3
        %vm1831 = vcmp.lt.s32.totalorder %v1809, 4
        %v1832 = vsel %vm1828, %v1812, %v1815
        %v1833 = vsel %vm1831, %v1821, 2102212464
        %v1834 = vsel %vm1830, %v1818, %v1833
        %v1835 = vsel %vm1829, %v1832, %v1834
        %v1836 = vsel %vm1828, %v1815, %v1818
        %v1837 = vsel %vm1831, %v1824, 920167782
        %v1838 = vsel %vm1830, %v1821, %v1837
        %v1839 = vsel %vm1829, %v1836, %v1838
        %v1840 = vsel %vm1828, %v1818, %v1821
        %v1841 = vsel %vm1831, %v1827, 1326507024
        %v1842 = vsel %vm1830, %v1824, %v1841
        %v1843 = vsel %vm1829, %v1840, %v1842
        %v1844 = vshll.u32 %v1804, 8
        %v1845 = vmul.u32.u64.compose %v1844, %v1843
        %v1846 = vextract.low.u32 %v1845
        %v1847 = vextract.high.u32 %v1845
        %v1848 = vmul.u32.u64.compose %v1844, %v1839
        %v1849 = vextract.low.u32 %v1848
        %v1850 = vextract.high.u32 %v1848
        %v1851 = vmul.u32 %v1844, %v1835
        %v1852 = vadd.s32 %v1847, %v1849
        %vm1853 = vc.u32 %v1847, %v1849
        %v1854 = vadd.s32 %v1850, 1
        %v1855 = vsel %vm1853, %v1854, %v1850
        %v1856 = vadd.s32 %v1851, %v1855
        %v1857 = vadd.s32 %v1856, 536870912
        %v1858 = vshrl.u32 %v1857, 30
        %v1859 = vshll.u32 %v1858, 30
        %v1860 = vsub.s32 %v1856, %v1859
        %vm1861 = vcmp.lt.s32.totalorder %v1860, 0
        %v1862 = vsub.s32 0, %v1860
        %v1863 = vsel %vm1861, %v1862, %v1860
        %v1864 = vclz %v1863
        %v1865 = vsub.s32 %v1864, 2
        %vm1866 = vcmp.gt.s32.totalorder 0, %v1865
        %v1867 = vsel %vm1866, 0, %v1865
        %v1868 = vsub.s32 32, %v1867
        %v1869 = vshll.u32 %v1860, %v1867
        %v1870 = vshrl.u32 %v1852, %v1868
        %v1871 = vor.u32 %v1869, %v1870
        %v1872 = vsub.s32 4294967266, %v1867
        %v1873 = vadd.s32 %v1872, 127
        %v1874 = vshll.u32 %v1873, 23
        %v1875 = vor.u32 4788187, %v1874
        %v1876 = vand.u32 2147483647, %v1875
        %v1878 = vcvt.s32.f32 %v1871
        %v1879 = vmul.f32 %v1878, %v1876
        %v1880 = vxor.u32 %v1879, 2147483648
        %v1881 = vsel %vm1798, %v1880, %v1879
        %v1882 = vsub.s32 4, %v1858
        %v1883 = vsel %vm1798, %v1882, %v1858
        %v1884 = vsel %vm1797, %v1470, %v1881
        %v1885 = vsel %vm1797, 0, %v1883
        %v1886 = vcosq.f32.pop %v1884
        %v1887 = vsinq.f32.pop %v1884
        %vm1888 = vweird.f32 %v1470
        %v1889 = vadd.s32 %v1885, 3
        %v1890 = vand.u32 %v1889, 3
        %vm1891 = vcmp.lt.s32.totalorder %v1890, 2
        %vm1892 = vcmp.eq.s32.totalorder %v1890, 0
        %v1893 = vxor.u32 %v1887, 2147483648
        %v1894 = vsel %vm1892, %v1886, %v1893
        %vm1895 = vcmp.eq.s32.totalorder %v1890, 2
        %v1896 = vxor.u32 %v1886, 2147483648
        %v1897 = vsel %vm1895, %v1896, %v1887
        %v1898 = vsel %vm1891, %v1894, %v1897
        %v1899 = vsel %vm1888, nan, %v1898
        %v1900 = vand.u32 2147483647, %v1474
        %vm1901 = vcmp.le.f32.partialorder %v1900, 0.7853982
        %vm1902 = vcmp.lt.s32.totalorder %v1474, 0
        %v1903 = vand.u32 %v1474, 2139095040
        %v1904 = vshrl.u32 %v1903, 23
        %v1905 = vsub.s32 %v1904, 127
        %v1906 = vand.u32 2147483647, %v1474
        %v1907 = vand.u32 %v1906, 8388607
        %v1908 = vor.u32 %v1907, 8388608
        %v1909 = vsub.s32 0, %v1908
        %v1910 = vadd.s32 %v1905, 1
        %vm1911 = vcmp.gt.s32.totalorder %v1910, 0
        %v1912 = vsel %vm1911, %v1910, 0
        %v1913 = vshrl.u32 %v1912, 5
        %v1914 = vand.u32 %v1912, 31
        %v1915 = vsub.s32 32, %v1914
        %v1916 = vshrl.u32 683565275, %v1915
        %v1917 = vshll.u32 683565275, %v1914
        %v1918 = vshrl.u32 2475754826, %v1915
        %v1919 = vor.u32 %v1917, %v1918
        %v1920 = vshll.u32 2475754826, %v1914
        %v1921 = vshrl.u32 2131351028, %v1915
        %v1922 = vor.u32 %v1920, %v1921
        %v1923 = vshll.u32 2131351028, %v1914
        %v1924 = vshrl.u32 2102212464, %v1915
        %v1925 = vor.u32 %v1923, %v1924
        %v1926 = vshll.u32 2102212464, %v1914
        %v1927 = vshrl.u32 920167782, %v1915
        %v1928 = vor.u32 %v1926, %v1927
        %v1929 = vshll.u32 920167782, %v1914
        %v1930 = vshrl.u32 1326507024, %v1915
        %v1931 = vor.u32 %v1929, %v1930
        %vm1932 = vcmp.lt.s32.totalorder %v1913, 1
        %vm1933 = vcmp.lt.s32.totalorder %v1913, 2
        %vm1934 = vcmp.lt.s32.totalorder %v1913, 3
        %vm1935 = vcmp.lt.s32.totalorder %v1913, 4
        %v1936 = vsel %vm1932, %v1916, %v1919
        %v1937 = vsel %vm1935, %v1925, 2102212464
        %v1938 = vsel %vm1934, %v1922, %v1937
        %v1939 = vsel %vm1933, %v1936, %v1938
        %v1940 = vsel %vm1932, %v1919, %v1922
        %v1941 = vsel %vm1935, %v1928, 920167782
        %v1942 = vsel %vm1934, %v1925, %v1941
        %v1943 = vsel %vm1933, %v1940, %v1942
        %v1944 = vsel %vm1932, %v1922, %v1925
        %v1945 = vsel %vm1935, %v1931, 1326507024
        %v1946 = vsel %vm1934, %v1928, %v1945
        %v1947 = vsel %vm1933, %v1944, %v1946
        %v1948 = vshll.u32 %v1908, 8
        %v1949 = vmul.u32.u64.compose %v1948, %v1947
        %v1950 = vextract.low.u32 %v1949
        %v1951 = vextract.high.u32 %v1949
        %v1952 = vmul.u32.u64.compose %v1948, %v1943
        %v1953 = vextract.low.u32 %v1952
        %v1954 = vextract.high.u32 %v1952
        %v1955 = vmul.u32 %v1948, %v1939
        %v1956 = vadd.s32 %v1951, %v1953
        %vm1957 = vc.u32 %v1951, %v1953
        %v1958 = vadd.s32 %v1954, 1
        %v1959 = vsel %vm1957, %v1958, %v1954
        %v1960 = vadd.s32 %v1955, %v1959
        %v1961 = vadd.s32 %v1960, 536870912
        %v1962 = vshrl.u32 %v1961, 30
        %v1963 = vshll.u32 %v1962, 30
        %v1964 = vsub.s32 %v1960, %v1963
        %vm1965 = vcmp.lt.s32.totalorder %v1964, 0
        %v1966 = vsub.s32 0, %v1964
        %v1967 = vsel %vm1965, %v1966, %v1964
        %v1968 = vclz %v1967
        %v1969 = vsub.s32 %v1968, 2
        %vm1970 = vcmp.gt.s32.totalorder 0, %v1969
        %v1971 = vsel %vm1970, 0, %v1969
        %v1972 = vsub.s32 32, %v1971
        %v1973 = vshll.u32 %v1964, %v1971
        %v1974 = vshrl.u32 %v1956, %v1972
        %v1975 = vor.u32 %v1973, %v1974
        %v1976 = vsub.s32 4294967266, %v1971
        %v1977 = vadd.s32 %v1976, 127
        %v1978 = vshll.u32 %v1977, 23
        %v1979 = vor.u32 4788187, %v1978
        %v1980 = vand.u32 2147483647, %v1979
        %v1982 = vcvt.s32.f32 %v1975
        %v1983 = vmul.f32 %v1982, %v1980
        %v1984 = vxor.u32 %v1983, 2147483648
        %v1985 = vsel %vm1902, %v1984, %v1983
        %v1986 = vsub.s32 4, %v1962
        %v1987 = vsel %vm1902, %v1986, %v1962
        %v1988 = vsel %vm1901, %v1474, %v1985
        %v1989 = vsel %vm1901, 0, %v1987
        %v1990 = vcosq.f32.pop %v1988
        %v1991 = vsinq.f32.pop %v1988
        %vm1992 = vweird.f32 %v1474
        %v1993 = vadd.s32 %v1989, 3
        %v1994 = vand.u32 %v1993, 3
        %vm1995 = vcmp.lt.s32.totalorder %v1994, 2
        %vm1996 = vcmp.eq.s32.totalorder %v1994, 0
        %v1997 = vxor.u32 %v1991, 2147483648
        %v1998 = vsel %vm1996, %v1990, %v1997
        %vm1999 = vcmp.eq.s32.totalorder %v1994, 2
        %v2000 = vxor.u32 %v1990, 2147483648
        %v2001 = vsel %vm1999, %v2000, %v1991
        %v2002 = vsel %vm1995, %v1998, %v2001
        %v2003 = vsel %vm1992, nan, %v2002
        %v2004 = vand.u32 2147483647, %v1476
        %vm2005 = vcmp.le.f32.partialorder %v2004, 0.7853982
        %vm2006 = vcmp.lt.s32.totalorder %v1476, 0
        %v2007 = vand.u32 %v1476, 2139095040
        %v2008 = vshrl.u32 %v2007, 23
        %v2009 = vsub.s32 %v2008, 127
        %v2010 = vand.u32 2147483647, %v1476
        %v2011 = vand.u32 %v2010, 8388607
        %v2012 = vor.u32 %v2011, 8388608
        %v2013 = vsub.s32 0, %v2012
        %v2014 = vadd.s32 %v2009, 1
        %vm2015 = vcmp.gt.s32.totalorder %v2014, 0
        %v2016 = vsel %vm2015, %v2014, 0
        %v2017 = vshrl.u32 %v2016, 5
        %v2018 = vand.u32 %v2016, 31
        %v2019 = vsub.s32 32, %v2018
        %v2020 = vshrl.u32 683565275, %v2019
        %v2021 = vshll.u32 683565275, %v2018
        %v2022 = vshrl.u32 2475754826, %v2019
        %v2023 = vor.u32 %v2021, %v2022
        %v2024 = vshll.u32 2475754826, %v2018
        %v2025 = vshrl.u32 2131351028, %v2019
        %v2026 = vor.u32 %v2024, %v2025
        %v2027 = vshll.u32 2131351028, %v2018
        %v2028 = vshrl.u32 2102212464, %v2019
        %v2029 = vor.u32 %v2027, %v2028
        %v2030 = vshll.u32 2102212464, %v2018
        %v2031 = vshrl.u32 920167782, %v2019
        %v2032 = vor.u32 %v2030, %v2031
        %v2033 = vshll.u32 920167782, %v2018
        %v2034 = vshrl.u32 1326507024, %v2019
        %v2035 = vor.u32 %v2033, %v2034
        %vm2036 = vcmp.lt.s32.totalorder %v2017, 1
        %vm2037 = vcmp.lt.s32.totalorder %v2017, 2
        %vm2038 = vcmp.lt.s32.totalorder %v2017, 3
        %vm2039 = vcmp.lt.s32.totalorder %v2017, 4
        %v2040 = vsel %vm2036, %v2020, %v2023
        %v2041 = vsel %vm2039, %v2029, 2102212464
        %v2042 = vsel %vm2038, %v2026, %v2041
        %v2043 = vsel %vm2037, %v2040, %v2042
        %v2044 = vsel %vm2036, %v2023, %v2026
        %v2045 = vsel %vm2039, %v2032, 920167782
        %v2046 = vsel %vm2038, %v2029, %v2045
        %v2047 = vsel %vm2037, %v2044, %v2046
        %v2048 = vsel %vm2036, %v2026, %v2029
        %v2049 = vsel %vm2039, %v2035, 1326507024
        %v2050 = vsel %vm2038, %v2032, %v2049
        %v2051 = vsel %vm2037, %v2048, %v2050
        %v2052 = vshll.u32 %v2012, 8
        %v2053 = vmul.u32.u64.compose %v2052, %v2051
        %v2054 = vextract.low.u32 %v2053
        %v2055 = vextract.high.u32 %v2053
        %v2056 = vmul.u32.u64.compose %v2052, %v2047
        %v2057 = vextract.low.u32 %v2056
        %v2058 = vextract.high.u32 %v2056
        %v2059 = vmul.u32 %v2052, %v2043
        %v2060 = vadd.s32 %v2055, %v2057
        %vm2061 = vc.u32 %v2055, %v2057
        %v2062 = vadd.s32 %v2058, 1
        %v2063 = vsel %vm2061, %v2062, %v2058
        %v2064 = vadd.s32 %v2059, %v2063
        %v2065 = vadd.s32 %v2064, 536870912
        %v2066 = vshrl.u32 %v2065, 30
        %v2067 = vshll.u32 %v2066, 30
        %v2068 = vsub.s32 %v2064, %v2067
        %vm2069 = vcmp.lt.s32.totalorder %v2068, 0
        %v2070 = vsub.s32 0, %v2068
        %v2071 = vsel %vm2069, %v2070, %v2068
        %v2072 = vclz %v2071
        %v2073 = vsub.s32 %v2072, 2
        %vm2074 = vcmp.gt.s32.totalorder 0, %v2073
        %v2075 = vsel %vm2074, 0, %v2073
        %v2076 = vsub.s32 32, %v2075
        %v2077 = vshll.u32 %v2068, %v2075
        %v2078 = vshrl.u32 %v2060, %v2076
        %v2079 = vor.u32 %v2077, %v2078
        %v2080 = vsub.s32 4294967266, %v2075
        %v2081 = vadd.s32 %v2080, 127
        %v2082 = vshll.u32 %v2081, 23
        %v2083 = vor.u32 4788187, %v2082
        %v2084 = vand.u32 2147483647, %v2083
        %v2086 = vcvt.s32.f32 %v2079
        %v2087 = vmul.f32 %v2086, %v2084
        %v2088 = vxor.u32 %v2087, 2147483648
        %v2089 = vsel %vm2006, %v2088, %v2087
        %v2090 = vsub.s32 4, %v2066
        %v2091 = vsel %vm2006, %v2090, %v2066
        %v2092 = vsel %vm2005, %v1476, %v2089
        %v2093 = vsel %vm2005, 0, %v2091
        %v2094 = vcosq.f32.pop %v2092
        %v2095 = vsinq.f32.pop %v2092
        %vm2096 = vweird.f32 %v1476
        %v2097 = vadd.s32 %v2093, 3
        %v2098 = vand.u32 %v2097, 3
        %vm2099 = vcmp.lt.s32.totalorder %v2098, 2
        %vm2100 = vcmp.eq.s32.totalorder %v2098, 0
        %v2101 = vxor.u32 %v2095, 2147483648
        %v2102 = vsel %vm2100, %v2094, %v2101
        %vm2103 = vcmp.eq.s32.totalorder %v2098, 2
        %v2104 = vxor.u32 %v2094, 2147483648
        %v2105 = vsel %vm2103, %v2104, %v2095
        %v2106 = vsel %vm2099, %v2102, %v2105
        %v2107 = vsel %vm2096, nan, %v2106
        %v2108 = vand.u32 2147483647, %v1480
        %vm2109 = vcmp.le.f32.partialorder %v2108, 0.7853982
        %vm2110 = vcmp.lt.s32.totalorder %v1480, 0
        %v2111 = vand.u32 %v1480, 2139095040
        %v2112 = vshrl.u32 %v2111, 23
        %v2113 = vsub.s32 %v2112, 127
        %v2114 = vand.u32 2147483647, %v1480
        %v2115 = vand.u32 %v2114, 8388607
        %v2116 = vor.u32 %v2115, 8388608
        %v2117 = vsub.s32 0, %v2116
        %v2118 = vadd.s32 %v2113, 1
        %vm2119 = vcmp.gt.s32.totalorder %v2118, 0
        %v2120 = vsel %vm2119, %v2118, 0
        %v2121 = vshrl.u32 %v2120, 5
        %v2122 = vand.u32 %v2120, 31
        %v2123 = vsub.s32 32, %v2122
        %v2124 = vshrl.u32 683565275, %v2123
        %v2125 = vshll.u32 683565275, %v2122
        %v2126 = vshrl.u32 2475754826, %v2123
        %v2127 = vor.u32 %v2125, %v2126
        %v2128 = vshll.u32 2475754826, %v2122
        %v2129 = vshrl.u32 2131351028, %v2123
        %v2130 = vor.u32 %v2128, %v2129
        %v2131 = vshll.u32 2131351028, %v2122
        %v2132 = vshrl.u32 2102212464, %v2123
        %v2133 = vor.u32 %v2131, %v2132
        %v2134 = vshll.u32 2102212464, %v2122
        %v2135 = vshrl.u32 920167782, %v2123
        %v2136 = vor.u32 %v2134, %v2135
        %v2137 = vshll.u32 920167782, %v2122
        %v2138 = vshrl.u32 1326507024, %v2123
        %v2139 = vor.u32 %v2137, %v2138
        %vm2140 = vcmp.lt.s32.totalorder %v2121, 1
        %vm2141 = vcmp.lt.s32.totalorder %v2121, 2
        %vm2142 = vcmp.lt.s32.totalorder %v2121, 3
        %vm2143 = vcmp.lt.s32.totalorder %v2121, 4
        %v2144 = vsel %vm2140, %v2124, %v2127
        %v2145 = vsel %vm2143, %v2133, 2102212464
        %v2146 = vsel %vm2142, %v2130, %v2145
        %v2147 = vsel %vm2141, %v2144, %v2146
        %v2148 = vsel %vm2140, %v2127, %v2130
        %v2149 = vsel %vm2143, %v2136, 920167782
        %v2150 = vsel %vm2142, %v2133, %v2149
        %v2151 = vsel %vm2141, %v2148, %v2150
        %v2152 = vsel %vm2140, %v2130, %v2133
        %v2153 = vsel %vm2143, %v2139, 1326507024
        %v2154 = vsel %vm2142, %v2136, %v2153
        %v2155 = vsel %vm2141, %v2152, %v2154
        %v2156 = vshll.u32 %v2116, 8
        %v2157 = vmul.u32.u64.compose %v2156, %v2155
        %v2158 = vextract.low.u32 %v2157
        %v2159 = vextract.high.u32 %v2157
        %v2160 = vmul.u32.u64.compose %v2156, %v2151
        %v2161 = vextract.low.u32 %v2160
        %v2162 = vextract.high.u32 %v2160
        %v2163 = vmul.u32 %v2156, %v2147
        %v2164 = vadd.s32 %v2159, %v2161
        %vm2165 = vc.u32 %v2159, %v2161
        %v2166 = vadd.s32 %v2162, 1
        %v2167 = vsel %vm2165, %v2166, %v2162
        %v2168 = vadd.s32 %v2163, %v2167
        %v2169 = vadd.s32 %v2168, 536870912
        %v2170 = vshrl.u32 %v2169, 30
        %v2171 = vshll.u32 %v2170, 30
        %v2172 = vsub.s32 %v2168, %v2171
        %vm2173 = vcmp.lt.s32.totalorder %v2172, 0
        %v2174 = vsub.s32 0, %v2172
        %v2175 = vsel %vm2173, %v2174, %v2172
        %v2176 = vclz %v2175
        %v2177 = vsub.s32 %v2176, 2
        %vm2178 = vcmp.gt.s32.totalorder 0, %v2177
        %v2179 = vsel %vm2178, 0, %v2177
        %v2180 = vsub.s32 32, %v2179
        %v2181 = vshll.u32 %v2172, %v2179
        %v2182 = vshrl.u32 %v2164, %v2180
        %v2183 = vor.u32 %v2181, %v2182
        %v2184 = vsub.s32 4294967266, %v2179
        %v2185 = vadd.s32 %v2184, 127
        %v2186 = vshll.u32 %v2185, 23
        %v2187 = vor.u32 4788187, %v2186
        %v2188 = vand.u32 2147483647, %v2187
        %v2190 = vcvt.s32.f32 %v2183
        %v2191 = vmul.f32 %v2190, %v2188
        %v2192 = vxor.u32 %v2191, 2147483648
        %v2193 = vsel %vm2110, %v2192, %v2191
        %v2194 = vsub.s32 4, %v2170
        %v2195 = vsel %vm2110, %v2194, %v2170
        %v2196 = vsel %vm2109, %v1480, %v2193
        %v2197 = vsel %vm2109, 0, %v2195
        %v2198 = vcosq.f32.pop %v2196
        %v2199 = vsinq.f32.pop %v2196
        %vm2200 = vweird.f32 %v1480
        %v2201 = vadd.s32 %v2197, 3
        %v2202 = vand.u32 %v2201, 3
        %vm2203 = vcmp.lt.s32.totalorder %v2202, 2
        %vm2204 = vcmp.eq.s32.totalorder %v2202, 0
        %v2205 = vxor.u32 %v2199, 2147483648
        %v2206 = vsel %vm2204, %v2198, %v2205
        %vm2207 = vcmp.eq.s32.totalorder %v2202, 2
        %v2208 = vxor.u32 %v2198, 2147483648
        %v2209 = vsel %vm2207, %v2208, %v2199
        %v2210 = vsel %vm2203, %v2206, %v2209
        %v2211 = vsel %vm2200, nan, %v2210
        %v2212 = vand.u32 2147483647, %v1482
        %vm2213 = vcmp.le.f32.partialorder %v2212, 0.7853982
        %vm2214 = vcmp.lt.s32.totalorder %v1482, 0
        %v2215 = vand.u32 %v1482, 2139095040
        %v2216 = vshrl.u32 %v2215, 23
        %v2217 = vsub.s32 %v2216, 127
        %v2218 = vand.u32 2147483647, %v1482
        %v2219 = vand.u32 %v2218, 8388607
        %v2220 = vor.u32 %v2219, 8388608
        %v2221 = vsub.s32 0, %v2220
        %v2222 = vadd.s32 %v2217, 1
        %vm2223 = vcmp.gt.s32.totalorder %v2222, 0
        %v2224 = vsel %vm2223, %v2222, 0
        %v2225 = vshrl.u32 %v2224, 5
        %v2226 = vand.u32 %v2224, 31
        %v2227 = vsub.s32 32, %v2226
        %v2228 = vshrl.u32 683565275, %v2227
        %v2229 = vshll.u32 683565275, %v2226
        %v2230 = vshrl.u32 2475754826, %v2227
        %v2231 = vor.u32 %v2229, %v2230
        %v2232 = vshll.u32 2475754826, %v2226
        %v2233 = vshrl.u32 2131351028, %v2227
        %v2234 = vor.u32 %v2232, %v2233
        %v2235 = vshll.u32 2131351028, %v2226
        %v2236 = vshrl.u32 2102212464, %v2227
        %v2237 = vor.u32 %v2235, %v2236
        %v2238 = vshll.u32 2102212464, %v2226
        %v2239 = vshrl.u32 920167782, %v2227
        %v2240 = vor.u32 %v2238, %v2239
        %v2241 = vshll.u32 920167782, %v2226
        %v2242 = vshrl.u32 1326507024, %v2227
        %v2243 = vor.u32 %v2241, %v2242
        %vm2244 = vcmp.lt.s32.totalorder %v2225, 1
        %vm2245 = vcmp.lt.s32.totalorder %v2225, 2
        %vm2246 = vcmp.lt.s32.totalorder %v2225, 3
        %vm2247 = vcmp.lt.s32.totalorder %v2225, 4
        %v2248 = vsel %vm2244, %v2228, %v2231
        %v2249 = vsel %vm2247, %v2237, 2102212464
        %v2250 = vsel %vm2246, %v2234, %v2249
        %v2251 = vsel %vm2245, %v2248, %v2250
        %v2252 = vsel %vm2244, %v2231, %v2234
        %v2253 = vsel %vm2247, %v2240, 920167782
        %v2254 = vsel %vm2246, %v2237, %v2253
        %v2255 = vsel %vm2245, %v2252, %v2254
        %v2256 = vsel %vm2244, %v2234, %v2237
        %v2257 = vsel %vm2247, %v2243, 1326507024
        %v2258 = vsel %vm2246, %v2240, %v2257
        %v2259 = vsel %vm2245, %v2256, %v2258
        %v2260 = vshll.u32 %v2220, 8
        %v2261 = vmul.u32.u64.compose %v2260, %v2259
        %v2262 = vextract.low.u32 %v2261
        %v2263 = vextract.high.u32 %v2261
        %v2264 = vmul.u32.u64.compose %v2260, %v2255
        %v2265 = vextract.low.u32 %v2264
        %v2266 = vextract.high.u32 %v2264
        %v2267 = vmul.u32 %v2260, %v2251
        %v2268 = vadd.s32 %v2263, %v2265
        %vm2269 = vc.u32 %v2263, %v2265
        %v2270 = vadd.s32 %v2266, 1
        %v2271 = vsel %vm2269, %v2270, %v2266
        %v2272 = vadd.s32 %v2267, %v2271
        %v2273 = vadd.s32 %v2272, 536870912
        %v2274 = vshrl.u32 %v2273, 30
        %v2275 = vshll.u32 %v2274, 30
        %v2276 = vsub.s32 %v2272, %v2275
        %vm2277 = vcmp.lt.s32.totalorder %v2276, 0
        %v2278 = vsub.s32 0, %v2276
        %v2279 = vsel %vm2277, %v2278, %v2276
        %v2280 = vclz %v2279
        %v2281 = vsub.s32 %v2280, 2
        %vm2282 = vcmp.gt.s32.totalorder 0, %v2281
        %v2283 = vsel %vm2282, 0, %v2281
        %v2284 = vsub.s32 32, %v2283
        %v2285 = vshll.u32 %v2276, %v2283
        %v2286 = vshrl.u32 %v2268, %v2284
        %v2287 = vor.u32 %v2285, %v2286
        %v2288 = vsub.s32 4294967266, %v2283
        %v2289 = vadd.s32 %v2288, 127
        %v2290 = vshll.u32 %v2289, 23
        %v2291 = vor.u32 4788187, %v2290
        %v2292 = vand.u32 2147483647, %v2291
        %v2294 = vcvt.s32.f32 %v2287
        %v2295 = vmul.f32 %v2294, %v2292
        %v2296 = vxor.u32 %v2295, 2147483648
        %v2297 = vsel %vm2214, %v2296, %v2295
        %v2298 = vsub.s32 4, %v2274
        %v2299 = vsel %vm2214, %v2298, %v2274
        %v2300 = vsel %vm2213, %v1482, %v2297
        %v2301 = vsel %vm2213, 0, %v2299
        %v2302 = vcosq.f32.pop %v2300
        %v2303 = vsinq.f32.pop %v2300
        %vm2304 = vweird.f32 %v1482
        %v2305 = vadd.s32 %v2301, 3
        %v2306 = vand.u32 %v2305, 3
        %vm2307 = vcmp.lt.s32.totalorder %v2306, 2
        %vm2308 = vcmp.eq.s32.totalorder %v2306, 0
        %v2309 = vxor.u32 %v2303, 2147483648
        %v2310 = vsel %vm2308, %v2302, %v2309
        %vm2311 = vcmp.eq.s32.totalorder %v2306, 2
        %v2312 = vxor.u32 %v2302, 2147483648
        %v2313 = vsel %vm2311, %v2312, %v2303
        %v2314 = vsel %vm2307, %v2310, %v2313
        %v2315 = vsel %vm2304, nan, %v2314
        %v2316 = vld [vmem:[%s5] sm:$0xff]
        %v2317 = vld [vmem:[%s5 + $0x8] sm:$0xff]
        %v2318 = vld [vmem:[%s5 + $0x10] sm:$0xff]
        %v2319 = vld [vmem:[%s5 + $0x18] sm:$0xff]
        %v2320 = vld [vmem:[%s6] sm:$0xff]
        %v2321 = vld [vmem:[%s6 + $0x8] sm:$0xff]
        %v2322 = vld [vmem:[%s6 + $0x10] sm:$0xff]
        %v2323 = vld [vmem:[%s6 + $0x18] sm:$0xff]
        %2325 = vset.pattern.permute.xlu0 0
        %2326 = vperm.xlu0 %2325, %v2320
        %v2327 = vpop.permute.xlu0 %2326
        %2330 = vset.pattern.permute.xlu0 0
        %2331 = vperm.xlu0 %2330, %v2321
        %v2332 = vpop.permute.xlu0 %2331
        %2335 = vset.pattern.permute.xlu0 0
        %2336 = vperm.xlu0 %2335, %v2322
        %v2337 = vpop.permute.xlu0 %2336
        %2340 = vset.pattern.permute.xlu0 0
        %2341 = vperm.xlu0 %2340, %v2323
        %v2342 = vpop.permute.xlu0 %2341
        %v2345 = vsel %vm1382, %v2316, 0
        %v2348 = vsel %vm1382, %v2317, 0
        %v2351 = vsel %vm1382, %v2318, 0
        %v2354 = vsel %vm1382, %v2319, 0
        %2356 = vmatprep.subr.mxu0 %v1691
        %2357 = vmatpush1.msra.mxu0 %v1587
        %2358 = vmatprep.subr.mxu0 %v1899
        %2359 = vmatpush1.msra.mxu0 %v1795
        %2360 = vmatprep.subr.mxu0 %v2107
        %2361 = vmatpush1.msra.mxu0 %v2003
        %2362 = vmatprep.subr.mxu0 %v2315
        %2363 = vmatpush1.msra.mxu0 %v2211
        %2364 = vmatprep.subr.mxu0 0.0
        %2365 = vmatpush1.msra.mxu0 0.0
        %2366 = vmatprep.subr.mxu0 0.0
        %2367 = vmatpush1.msra.mxu0 0.0
        %2368 = vmatprep.subr.mxu0 0.0
        %2369 = vmatpush1.msra.mxu0 0.0
        %2370 = vmatprep.subr.mxu0 0.0
        %2371 = vmatpush1.msra.mxu0 0.0
        %2372 = vmatprep.subr.mxu0 0.0
        %2373 = vmatpush1.msra.mxu0 0.0
        %2374 = vmatprep.subr.mxu0 0.0
        %2375 = vmatpush1.msra.mxu0 0.0
        %2376 = vmatprep.subr.mxu0 0.0
        %2377 = vmatpush1.msra.mxu0 0.0
        %2378 = vmatprep.subr.mxu0 0.0
        %2379 = vmatpush1.msra.mxu0 0.0
        %2380 = vmatprep.subr.mxu0 0.0
        %2381 = vmatpush1.msra.mxu0 0.0
        %2382 = vmatprep.subr.mxu0 0.0
        %2383 = vmatpush1.msra.mxu0 0.0
        %2384 = vmatprep.subr.mxu0 0.0
        %2385 = vmatpush1.msra.mxu0 0.0
        %2386 = vmatprep.subr.mxu0 0.0
        %2387 = vmatpush1.msra.mxu0 0.0
        %2388 = vmatprep.subr.mxu0 0.0
        %2389 = vmatpush1.msra.mxu0 0.0
        %2390 = vmatprep.subr.mxu0 0.0
        %2391 = vmatpush1.msra.mxu0 0.0
        %2392 = vmatprep.subr.mxu0 0.0
        %2393 = vmatpush1.msra.mxu0 0.0
        %2394 = vmatprep.subr.mxu0 0.0
        %2395 = vmatpush1.msra.mxu0 0.0
        %2396 = vmatprep.subr.mxu0 0.0
        %2397 = vmatpush1.msra.mxu0 0.0
        %2398 = vmatprep.subr.mxu0 0.0
        %2399 = vmatpush1.msra.mxu0 0.0
        %2400 = vmatprep.subr.mxu0 0.0
        %2401 = vmatpush1.msra.mxu0 0.0
        %2402 = vmatprep.subr.mxu0 0.0
        %2403 = vmatpush1.msra.mxu0 0.0
        %2404 = vmatprep.subr.mxu0 0.0
        %2405 = vmatpush1.msra.mxu0 0.0
        %2406 = vmatprep.subr.mxu0 0.0
        %2407 = vmatpush1.msra.mxu0 0.0
        %2408 = vmatprep.subr.mxu0 0.0
        %2409 = vmatpush1.msra.mxu0 0.0
        %2410 = vmatprep.subr.mxu0 0.0
        %2411 = vmatpush1.msra.mxu0 0.0
        %2412 = vmatprep.subr.mxu0 0.0
        %2413 = vmatpush1.msra.mxu0 0.0
        %2414 = vmatprep.subr.mxu0 0.0
        %2415 = vmatpush1.msra.mxu0 0.0
        %2416 = vmatprep.subr.mxu0 0.0
        %2417 = vmatpush1.msra.mxu0 0.0
        %2418 = vmatprep.subr.mxu0 0.0
        %2419 = vmatpush1.msra.mxu0 0.0
        %2420 = vmatprep.mubr.f32.mxu0 0.0
        %2421 = vmatmul.mubr.f32.gmra.mrb[0].mxu0 %v2345
        %v2422 = vpop.f32.mrb[0].mxu0
        %v2423 = vadd.f32 %v2327, %v2422
        %v2424 = vpop.f32.mrb[0].mxu0
        %v2425 = vadd.f32 %v2327, %v2424
        %2426 = vmatprep.mubr.f32.mxu0 0.0
        %2427 = vmatmul.mubr.f32.gmra.mrb[0].mxu0 %v2348
        %v2428 = vpop.f32.mrb[0].mxu0
        %v2429 = vadd.f32 %v2332, %v2428
        %v2430 = vpop.f32.mrb[0].mxu0
        %v2431 = vadd.f32 %v2332, %v2430
        %2432 = vmatprep.mubr.f32.mxu0 0.0
        %2433 = vmatmul.mubr.f32.gmra.mrb[0].mxu0 %v2351
        %v2434 = vpop.f32.mrb[0].mxu0
        %v2435 = vadd.f32 %v2337, %v2434
        %v2436 = vpop.f32.mrb[0].mxu0
        %v2437 = vadd.f32 %v2337, %v2436
        %2438 = vmatprep.mubr.f32.mxu0 0.0
        %2439 = vmatmul.mubr.f32.gmra.mrb[0].mxu0 %v2354
        %v2440 = vpop.f32.mrb[0].mxu0
        %v2441 = vadd.f32 %v2342, %v2440
        %v2442 = vpop.f32.mrb[0].mxu0
        %v2443 = vadd.f32 %v2342, %v2442
        %2444 = vdwg.mxu0
        %v2445 = vand.u32 2147483647, %v2423
        %vm2446 = vcmp.le.f32.partialorder %v2445, 0.7853982
        %vm2447 = vcmp.lt.s32.totalorder %v2423, 0
        %v2448 = vand.u32 %v2423, 2139095040
        %v2449 = vshrl.u32 %v2448, 23
        %v2450 = vsub.s32 %v2449, 127
        %v2451 = vand.u32 2147483647, %v2423
        %v2452 = vand.u32 %v2451, 8388607
        %v2453 = vor.u32 %v2452, 8388608
        %v2454 = vsub.s32 0, %v2453
        %v2455 = vadd.s32 %v2450, 1
        %vm2456 = vcmp.gt.s32.totalorder %v2455, 0
        %v2457 = vsel %vm2456, %v2455, 0
        %v2458 = vshrl.u32 %v2457, 5
        %v2459 = vand.u32 %v2457, 31
        %v2460 = vsub.s32 32, %v2459
        %v2461 = vshrl.u32 683565275, %v2460
        %v2462 = vshll.u32 683565275, %v2459
        %v2463 = vshrl.u32 2475754826, %v2460
        %v2464 = vor.u32 %v2462, %v2463
        %v2465 = vshll.u32 2475754826, %v2459
        %v2466 = vshrl.u32 2131351028, %v2460
        %v2467 = vor.u32 %v2465, %v2466
        %v2468 = vshll.u32 2131351028, %v2459
        %v2469 = vshrl.u32 2102212464, %v2460
        %v2470 = vor.u32 %v2468, %v2469
        %v2471 = vshll.u32 2102212464, %v2459
        %v2472 = vshrl.u32 920167782, %v2460
        %v2473 = vor.u32 %v2471, %v2472
        %v2474 = vshll.u32 920167782, %v2459
        %v2475 = vshrl.u32 1326507024, %v2460
        %v2476 = vor.u32 %v2474, %v2475
        %vm2477 = vcmp.lt.s32.totalorder %v2458, 1
        %vm2478 = vcmp.lt.s32.totalorder %v2458, 2
        %vm2479 = vcmp.lt.s32.totalorder %v2458, 3
        %vm2480 = vcmp.lt.s32.totalorder %v2458, 4
        %v2481 = vsel %vm2477, %v2461, %v2464
        %v2482 = vsel %vm2480, %v2470, 2102212464
        %v2483 = vsel %vm2479, %v2467, %v2482
        %v2484 = vsel %vm2478, %v2481, %v2483
        %v2485 = vsel %vm2477, %v2464, %v2467
        %v2486 = vsel %vm2480, %v2473, 920167782
        %v2487 = vsel %vm2479, %v2470, %v2486
        %v2488 = vsel %vm2478, %v2485, %v2487
        %v2489 = vsel %vm2477, %v2467, %v2470
        %v2490 = vsel %vm2480, %v2476, 1326507024
        %v2491 = vsel %vm2479, %v2473, %v2490
        %v2492 = vsel %vm2478, %v2489, %v2491
        %v2493 = vshll.u32 %v2453, 8
        %v2494 = vmul.u32.u64.compose %v2493, %v2492
        %v2495 = vextract.low.u32 %v2494
        %v2496 = vextract.high.u32 %v2494
        %v2497 = vmul.u32.u64.compose %v2493, %v2488
        %v2498 = vextract.low.u32 %v2497
        %v2499 = vextract.high.u32 %v2497
        %v2500 = vmul.u32 %v2493, %v2484
        %v2501 = vadd.s32 %v2496, %v2498
        %vm2502 = vc.u32 %v2496, %v2498
        %v2503 = vadd.s32 %v2499, 1
        %v2504 = vsel %vm2502, %v2503, %v2499
        %v2505 = vadd.s32 %v2500, %v2504
        %v2506 = vadd.s32 %v2505, 536870912
        %v2507 = vshrl.u32 %v2506, 30
        %v2508 = vshll.u32 %v2507, 30
        %v2509 = vsub.s32 %v2505, %v2508
        %vm2510 = vcmp.lt.s32.totalorder %v2509, 0
        %v2511 = vsub.s32 0, %v2509
        %v2512 = vsel %vm2510, %v2511, %v2509
        %v2513 = vclz %v2512
        %v2514 = vsub.s32 %v2513, 2
        %vm2515 = vcmp.gt.s32.totalorder 0, %v2514
        %v2516 = vsel %vm2515, 0, %v2514
        %v2517 = vsub.s32 32, %v2516
        %v2518 = vshll.u32 %v2509, %v2516
        %v2519 = vshrl.u32 %v2501, %v2517
        %v2520 = vor.u32 %v2518, %v2519
        %v2521 = vsub.s32 4294967266, %v2516
        %v2522 = vadd.s32 %v2521, 127
        %v2523 = vshll.u32 %v2522, 23
        %v2524 = vor.u32 4788187, %v2523
        %v2525 = vand.u32 2147483647, %v2524
        %v2527 = vcvt.s32.f32 %v2520
        %v2528 = vmul.f32 %v2527, %v2525
        %v2529 = vxor.u32 %v2528, 2147483648
        %v2530 = vsel %vm2447, %v2529, %v2528
        %v2531 = vsub.s32 4, %v2507
        %v2532 = vsel %vm2447, %v2531, %v2507
        %v2533 = vsel %vm2446, %v2423, %v2530
        %v2534 = vsel %vm2446, 0, %v2532
        %v2535 = vcosq.f32.pop %v2533
        %v2536 = vsinq.f32.pop %v2533
        %vm2537 = vweird.f32 %v2423
        %v2538 = vadd.s32 %v2534, 3
        %v2539 = vand.u32 %v2538, 3
        %vm2540 = vcmp.lt.s32.totalorder %v2539, 2
        %vm2541 = vcmp.eq.s32.totalorder %v2539, 0
        %v2542 = vxor.u32 %v2536, 2147483648
        %v2543 = vsel %vm2541, %v2535, %v2542
        %vm2544 = vcmp.eq.s32.totalorder %v2539, 2
        %v2545 = vxor.u32 %v2535, 2147483648
        %v2546 = vsel %vm2544, %v2545, %v2536
        %v2547 = vsel %vm2540, %v2543, %v2546
        %v2548 = vsel %vm2537, nan, %v2547
        %v2549 = vand.u32 2147483647, %v2425
        %vm2550 = vcmp.le.f32.partialorder %v2549, 0.7853982
        %vm2551 = vcmp.lt.s32.totalorder %v2425, 0
        %v2552 = vand.u32 %v2425, 2139095040
        %v2553 = vshrl.u32 %v2552, 23
        %v2554 = vsub.s32 %v2553, 127
        %v2555 = vand.u32 2147483647, %v2425
        %v2556 = vand.u32 %v2555, 8388607
        %v2557 = vor.u32 %v2556, 8388608
        %v2558 = vsub.s32 0, %v2557
        %v2559 = vadd.s32 %v2554, 1
        %vm2560 = vcmp.gt.s32.totalorder %v2559, 0
        %v2561 = vsel %vm2560, %v2559, 0
        %v2562 = vshrl.u32 %v2561, 5
        %v2563 = vand.u32 %v2561, 31
        %v2564 = vsub.s32 32, %v2563
        %v2565 = vshrl.u32 683565275, %v2564
        %v2566 = vshll.u32 683565275, %v2563
        %v2567 = vshrl.u32 2475754826, %v2564
        %v2568 = vor.u32 %v2566, %v2567
        %v2569 = vshll.u32 2475754826, %v2563
        %v2570 = vshrl.u32 2131351028, %v2564
        %v2571 = vor.u32 %v2569, %v2570
        %v2572 = vshll.u32 2131351028, %v2563
        %v2573 = vshrl.u32 2102212464, %v2564
        %v2574 = vor.u32 %v2572, %v2573
        %v2575 = vshll.u32 2102212464, %v2563
        %v2576 = vshrl.u32 920167782, %v2564
        %v2577 = vor.u32 %v2575, %v2576
        %v2578 = vshll.u32 920167782, %v2563
        %v2579 = vshrl.u32 1326507024, %v2564
        %v2580 = vor.u32 %v2578, %v2579
        %vm2581 = vcmp.lt.s32.totalorder %v2562, 1
        %vm2582 = vcmp.lt.s32.totalorder %v2562, 2
        %vm2583 = vcmp.lt.s32.totalorder %v2562, 3
        %vm2584 = vcmp.lt.s32.totalorder %v2562, 4
        %v2585 = vsel %vm2581, %v2565, %v2568
        %v2586 = vsel %vm2584, %v2574, 2102212464
        %v2587 = vsel %vm2583, %v2571, %v2586
        %v2588 = vsel %vm2582, %v2585, %v2587
        %v2589 = vsel %vm2581, %v2568, %v2571
        %v2590 = vsel %vm2584, %v2577, 920167782
        %v2591 = vsel %vm2583, %v2574, %v2590
        %v2592 = vsel %vm2582, %v2589, %v2591
        %v2593 = vsel %vm2581, %v2571, %v2574
        %v2594 = vsel %vm2584, %v2580, 1326507024
        %v2595 = vsel %vm2583, %v2577, %v2594
        %v2596 = vsel %vm2582, %v2593, %v2595
        %v2597 = vshll.u32 %v2557, 8
        %v2598 = vmul.u32.u64.compose %v2597, %v2596
        %v2599 = vextract.low.u32 %v2598
        %v2600 = vextract.high.u32 %v2598
        %v2601 = vmul.u32.u64.compose %v2597, %v2592
        %v2602 = vextract.low.u32 %v2601
        %v2603 = vextract.high.u32 %v2601
        %v2604 = vmul.u32 %v2597, %v2588
        %v2605 = vadd.s32 %v2600, %v2602
        %vm2606 = vc.u32 %v2600, %v2602
        %v2607 = vadd.s32 %v2603, 1
        %v2608 = vsel %vm2606, %v2607, %v2603
        %v2609 = vadd.s32 %v2604, %v2608
        %v2610 = vadd.s32 %v2609, 536870912
        %v2611 = vshrl.u32 %v2610, 30
        %v2612 = vshll.u32 %v2611, 30
        %v2613 = vsub.s32 %v2609, %v2612
        %vm2614 = vcmp.lt.s32.totalorder %v2613, 0
        %v2615 = vsub.s32 0, %v2613
        %v2616 = vsel %vm2614, %v2615, %v2613
        %v2617 = vclz %v2616
        %v2618 = vsub.s32 %v2617, 2
        %vm2619 = vcmp.gt.s32.totalorder 0, %v2618
        %v2620 = vsel %vm2619, 0, %v2618
        %v2621 = vsub.s32 32, %v2620
        %v2622 = vshll.u32 %v2613, %v2620
        %v2623 = vshrl.u32 %v2605, %v2621
        %v2624 = vor.u32 %v2622, %v2623
        %v2625 = vsub.s32 4294967266, %v2620
        %v2626 = vadd.s32 %v2625, 127
        %v2627 = vshll.u32 %v2626, 23
        %v2628 = vor.u32 4788187, %v2627
        %v2629 = vand.u32 2147483647, %v2628
        %v2631 = vcvt.s32.f32 %v2624
        %v2632 = vmul.f32 %v2631, %v2629
        %v2633 = vxor.u32 %v2632, 2147483648
        %v2634 = vsel %vm2551, %v2633, %v2632
        %v2635 = vsub.s32 4, %v2611
        %v2636 = vsel %vm2551, %v2635, %v2611
        %v2637 = vsel %vm2550, %v2425, %v2634
        %v2638 = vsel %vm2550, 0, %v2636
        %v2639 = vcosq.f32.pop %v2637
        %v2640 = vsinq.f32.pop %v2637
        %vm2641 = vweird.f32 %v2425
        %v2642 = vadd.s32 %v2638, 3
        %v2643 = vand.u32 %v2642, 3
        %vm2644 = vcmp.lt.s32.totalorder %v2643, 2
        %vm2645 = vcmp.eq.s32.totalorder %v2643, 0
        %v2646 = vxor.u32 %v2640, 2147483648
        %v2647 = vsel %vm2645, %v2639, %v2646
        %vm2648 = vcmp.eq.s32.totalorder %v2643, 2
        %v2649 = vxor.u32 %v2639, 2147483648
        %v2650 = vsel %vm2648, %v2649, %v2640
        %v2651 = vsel %vm2644, %v2647, %v2650
        %v2652 = vsel %vm2641, nan, %v2651
        %v2653 = vand.u32 2147483647, %v2429
        %vm2654 = vcmp.le.f32.partialorder %v2653, 0.7853982
        %vm2655 = vcmp.lt.s32.totalorder %v2429, 0
        %v2656 = vand.u32 %v2429, 2139095040
        %v2657 = vshrl.u32 %v2656, 23
        %v2658 = vsub.s32 %v2657, 127
        %v2659 = vand.u32 2147483647, %v2429
        %v2660 = vand.u32 %v2659, 8388607
        %v2661 = vor.u32 %v2660, 8388608
        %v2662 = vsub.s32 0, %v2661
        %v2663 = vadd.s32 %v2658, 1
        %vm2664 = vcmp.gt.s32.totalorder %v2663, 0
        %v2665 = vsel %vm2664, %v2663, 0
        %v2666 = vshrl.u32 %v2665, 5
        %v2667 = vand.u32 %v2665, 31
        %v2668 = vsub.s32 32, %v2667
        %v2669 = vshrl.u32 683565275, %v2668
        %v2670 = vshll.u32 683565275, %v2667
        %v2671 = vshrl.u32 2475754826, %v2668
        %v2672 = vor.u32 %v2670, %v2671
        %v2673 = vshll.u32 2475754826, %v2667
        %v2674 = vshrl.u32 2131351028, %v2668
        %v2675 = vor.u32 %v2673, %v2674
        %v2676 = vshll.u32 2131351028, %v2667
        %v2677 = vshrl.u32 2102212464, %v2668
        %v2678 = vor.u32 %v2676, %v2677
        %v2679 = vshll.u32 2102212464, %v2667
        %v2680 = vshrl.u32 920167782, %v2668
        %v2681 = vor.u32 %v2679, %v2680
        %v2682 = vshll.u32 920167782, %v2667
        %v2683 = vshrl.u32 1326507024, %v2668
        %v2684 = vor.u32 %v2682, %v2683
        %vm2685 = vcmp.lt.s32.totalorder %v2666, 1
        %vm2686 = vcmp.lt.s32.totalorder %v2666, 2
        %vm2687 = vcmp.lt.s32.totalorder %v2666, 3
        %vm2688 = vcmp.lt.s32.totalorder %v2666, 4
        %v2689 = vsel %vm2685, %v2669, %v2672
        %v2690 = vsel %vm2688, %v2678, 2102212464
        %v2691 = vsel %vm2687, %v2675, %v2690
        %v2692 = vsel %vm2686, %v2689, %v2691
        %v2693 = vsel %vm2685, %v2672, %v2675
        %v2694 = vsel %vm2688, %v2681, 920167782
        %v2695 = vsel %vm2687, %v2678, %v2694
        %v2696 = vsel %vm2686, %v2693, %v2695
        %v2697 = vsel %vm2685, %v2675, %v2678
        %v2698 = vsel %vm2688, %v2684, 1326507024
        %v2699 = vsel %vm2687, %v2681, %v2698
        %v2700 = vsel %vm2686, %v2697, %v2699
        %v2701 = vshll.u32 %v2661, 8
        %v2702 = vmul.u32.u64.compose %v2701, %v2700
        %v2703 = vextract.low.u32 %v2702
        %v2704 = vextract.high.u32 %v2702
        %v2705 = vmul.u32.u64.compose %v2701, %v2696
        %v2706 = vextract.low.u32 %v2705
        %v2707 = vextract.high.u32 %v2705
        %v2708 = vmul.u32 %v2701, %v2692
        %v2709 = vadd.s32 %v2704, %v2706
        %vm2710 = vc.u32 %v2704, %v2706
        %v2711 = vadd.s32 %v2707, 1
        %v2712 = vsel %vm2710, %v2711, %v2707
        %v2713 = vadd.s32 %v2708, %v2712
        %v2714 = vadd.s32 %v2713, 536870912
        %v2715 = vshrl.u32 %v2714, 30
        %v2716 = vshll.u32 %v2715, 30
        %v2717 = vsub.s32 %v2713, %v2716
        %vm2718 = vcmp.lt.s32.totalorder %v2717, 0
        %v2719 = vsub.s32 0, %v2717
        %v2720 = vsel %vm2718, %v2719, %v2717
        %v2721 = vclz %v2720
        %v2722 = vsub.s32 %v2721, 2
        %vm2723 = vcmp.gt.s32.totalorder 0, %v2722
        %v2724 = vsel %vm2723, 0, %v2722
        %v2725 = vsub.s32 32, %v2724
        %v2726 = vshll.u32 %v2717, %v2724
        %v2727 = vshrl.u32 %v2709, %v2725
        %v2728 = vor.u32 %v2726, %v2727
        %v2729 = vsub.s32 4294967266, %v2724
        %v2730 = vadd.s32 %v2729, 127
        %v2731 = vshll.u32 %v2730, 23
        %v2732 = vor.u32 4788187, %v2731
        %v2733 = vand.u32 2147483647, %v2732
        %v2735 = vcvt.s32.f32 %v2728
        %v2736 = vmul.f32 %v2735, %v2733
        %v2737 = vxor.u32 %v2736, 2147483648
        %v2738 = vsel %vm2655, %v2737, %v2736
        %v2739 = vsub.s32 4, %v2715
        %v2740 = vsel %vm2655, %v2739, %v2715
        %v2741 = vsel %vm2654, %v2429, %v2738
        %v2742 = vsel %vm2654, 0, %v2740
        %v2743 = vcosq.f32.pop %v2741
        %v2744 = vsinq.f32.pop %v2741
        %vm2745 = vweird.f32 %v2429
        %v2746 = vadd.s32 %v2742, 3
        %v2747 = vand.u32 %v2746, 3
        %vm2748 = vcmp.lt.s32.totalorder %v2747, 2
        %vm2749 = vcmp.eq.s32.totalorder %v2747, 0
        %v2750 = vxor.u32 %v2744, 2147483648
        %v2751 = vsel %vm2749, %v2743, %v2750
        %vm2752 = vcmp.eq.s32.totalorder %v2747, 2
        %v2753 = vxor.u32 %v2743, 2147483648
        %v2754 = vsel %vm2752, %v2753, %v2744
        %v2755 = vsel %vm2748, %v2751, %v2754
        %v2756 = vsel %vm2745, nan, %v2755
        %v2757 = vand.u32 2147483647, %v2431
        %vm2758 = vcmp.le.f32.partialorder %v2757, 0.7853982
        %vm2759 = vcmp.lt.s32.totalorder %v2431, 0
        %v2760 = vand.u32 %v2431, 2139095040
        %v2761 = vshrl.u32 %v2760, 23
        %v2762 = vsub.s32 %v2761, 127
        %v2763 = vand.u32 2147483647, %v2431
        %v2764 = vand.u32 %v2763, 8388607
        %v2765 = vor.u32 %v2764, 8388608
        %v2766 = vsub.s32 0, %v2765
        %v2767 = vadd.s32 %v2762, 1
        %vm2768 = vcmp.gt.s32.totalorder %v2767, 0
        %v2769 = vsel %vm2768, %v2767, 0
        %v2770 = vshrl.u32 %v2769, 5
        %v2771 = vand.u32 %v2769, 31
        %v2772 = vsub.s32 32, %v2771
        %v2773 = vshrl.u32 683565275, %v2772
        %v2774 = vshll.u32 683565275, %v2771
        %v2775 = vshrl.u32 2475754826, %v2772
        %v2776 = vor.u32 %v2774, %v2775
        %v2777 = vshll.u32 2475754826, %v2771
        %v2778 = vshrl.u32 2131351028, %v2772
        %v2779 = vor.u32 %v2777, %v2778
        %v2780 = vshll.u32 2131351028, %v2771
        %v2781 = vshrl.u32 2102212464, %v2772
        %v2782 = vor.u32 %v2780, %v2781
        %v2783 = vshll.u32 2102212464, %v2771
        %v2784 = vshrl.u32 920167782, %v2772
        %v2785 = vor.u32 %v2783, %v2784
        %v2786 = vshll.u32 920167782, %v2771
        %v2787 = vshrl.u32 1326507024, %v2772
        %v2788 = vor.u32 %v2786, %v2787
        %vm2789 = vcmp.lt.s32.totalorder %v2770, 1
        %vm2790 = vcmp.lt.s32.totalorder %v2770, 2
        %vm2791 = vcmp.lt.s32.totalorder %v2770, 3
        %vm2792 = vcmp.lt.s32.totalorder %v2770, 4
        %v2793 = vsel %vm2789, %v2773, %v2776
        %v2794 = vsel %vm2792, %v2782, 2102212464
        %v2795 = vsel %vm2791, %v2779, %v2794
        %v2796 = vsel %vm2790, %v2793, %v2795
        %v2797 = vsel %vm2789, %v2776, %v2779
        %v2798 = vsel %vm2792, %v2785, 920167782
        %v2799 = vsel %vm2791, %v2782, %v2798
        %v2800 = vsel %vm2790, %v2797, %v2799
        %v2801 = vsel %vm2789, %v2779, %v2782
        %v2802 = vsel %vm2792, %v2788, 1326507024
        %v2803 = vsel %vm2791, %v2785, %v2802
        %v2804 = vsel %vm2790, %v2801, %v2803
        %v2805 = vshll.u32 %v2765, 8
        %v2806 = vmul.u32.u64.compose %v2805, %v2804
        %v2807 = vextract.low.u32 %v2806
        %v2808 = vextract.high.u32 %v2806
        %v2809 = vmul.u32.u64.compose %v2805, %v2800
        %v2810 = vextract.low.u32 %v2809
        %v2811 = vextract.high.u32 %v2809
        %v2812 = vmul.u32 %v2805, %v2796
        %v2813 = vadd.s32 %v2808, %v2810
        %vm2814 = vc.u32 %v2808, %v2810
        %v2815 = vadd.s32 %v2811, 1
        %v2816 = vsel %vm2814, %v2815, %v2811
        %v2817 = vadd.s32 %v2812, %v2816
        %v2818 = vadd.s32 %v2817, 536870912
        %v2819 = vshrl.u32 %v2818, 30
        %v2820 = vshll.u32 %v2819, 30
        %v2821 = vsub.s32 %v2817, %v2820
        %vm2822 = vcmp.lt.s32.totalorder %v2821, 0
        %v2823 = vsub.s32 0, %v2821
        %v2824 = vsel %vm2822, %v2823, %v2821
        %v2825 = vclz %v2824
        %v2826 = vsub.s32 %v2825, 2
        %vm2827 = vcmp.gt.s32.totalorder 0, %v2826
        %v2828 = vsel %vm2827, 0, %v2826
        %v2829 = vsub.s32 32, %v2828
        %v2830 = vshll.u32 %v2821, %v2828
        %v2831 = vshrl.u32 %v2813, %v2829
        %v2832 = vor.u32 %v2830, %v2831
        %v2833 = vsub.s32 4294967266, %v2828
        %v2834 = vadd.s32 %v2833, 127
        %v2835 = vshll.u32 %v2834, 23
        %v2836 = vor.u32 4788187, %v2835
        %v2837 = vand.u32 2147483647, %v2836
        %v2839 = vcvt.s32.f32 %v2832
        %v2840 = vmul.f32 %v2839, %v2837
        %v2841 = vxor.u32 %v2840, 2147483648
        %v2842 = vsel %vm2759, %v2841, %v2840
        %v2843 = vsub.s32 4, %v2819
        %v2844 = vsel %vm2759, %v2843, %v2819
        %v2845 = vsel %vm2758, %v2431, %v2842
        %v2846 = vsel %vm2758, 0, %v2844
        %v2847 = vcosq.f32.pop %v2845
        %v2848 = vsinq.f32.pop %v2845
        %vm2849 = vweird.f32 %v2431
        %v2850 = vadd.s32 %v2846, 3
        %v2851 = vand.u32 %v2850, 3
        %vm2852 = vcmp.lt.s32.totalorder %v2851, 2
        %vm2853 = vcmp.eq.s32.totalorder %v2851, 0
        %v2854 = vxor.u32 %v2848, 2147483648
        %v2855 = vsel %vm2853, %v2847, %v2854
        %vm2856 = vcmp.eq.s32.totalorder %v2851, 2
        %v2857 = vxor.u32 %v2847, 2147483648
        %v2858 = vsel %vm2856, %v2857, %v2848
        %v2859 = vsel %vm2852, %v2855, %v2858
        %v2860 = vsel %vm2849, nan, %v2859
        %v2861 = vand.u32 2147483647, %v2435
        %vm2862 = vcmp.le.f32.partialorder %v2861, 0.7853982
        %vm2863 = vcmp.lt.s32.totalorder %v2435, 0
        %v2864 = vand.u32 %v2435, 2139095040
        %v2865 = vshrl.u32 %v2864, 23
        %v2866 = vsub.s32 %v2865, 127
        %v2867 = vand.u32 2147483647, %v2435
        %v2868 = vand.u32 %v2867, 8388607
        %v2869 = vor.u32 %v2868, 8388608
        %v2870 = vsub.s32 0, %v2869
        %v2871 = vadd.s32 %v2866, 1
        %vm2872 = vcmp.gt.s32.totalorder %v2871, 0
        %v2873 = vsel %vm2872, %v2871, 0
        %v2874 = vshrl.u32 %v2873, 5
        %v2875 = vand.u32 %v2873, 31
        %v2876 = vsub.s32 32, %v2875
        %v2877 = vshrl.u32 683565275, %v2876
        %v2878 = vshll.u32 683565275, %v2875
        %v2879 = vshrl.u32 2475754826, %v2876
        %v2880 = vor.u32 %v2878, %v2879
        %v2881 = vshll.u32 2475754826, %v2875
        %v2882 = vshrl.u32 2131351028, %v2876
        %v2883 = vor.u32 %v2881, %v2882
        %v2884 = vshll.u32 2131351028, %v2875
        %v2885 = vshrl.u32 2102212464, %v2876
        %v2886 = vor.u32 %v2884, %v2885
        %v2887 = vshll.u32 2102212464, %v2875
        %v2888 = vshrl.u32 920167782, %v2876
        %v2889 = vor.u32 %v2887, %v2888
        %v2890 = vshll.u32 920167782, %v2875
        %v2891 = vshrl.u32 1326507024, %v2876
        %v2892 = vor.u32 %v2890, %v2891
        %vm2893 = vcmp.lt.s32.totalorder %v2874, 1
        %vm2894 = vcmp.lt.s32.totalorder %v2874, 2
        %vm2895 = vcmp.lt.s32.totalorder %v2874, 3
        %vm2896 = vcmp.lt.s32.totalorder %v2874, 4
        %v2897 = vsel %vm2893, %v2877, %v2880
        %v2898 = vsel %vm2896, %v2886, 2102212464
        %v2899 = vsel %vm2895, %v2883, %v2898
        %v2900 = vsel %vm2894, %v2897, %v2899
        %v2901 = vsel %vm2893, %v2880, %v2883
        %v2902 = vsel %vm2896, %v2889, 920167782
        %v2903 = vsel %vm2895, %v2886, %v2902
        %v2904 = vsel %vm2894, %v2901, %v2903
        %v2905 = vsel %vm2893, %v2883, %v2886
        %v2906 = vsel %vm2896, %v2892, 1326507024
        %v2907 = vsel %vm2895, %v2889, %v2906
        %v2908 = vsel %vm2894, %v2905, %v2907
        %v2909 = vshll.u32 %v2869, 8
        %v2910 = vmul.u32.u64.compose %v2909, %v2908
        %v2911 = vextract.low.u32 %v2910
        %v2912 = vextract.high.u32 %v2910
        %v2913 = vmul.u32.u64.compose %v2909, %v2904
        %v2914 = vextract.low.u32 %v2913
        %v2915 = vextract.high.u32 %v2913
        %v2916 = vmul.u32 %v2909, %v2900
        %v2917 = vadd.s32 %v2912, %v2914
        %vm2918 = vc.u32 %v2912, %v2914
        %v2919 = vadd.s32 %v2915, 1
        %v2920 = vsel %vm2918, %v2919, %v2915
        %v2921 = vadd.s32 %v2916, %v2920
        %v2922 = vadd.s32 %v2921, 536870912
        %v2923 = vshrl.u32 %v2922, 30
        %v2924 = vshll.u32 %v2923, 30
        %v2925 = vsub.s32 %v2921, %v2924
        %vm2926 = vcmp.lt.s32.totalorder %v2925, 0
        %v2927 = vsub.s32 0, %v2925
        %v2928 = vsel %vm2926, %v2927, %v2925
        %v2929 = vclz %v2928
        %v2930 = vsub.s32 %v2929, 2
        %vm2931 = vcmp.gt.s32.totalorder 0, %v2930
        %v2932 = vsel %vm2931, 0, %v2930
        %v2933 = vsub.s32 32, %v2932
        %v2934 = vshll.u32 %v2925, %v2932
        %v2935 = vshrl.u32 %v2917, %v2933
        %v2936 = vor.u32 %v2934, %v2935
        %v2937 = vsub.s32 4294967266, %v2932
        %v2938 = vadd.s32 %v2937, 127
        %v2939 = vshll.u32 %v2938, 23
        %v2940 = vor.u32 4788187, %v2939
        %v2941 = vand.u32 2147483647, %v2940
        %v2943 = vcvt.s32.f32 %v2936
        %v2944 = vmul.f32 %v2943, %v2941
        %v2945 = vxor.u32 %v2944, 2147483648
        %v2946 = vsel %vm2863, %v2945, %v2944
        %v2947 = vsub.s32 4, %v2923
        %v2948 = vsel %vm2863, %v2947, %v2923
        %v2949 = vsel %vm2862, %v2435, %v2946
        %v2950 = vsel %vm2862, 0, %v2948
        %v2951 = vcosq.f32.pop %v2949
        %v2952 = vsinq.f32.pop %v2949
        %vm2953 = vweird.f32 %v2435
        %v2954 = vadd.s32 %v2950, 3
        %v2955 = vand.u32 %v2954, 3
        %vm2956 = vcmp.lt.s32.totalorder %v2955, 2
        %vm2957 = vcmp.eq.s32.totalorder %v2955, 0
        %v2958 = vxor.u32 %v2952, 2147483648
        %v2959 = vsel %vm2957, %v2951, %v2958
        %vm2960 = vcmp.eq.s32.totalorder %v2955, 2
        %v2961 = vxor.u32 %v2951, 2147483648
        %v2962 = vsel %vm2960, %v2961, %v2952
        %v2963 = vsel %vm2956, %v2959, %v2962
        %v2964 = vsel %vm2953, nan, %v2963
        %v2965 = vand.u32 2147483647, %v2437
        %vm2966 = vcmp.le.f32.partialorder %v2965, 0.7853982
        %vm2967 = vcmp.lt.s32.totalorder %v2437, 0
        %v2968 = vand.u32 %v2437, 2139095040
        %v2969 = vshrl.u32 %v2968, 23
        %v2970 = vsub.s32 %v2969, 127
        %v2971 = vand.u32 2147483647, %v2437
        %v2972 = vand.u32 %v2971, 8388607
        %v2973 = vor.u32 %v2972, 8388608
        %v2974 = vsub.s32 0, %v2973
        %v2975 = vadd.s32 %v2970, 1
        %vm2976 = vcmp.gt.s32.totalorder %v2975, 0
        %v2977 = vsel %vm2976, %v2975, 0
        %v2978 = vshrl.u32 %v2977, 5
        %v2979 = vand.u32 %v2977, 31
        %v2980 = vsub.s32 32, %v2979
        %v2981 = vshrl.u32 683565275, %v2980
        %v2982 = vshll.u32 683565275, %v2979
        %v2983 = vshrl.u32 2475754826, %v2980
        %v2984 = vor.u32 %v2982, %v2983
        %v2985 = vshll.u32 2475754826, %v2979
        %v2986 = vshrl.u32 2131351028, %v2980
        %v2987 = vor.u32 %v2985, %v2986
        %v2988 = vshll.u32 2131351028, %v2979
        %v2989 = vshrl.u32 2102212464, %v2980
        %v2990 = vor.u32 %v2988, %v2989
        %v2991 = vshll.u32 2102212464, %v2979
        %v2992 = vshrl.u32 920167782, %v2980
        %v2993 = vor.u32 %v2991, %v2992
        %v2994 = vshll.u32 920167782, %v2979
        %v2995 = vshrl.u32 1326507024, %v2980
        %v2996 = vor.u32 %v2994, %v2995
        %vm2997 = vcmp.lt.s32.totalorder %v2978, 1
        %vm2998 = vcmp.lt.s32.totalorder %v2978, 2
        %vm2999 = vcmp.lt.s32.totalorder %v2978, 3
        %vm3000 = vcmp.lt.s32.totalorder %v2978, 4
        %v3001 = vsel %vm2997, %v2981, %v2984
        %v3002 = vsel %vm3000, %v2990, 2102212464
        %v3003 = vsel %vm2999, %v2987, %v3002
        %v3004 = vsel %vm2998, %v3001, %v3003
        %v3005 = vsel %vm2997, %v2984, %v2987
        %v3006 = vsel %vm3000, %v2993, 920167782
        %v3007 = vsel %vm2999, %v2990, %v3006
        %v3008 = vsel %vm2998, %v3005, %v3007
        %v3009 = vsel %vm2997, %v2987, %v2990
        %v3010 = vsel %vm3000, %v2996, 1326507024
        %v3011 = vsel %vm2999, %v2993, %v3010
        %v3012 = vsel %vm2998, %v3009, %v3011
        %v3013 = vshll.u32 %v2973, 8
        %v3014 = vmul.u32.u64.compose %v3013, %v3012
        %v3015 = vextract.low.u32 %v3014
        %v3016 = vextract.high.u32 %v3014
        %v3017 = vmul.u32.u64.compose %v3013, %v3008
        %v3018 = vextract.low.u32 %v3017
        %v3019 = vextract.high.u32 %v3017
        %v3020 = vmul.u32 %v3013, %v3004
        %v3021 = vadd.s32 %v3016, %v3018
        %vm3022 = vc.u32 %v3016, %v3018
        %v3023 = vadd.s32 %v3019, 1
        %v3024 = vsel %vm3022, %v3023, %v3019
        %v3025 = vadd.s32 %v3020, %v3024
        %v3026 = vadd.s32 %v3025, 536870912
        %v3027 = vshrl.u32 %v3026, 30
        %v3028 = vshll.u32 %v3027, 30
        %v3029 = vsub.s32 %v3025, %v3028
        %vm3030 = vcmp.lt.s32.totalorder %v3029, 0
        %v3031 = vsub.s32 0, %v3029
        %v3032 = vsel %vm3030, %v3031, %v3029
        %v3033 = vclz %v3032
        %v3034 = vsub.s32 %v3033, 2
        %vm3035 = vcmp.gt.s32.totalorder 0, %v3034
        %v3036 = vsel %vm3035, 0, %v3034
        %v3037 = vsub.s32 32, %v3036
        %v3038 = vshll.u32 %v3029, %v3036
        %v3039 = vshrl.u32 %v3021, %v3037
        %v3040 = vor.u32 %v3038, %v3039
        %v3041 = vsub.s32 4294967266, %v3036
        %v3042 = vadd.s32 %v3041, 127
        %v3043 = vshll.u32 %v3042, 23
        %v3044 = vor.u32 4788187, %v3043
        %v3045 = vand.u32 2147483647, %v3044
        %v3047 = vcvt.s32.f32 %v3040
        %v3048 = vmul.f32 %v3047, %v3045
        %v3049 = vxor.u32 %v3048, 2147483648
        %v3050 = vsel %vm2967, %v3049, %v3048
        %v3051 = vsub.s32 4, %v3027
        %v3052 = vsel %vm2967, %v3051, %v3027
        %v3053 = vsel %vm2966, %v2437, %v3050
        %v3054 = vsel %vm2966, 0, %v3052
        %v3055 = vcosq.f32.pop %v3053
        %v3056 = vsinq.f32.pop %v3053
        %vm3057 = vweird.f32 %v2437
        %v3058 = vadd.s32 %v3054, 3
        %v3059 = vand.u32 %v3058, 3
        %vm3060 = vcmp.lt.s32.totalorder %v3059, 2
        %vm3061 = vcmp.eq.s32.totalorder %v3059, 0
        %v3062 = vxor.u32 %v3056, 2147483648
        %v3063 = vsel %vm3061, %v3055, %v3062
        %vm3064 = vcmp.eq.s32.totalorder %v3059, 2
        %v3065 = vxor.u32 %v3055, 2147483648
        %v3066 = vsel %vm3064, %v3065, %v3056
        %v3067 = vsel %vm3060, %v3063, %v3066
        %v3068 = vsel %vm3057, nan, %v3067
        %v3069 = vand.u32 2147483647, %v2441
        %vm3070 = vcmp.le.f32.partialorder %v3069, 0.7853982
        %vm3071 = vcmp.lt.s32.totalorder %v2441, 0
        %v3072 = vand.u32 %v2441, 2139095040
        %v3073 = vshrl.u32 %v3072, 23
        %v3074 = vsub.s32 %v3073, 127
        %v3075 = vand.u32 2147483647, %v2441
        %v3076 = vand.u32 %v3075, 8388607
        %v3077 = vor.u32 %v3076, 8388608
        %v3078 = vsub.s32 0, %v3077
        %v3079 = vadd.s32 %v3074, 1
        %vm3080 = vcmp.gt.s32.totalorder %v3079, 0
        %v3081 = vsel %vm3080, %v3079, 0
        %v3082 = vshrl.u32 %v3081, 5
        %v3083 = vand.u32 %v3081, 31
        %v3084 = vsub.s32 32, %v3083
        %v3085 = vshrl.u32 683565275, %v3084
        %v3086 = vshll.u32 683565275, %v3083
        %v3087 = vshrl.u32 2475754826, %v3084
        %v3088 = vor.u32 %v3086, %v3087
        %v3089 = vshll.u32 2475754826, %v3083
        %v3090 = vshrl.u32 2131351028, %v3084
        %v3091 = vor.u32 %v3089, %v3090
        %v3092 = vshll.u32 2131351028, %v3083
        %v3093 = vshrl.u32 2102212464, %v3084
        %v3094 = vor.u32 %v3092, %v3093
        %v3095 = vshll.u32 2102212464, %v3083
        %v3096 = vshrl.u32 920167782, %v3084
        %v3097 = vor.u32 %v3095, %v3096
        %v3098 = vshll.u32 920167782, %v3083
        %v3099 = vshrl.u32 1326507024, %v3084
        %v3100 = vor.u32 %v3098, %v3099
        %vm3101 = vcmp.lt.s32.totalorder %v3082, 1
        %vm3102 = vcmp.lt.s32.totalorder %v3082, 2
        %vm3103 = vcmp.lt.s32.totalorder %v3082, 3
        %vm3104 = vcmp.lt.s32.totalorder %v3082, 4
        %v3105 = vsel %vm3101, %v3085, %v3088
        %v3106 = vsel %vm3104, %v3094, 2102212464
        %v3107 = vsel %vm3103, %v3091, %v3106
        %v3108 = vsel %vm3102, %v3105, %v3107
        %v3109 = vsel %vm3101, %v3088, %v3091
        %v3110 = vsel %vm3104, %v3097, 920167782
        %v3111 = vsel %vm3103, %v3094, %v3110
        %v3112 = vsel %vm3102, %v3109, %v3111
        %v3113 = vsel %vm3101, %v3091, %v3094
        %v3114 = vsel %vm3104, %v3100, 1326507024
        %v3115 = vsel %vm3103, %v3097, %v3114
        %v3116 = vsel %vm3102, %v3113, %v3115
        %v3117 = vshll.u32 %v3077, 8
        %v3118 = vmul.u32.u64.compose %v3117, %v3116
        %v3119 = vextract.low.u32 %v3118
        %v3120 = vextract.high.u32 %v3118
        %v3121 = vmul.u32.u64.compose %v3117, %v3112
        %v3122 = vextract.low.u32 %v3121
        %v3123 = vextract.high.u32 %v3121
        %v3124 = vmul.u32 %v3117, %v3108
        %v3125 = vadd.s32 %v3120, %v3122
        %vm3126 = vc.u32 %v3120, %v3122
        %v3127 = vadd.s32 %v3123, 1
        %v3128 = vsel %vm3126, %v3127, %v3123
        %v3129 = vadd.s32 %v3124, %v3128
        %v3130 = vadd.s32 %v3129, 536870912
        %v3131 = vshrl.u32 %v3130, 30
        %v3132 = vshll.u32 %v3131, 30
        %v3133 = vsub.s32 %v3129, %v3132
        %vm3134 = vcmp.lt.s32.totalorder %v3133, 0
        %v3135 = vsub.s32 0, %v3133
        %v3136 = vsel %vm3134, %v3135, %v3133
        %v3137 = vclz %v3136
        %v3138 = vsub.s32 %v3137, 2
        %vm3139 = vcmp.gt.s32.totalorder 0, %v3138
        %v3140 = vsel %vm3139, 0, %v3138
        %v3141 = vsub.s32 32, %v3140
        %v3142 = vshll.u32 %v3133, %v3140
        %v3143 = vshrl.u32 %v3125, %v3141
        %v3144 = vor.u32 %v3142, %v3143
        %v3145 = vsub.s32 4294967266, %v3140
        %v3146 = vadd.s32 %v3145, 127
        %v3147 = vshll.u32 %v3146, 23
        %v3148 = vor.u32 4788187, %v3147
        %v3149 = vand.u32 2147483647, %v3148
        %v3151 = vcvt.s32.f32 %v3144
        %v3152 = vmul.f32 %v3151, %v3149
        %v3153 = vxor.u32 %v3152, 2147483648
        %v3154 = vsel %vm3071, %v3153, %v3152
        %v3155 = vsub.s32 4, %v3131
        %v3156 = vsel %vm3071, %v3155, %v3131
        %v3157 = vsel %vm3070, %v2441, %v3154
        %v3158 = vsel %vm3070, 0, %v3156
        %v3159 = vcosq.f32.pop %v3157
        %v3160 = vsinq.f32.pop %v3157
        %vm3161 = vweird.f32 %v2441
        %v3162 = vadd.s32 %v3158, 3
        %v3163 = vand.u32 %v3162, 3
        %vm3164 = vcmp.lt.s32.totalorder %v3163, 2
        %vm3165 = vcmp.eq.s32.totalorder %v3163, 0
        %v3166 = vxor.u32 %v3160, 2147483648
        %v3167 = vsel %vm3165, %v3159, %v3166
        %vm3168 = vcmp.eq.s32.totalorder %v3163, 2
        %v3169 = vxor.u32 %v3159, 2147483648
        %v3170 = vsel %vm3168, %v3169, %v3160
        %v3171 = vsel %vm3164, %v3167, %v3170
        %v3172 = vsel %vm3161, nan, %v3171
        %v3173 = vand.u32 2147483647, %v2443
        %vm3174 = vcmp.le.f32.partialorder %v3173, 0.7853982
        %vm3175 = vcmp.lt.s32.totalorder %v2443, 0
        %v3176 = vand.u32 %v2443, 2139095040
        %v3177 = vshrl.u32 %v3176, 23
        %v3178 = vsub.s32 %v3177, 127
        %v3179 = vand.u32 2147483647, %v2443
        %v3180 = vand.u32 %v3179, 8388607
        %v3181 = vor.u32 %v3180, 8388608
        %v3182 = vsub.s32 0, %v3181
        %v3183 = vadd.s32 %v3178, 1
        %vm3184 = vcmp.gt.s32.totalorder %v3183, 0
        %v3185 = vsel %vm3184, %v3183, 0
        %v3186 = vshrl.u32 %v3185, 5
        %v3187 = vand.u32 %v3185, 31
        %v3188 = vsub.s32 32, %v3187
        %v3189 = vshrl.u32 683565275, %v3188
        %v3190 = vshll.u32 683565275, %v3187
        %v3191 = vshrl.u32 2475754826, %v3188
        %v3192 = vor.u32 %v3190, %v3191
        %v3193 = vshll.u32 2475754826, %v3187
        %v3194 = vshrl.u32 2131351028, %v3188
        %v3195 = vor.u32 %v3193, %v3194
        %v3196 = vshll.u32 2131351028, %v3187
        %v3197 = vshrl.u32 2102212464, %v3188
        %v3198 = vor.u32 %v3196, %v3197
        %v3199 = vshll.u32 2102212464, %v3187
        %v3200 = vshrl.u32 920167782, %v3188
        %v3201 = vor.u32 %v3199, %v3200
        %v3202 = vshll.u32 920167782, %v3187
        %v3203 = vshrl.u32 1326507024, %v3188
        %v3204 = vor.u32 %v3202, %v3203
        %vm3205 = vcmp.lt.s32.totalorder %v3186, 1
        %vm3206 = vcmp.lt.s32.totalorder %v3186, 2
        %vm3207 = vcmp.lt.s32.totalorder %v3186, 3
        %vm3208 = vcmp.lt.s32.totalorder %v3186, 4
        %v3209 = vsel %vm3205, %v3189, %v3192
        %v3210 = vsel %vm3208, %v3198, 2102212464
        %v3211 = vsel %vm3207, %v3195, %v3210
        %v3212 = vsel %vm3206, %v3209, %v3211
        %v3213 = vsel %vm3205, %v3192, %v3195
        %v3214 = vsel %vm3208, %v3201, 920167782
        %v3215 = vsel %vm3207, %v3198, %v3214
        %v3216 = vsel %vm3206, %v3213, %v3215
        %v3217 = vsel %vm3205, %v3195, %v3198
        %v3218 = vsel %vm3208, %v3204, 1326507024
        %v3219 = vsel %vm3207, %v3201, %v3218
        %v3220 = vsel %vm3206, %v3217, %v3219
        %v3221 = vshll.u32 %v3181, 8
        %v3222 = vmul.u32.u64.compose %v3221, %v3220
        %v3223 = vextract.low.u32 %v3222
        %v3224 = vextract.high.u32 %v3222
        %v3225 = vmul.u32.u64.compose %v3221, %v3216
        %v3226 = vextract.low.u32 %v3225
        %v3227 = vextract.high.u32 %v3225
        %v3228 = vmul.u32 %v3221, %v3212
        %v3229 = vadd.s32 %v3224, %v3226
        %vm3230 = vc.u32 %v3224, %v3226
        %v3231 = vadd.s32 %v3227, 1
        %v3232 = vsel %vm3230, %v3231, %v3227
        %v3233 = vadd.s32 %v3228, %v3232
        %v3234 = vadd.s32 %v3233, 536870912
        %v3235 = vshrl.u32 %v3234, 30
        %v3236 = vshll.u32 %v3235, 30
        %v3237 = vsub.s32 %v3233, %v3236
        %vm3238 = vcmp.lt.s32.totalorder %v3237, 0
        %v3239 = vsub.s32 0, %v3237
        %v3240 = vsel %vm3238, %v3239, %v3237
        %v3241 = vclz %v3240
        %v3242 = vsub.s32 %v3241, 2
        %vm3243 = vcmp.gt.s32.totalorder 0, %v3242
        %v3244 = vsel %vm3243, 0, %v3242
        %v3245 = vsub.s32 32, %v3244
        %v3246 = vshll.u32 %v3237, %v3244
        %v3247 = vshrl.u32 %v3229, %v3245
        %v3248 = vor.u32 %v3246, %v3247
        %v3249 = vsub.s32 4294967266, %v3244
        %v3250 = vadd.s32 %v3249, 127
        %v3251 = vshll.u32 %v3250, 23
        %v3252 = vor.u32 4788187, %v3251
        %v3253 = vand.u32 2147483647, %v3252
        %v3255 = vcvt.s32.f32 %v3248
        %v3256 = vmul.f32 %v3255, %v3253
        %v3257 = vxor.u32 %v3256, 2147483648
        %v3258 = vsel %vm3175, %v3257, %v3256
        %v3259 = vsub.s32 4, %v3235
        %v3260 = vsel %vm3175, %v3259, %v3235
        %v3261 = vsel %vm3174, %v2443, %v3258
        %v3262 = vsel %vm3174, 0, %v3260
        %v3263 = vcosq.f32.pop %v3261
        %v3264 = vsinq.f32.pop %v3261
        %vm3265 = vweird.f32 %v2443
        %v3266 = vadd.s32 %v3262, 3
        %v3267 = vand.u32 %v3266, 3
        %vm3268 = vcmp.lt.s32.totalorder %v3267, 2
        %vm3269 = vcmp.eq.s32.totalorder %v3267, 0
        %v3270 = vxor.u32 %v3264, 2147483648
        %v3271 = vsel %vm3269, %v3263, %v3270
        %vm3272 = vcmp.eq.s32.totalorder %v3267, 2
        %v3273 = vxor.u32 %v3263, 2147483648
        %v3274 = vsel %vm3272, %v3273, %v3264
        %v3275 = vsel %vm3268, %v3271, %v3274
        %v3276 = vsel %vm3265, nan, %v3275
        %v3277 = vld [vmem:[%s7] sm:$0xff]
        %v3278 = vld [vmem:[%s7 + $0x8] sm:$0xff]
        %v3279 = vld [vmem:[%s7 + $0x10] sm:$0xff]
        %v3280 = vld [vmem:[%s7 + $0x18] sm:$0xff]
        %v3281 = vld [vmem:[%s8] sm:$0xff]
        %v3282 = vld [vmem:[%s8 + $0x8] sm:$0xff]
        %v3283 = vld [vmem:[%s8 + $0x10] sm:$0xff]
        %v3284 = vld [vmem:[%s8 + $0x18] sm:$0xff]
        %3286 = vset.pattern.permute.xlu0 0
        %3287 = vperm.xlu0 %3286, %v3281
        %v3288 = vpop.permute.xlu0 %3287
        %3291 = vset.pattern.permute.xlu0 0
        %3292 = vperm.xlu0 %3291, %v3282
        %v3293 = vpop.permute.xlu0 %3292
        %3296 = vset.pattern.permute.xlu0 0
        %3297 = vperm.xlu0 %3296, %v3283
        %v3298 = vpop.permute.xlu0 %3297
        %3301 = vset.pattern.permute.xlu0 0
        %3302 = vperm.xlu0 %3301, %v3284
        %v3303 = vpop.permute.xlu0 %3302
        %v3306 = vsel %vm1382, %v3277, 0
        %v3309 = vsel %vm1382, %v3278, 0
        %v3312 = vsel %vm1382, %v3279, 0
        %v3315 = vsel %vm1382, %v3280, 0
        %3317 = vmatprep.subr.mxu0 %v2652
        %3318 = vmatpush1.msra.mxu0 %v2548
        %3319 = vmatprep.subr.mxu0 %v2860
        %3320 = vmatpush1.msra.mxu0 %v2756
        %3321 = vmatprep.subr.mxu0 %v3068
        %3322 = vmatpush1.msra.mxu0 %v2964
        %3323 = vmatprep.subr.mxu0 %v3276
        %3324 = vmatpush1.msra.mxu0 %v3172
        %3325 = vmatprep.subr.mxu0 0.0
        %3326 = vmatpush1.msra.mxu0 0.0
        %3327 = vmatprep.subr.mxu0 0.0
        %3328 = vmatpush1.msra.mxu0 0.0
        %3329 = vmatprep.subr.mxu0 0.0
        %3330 = vmatpush1.msra.mxu0 0.0
        %3331 = vmatprep.subr.mxu0 0.0
        %3332 = vmatpush1.msra.mxu0 0.0
        %3333 = vmatprep.subr.mxu0 0.0
        %3334 = vmatpush1.msra.mxu0 0.0
        %3335 = vmatprep.subr.mxu0 0.0
        %3336 = vmatpush1.msra.mxu0 0.0
        %3337 = vmatprep.subr.mxu0 0.0
        %3338 = vmatpush1.msra.mxu0 0.0
        %3339 = vmatprep.subr.mxu0 0.0
        %3340 = vmatpush1.msra.mxu0 0.0
        %3341 = vmatprep.subr.mxu0 0.0
        %3342 = vmatpush1.msra.mxu0 0.0
        %3343 = vmatprep.subr.mxu0 0.0
        %3344 = vmatpush1.msra.mxu0 0.0
        %3345 = vmatprep.subr.mxu0 0.0
        %3346 = vmatpush1.msra.mxu0 0.0
        %3347 = vmatprep.subr.mxu0 0.0
        %3348 = vmatpush1.msra.mxu0 0.0
        %3349 = vmatprep.subr.mxu0 0.0
        %3350 = vmatpush1.msra.mxu0 0.0
        %3351 = vmatprep.subr.mxu0 0.0
        %3352 = vmatpush1.msra.mxu0 0.0
        %3353 = vmatprep.subr.mxu0 0.0
        %3354 = vmatpush1.msra.mxu0 0.0
        %3355 = vmatprep.subr.mxu0 0.0
        %3356 = vmatpush1.msra.mxu0 0.0
        %3357 = vmatprep.subr.mxu0 0.0
        %3358 = vmatpush1.msra.mxu0 0.0
        %3359 = vmatprep.subr.mxu0 0.0
        %3360 = vmatpush1.msra.mxu0 0.0
        %3361 = vmatprep.subr.mxu0 0.0
        %3362 = vmatpush1.msra.mxu0 0.0
        %3363 = vmatprep.subr.mxu0 0.0
        %3364 = vmatpush1.msra.mxu0 0.0
        %3365 = vmatprep.subr.mxu0 0.0
        %3366 = vmatpush1.msra.mxu0 0.0
        %3367 = vmatprep.subr.mxu0 0.0
        %3368 = vmatpush1.msra.mxu0 0.0
        %3369 = vmatprep.subr.mxu0 0.0
        %3370 = vmatpush1.msra.mxu0 0.0
        %3371 = vmatprep.subr.mxu0 0.0
        %3372 = vmatpush1.msra.mxu0 0.0
        %3373 = vmatprep.subr.mxu0 0.0
        %3374 = vmatpush1.msra.mxu0 0.0
        %3375 = vmatprep.subr.mxu0 0.0
        %3376 = vmatpush1.msra.mxu0 0.0
        %3377 = vmatprep.subr.mxu0 0.0
        %3378 = vmatpush1.msra.mxu0 0.0
        %3379 = vmatprep.subr.mxu0 0.0
        %3380 = vmatpush1.msra.mxu0 0.0
        %3381 = vmatprep.mubr.f32.mxu0 0.0
        %3382 = vmatmul.mubr.f32.gmra.mrb[0].mxu0 %v3306
        %v3383 = vpop.f32.mrb[0].mxu0
        %v3384 = vadd.f32 %v3288, %v3383
        %v3385 = vpop.f32.mrb[0].mxu0
        %v3386 = vadd.f32 %v3288, %v3385
        %3387 = vmatprep.mubr.f32.mxu0 0.0
        %3388 = vmatmul.mubr.f32.gmra.mrb[0].mxu0 %v3309
        %v3389 = vpop.f32.mrb[0].mxu0
        %v3390 = vadd.f32 %v3293, %v3389
        %v3391 = vpop.f32.mrb[0].mxu0
        %v3392 = vadd.f32 %v3293, %v3391
        %3393 = vmatprep.mubr.f32.mxu0 0.0
        %3394 = vmatmul.mubr.f32.gmra.mrb[0].mxu0 %v3312
        %v3395 = vpop.f32.mrb[0].mxu0
        %v3396 = vadd.f32 %v3298, %v3395
        %v3397 = vpop.f32.mrb[0].mxu0
        %v3398 = vadd.f32 %v3298, %v3397
        %3399 = vmatprep.mubr.f32.mxu0 0.0
        %3400 = vmatmul.mubr.f32.gmra.mrb[0].mxu0 %v3315
        %v3401 = vpop.f32.mrb[0].mxu0
        %v3402 = vadd.f32 %v3303, %v3401
        %v3403 = vpop.f32.mrb[0].mxu0
        %v3404 = vadd.f32 %v3303, %v3403
        %3405 = vdwg.mxu0
        %v3406 = vand.u32 2147483647, %v3384
        %vm3407 = vcmp.le.f32.partialorder %v3406, 0.7853982
        %vm3408 = vcmp.lt.s32.totalorder %v3384, 0
        %v3409 = vand.u32 %v3384, 2139095040
        %v3410 = vshrl.u32 %v3409, 23
        %v3411 = vsub.s32 %v3410, 127
        %v3412 = vand.u32 2147483647, %v3384
        %v3413 = vand.u32 %v3412, 8388607
        %v3414 = vor.u32 %v3413, 8388608
        %v3415 = vsub.s32 0, %v3414
        %v3416 = vadd.s32 %v3411, 1
        %vm3417 = vcmp.gt.s32.totalorder %v3416, 0
        %v3418 = vsel %vm3417, %v3416, 0
        %v3419 = vshrl.u32 %v3418, 5
        %v3420 = vand.u32 %v3418, 31
        %v3421 = vsub.s32 32, %v3420
        %v3422 = vshrl.u32 683565275, %v3421
        %v3423 = vshll.u32 683565275, %v3420
        %v3424 = vshrl.u32 2475754826, %v3421
        %v3425 = vor.u32 %v3423, %v3424
        %v3426 = vshll.u32 2475754826, %v3420
        %v3427 = vshrl.u32 2131351028, %v3421
        %v3428 = vor.u32 %v3426, %v3427
        %v3429 = vshll.u32 2131351028, %v3420
        %v3430 = vshrl.u32 2102212464, %v3421
        %v3431 = vor.u32 %v3429, %v3430
        %v3432 = vshll.u32 2102212464, %v3420
        %v3433 = vshrl.u32 920167782, %v3421
        %v3434 = vor.u32 %v3432, %v3433
        %v3435 = vshll.u32 920167782, %v3420
        %v3436 = vshrl.u32 1326507024, %v3421
        %v3437 = vor.u32 %v3435, %v3436
        %vm3438 = vcmp.lt.s32.totalorder %v3419, 1
        %vm3439 = vcmp.lt.s32.totalorder %v3419, 2
        %vm3440 = vcmp.lt.s32.totalorder %v3419, 3
        %vm3441 = vcmp.lt.s32.totalorder %v3419, 4
        %v3442 = vsel %vm3438, %v3422, %v3425
        %v3443 = vsel %vm3441, %v3431, 2102212464
        %v3444 = vsel %vm3440, %v3428, %v3443
        %v3445 = vsel %vm3439, %v3442, %v3444
        %v3446 = vsel %vm3438, %v3425, %v3428
        %v3447 = vsel %vm3441, %v3434, 920167782
        %v3448 = vsel %vm3440, %v3431, %v3447
        %v3449 = vsel %vm3439, %v3446, %v3448
        %v3450 = vsel %vm3438, %v3428, %v3431
        %v3451 = vsel %vm3441, %v3437, 1326507024
        %v3452 = vsel %vm3440, %v3434, %v3451
        %v3453 = vsel %vm3439, %v3450, %v3452
        %v3454 = vshll.u32 %v3414, 8
        %v3455 = vmul.u32.u64.compose %v3454, %v3453
        %v3456 = vextract.low.u32 %v3455
        %v3457 = vextract.high.u32 %v3455
        %v3458 = vmul.u32.u64.compose %v3454, %v3449
        %v3459 = vextract.low.u32 %v3458
        %v3460 = vextract.high.u32 %v3458
        %v3461 = vmul.u32 %v3454, %v3445
        %v3462 = vadd.s32 %v3457, %v3459
        %vm3463 = vc.u32 %v3457, %v3459
        %v3464 = vadd.s32 %v3460, 1
        %v3465 = vsel %vm3463, %v3464, %v3460
        %v3466 = vadd.s32 %v3461, %v3465
        %v3467 = vadd.s32 %v3466, 536870912
        %v3468 = vshrl.u32 %v3467, 30
        %v3469 = vshll.u32 %v3468, 30
        %v3470 = vsub.s32 %v3466, %v3469
        %vm3471 = vcmp.lt.s32.totalorder %v3470, 0
        %v3472 = vsub.s32 0, %v3470
        %v3473 = vsel %vm3471, %v3472, %v3470
        %v3474 = vclz %v3473
        %v3475 = vsub.s32 %v3474, 2
        %vm3476 = vcmp.gt.s32.totalorder 0, %v3475
        %v3477 = vsel %vm3476, 0, %v3475
        %v3478 = vsub.s32 32, %v3477
        %v3479 = vshll.u32 %v3470, %v3477
        %v3480 = vshrl.u32 %v3462, %v3478
        %v3481 = vor.u32 %v3479, %v3480
        %v3482 = vsub.s32 4294967266, %v3477
        %v3483 = vadd.s32 %v3482, 127
        %v3484 = vshll.u32 %v3483, 23
        %v3485 = vor.u32 4788187, %v3484
        %v3486 = vand.u32 2147483647, %v3485
        %v3488 = vcvt.s32.f32 %v3481
        %v3489 = vmul.f32 %v3488, %v3486
        %v3490 = vxor.u32 %v3489, 2147483648
        %v3491 = vsel %vm3408, %v3490, %v3489
        %v3492 = vsub.s32 4, %v3468
        %v3493 = vsel %vm3408, %v3492, %v3468
        %v3494 = vsel %vm3407, %v3384, %v3491
        %v3495 = vsel %vm3407, 0, %v3493
        %v3496 = vcosq.f32.pop %v3494
        %v3497 = vsinq.f32.pop %v3494
        %vm3498 = vweird.f32 %v3384
        %v3499 = vadd.s32 %v3495, 3
        %v3500 = vand.u32 %v3499, 3
        %vm3501 = vcmp.lt.s32.totalorder %v3500, 2
        %vm3502 = vcmp.eq.s32.totalorder %v3500, 0
        %v3503 = vxor.u32 %v3497, 2147483648
        %v3504 = vsel %vm3502, %v3496, %v3503
        %vm3505 = vcmp.eq.s32.totalorder %v3500, 2
        %v3506 = vxor.u32 %v3496, 2147483648
        %v3507 = vsel %vm3505, %v3506, %v3497
        %v3508 = vsel %vm3501, %v3504, %v3507
        %v3509 = vsel %vm3498, nan, %v3508
        %v3510 = vand.u32 2147483647, %v3386
        %vm3511 = vcmp.le.f32.partialorder %v3510, 0.7853982
        %vm3512 = vcmp.lt.s32.totalorder %v3386, 0
        %v3513 = vand.u32 %v3386, 2139095040
        %v3514 = vshrl.u32 %v3513, 23
        %v3515 = vsub.s32 %v3514, 127
        %v3516 = vand.u32 2147483647, %v3386
        %v3517 = vand.u32 %v3516, 8388607
        %v3518 = vor.u32 %v3517, 8388608
        %v3519 = vsub.s32 0, %v3518
        %v3520 = vadd.s32 %v3515, 1
        %vm3521 = vcmp.gt.s32.totalorder %v3520, 0
        %v3522 = vsel %vm3521, %v3520, 0
        %v3523 = vshrl.u32 %v3522, 5
        %v3524 = vand.u32 %v3522, 31
        %v3525 = vsub.s32 32, %v3524
        %v3526 = vshrl.u32 683565275, %v3525
        %v3527 = vshll.u32 683565275, %v3524
        %v3528 = vshrl.u32 2475754826, %v3525
        %v3529 = vor.u32 %v3527, %v3528
        %v3530 = vshll.u32 2475754826, %v3524
        %v3531 = vshrl.u32 2131351028, %v3525
        %v3532 = vor.u32 %v3530, %v3531
        %v3533 = vshll.u32 2131351028, %v3524
        %v3534 = vshrl.u32 2102212464, %v3525
        %v3535 = vor.u32 %v3533, %v3534
        %v3536 = vshll.u32 2102212464, %v3524
        %v3537 = vshrl.u32 920167782, %v3525
        %v3538 = vor.u32 %v3536, %v3537
        %v3539 = vshll.u32 920167782, %v3524
        %v3540 = vshrl.u32 1326507024, %v3525
        %v3541 = vor.u32 %v3539, %v3540
        %vm3542 = vcmp.lt.s32.totalorder %v3523, 1
        %vm3543 = vcmp.lt.s32.totalorder %v3523, 2
        %vm3544 = vcmp.lt.s32.totalorder %v3523, 3
        %vm3545 = vcmp.lt.s32.totalorder %v3523, 4
        %v3546 = vsel %vm3542, %v3526, %v3529
        %v3547 = vsel %vm3545, %v3535, 2102212464
        %v3548 = vsel %vm3544, %v3532, %v3547
        %v3549 = vsel %vm3543, %v3546, %v3548
        %v3550 = vsel %vm3542, %v3529, %v3532
        %v3551 = vsel %vm3545, %v3538, 920167782
        %v3552 = vsel %vm3544, %v3535, %v3551
        %v3553 = vsel %vm3543, %v3550, %v3552
        %v3554 = vsel %vm3542, %v3532, %v3535
        %v3555 = vsel %vm3545, %v3541, 1326507024
        %v3556 = vsel %vm3544, %v3538, %v3555
        %v3557 = vsel %vm3543, %v3554, %v3556
        %v3558 = vshll.u32 %v3518, 8
        %v3559 = vmul.u32.u64.compose %v3558, %v3557
        %v3560 = vextract.low.u32 %v3559
        %v3561 = vextract.high.u32 %v3559
        %v3562 = vmul.u32.u64.compose %v3558, %v3553
        %v3563 = vextract.low.u32 %v3562
        %v3564 = vextract.high.u32 %v3562
        %v3565 = vmul.u32 %v3558, %v3549
        %v3566 = vadd.s32 %v3561, %v3563
        %vm3567 = vc.u32 %v3561, %v3563
        %v3568 = vadd.s32 %v3564, 1
        %v3569 = vsel %vm3567, %v3568, %v3564
        %v3570 = vadd.s32 %v3565, %v3569
        %v3571 = vadd.s32 %v3570, 536870912
        %v3572 = vshrl.u32 %v3571, 30
        %v3573 = vshll.u32 %v3572, 30
        %v3574 = vsub.s32 %v3570, %v3573
        %vm3575 = vcmp.lt.s32.totalorder %v3574, 0
        %v3576 = vsub.s32 0, %v3574
        %v3577 = vsel %vm3575, %v3576, %v3574
        %v3578 = vclz %v3577
        %v3579 = vsub.s32 %v3578, 2
        %vm3580 = vcmp.gt.s32.totalorder 0, %v3579
        %v3581 = vsel %vm3580, 0, %v3579
        %v3582 = vsub.s32 32, %v3581
        %v3583 = vshll.u32 %v3574, %v3581
        %v3584 = vshrl.u32 %v3566, %v3582
        %v3585 = vor.u32 %v3583, %v3584
        %v3586 = vsub.s32 4294967266, %v3581
        %v3587 = vadd.s32 %v3586, 127
        %v3588 = vshll.u32 %v3587, 23
        %v3589 = vor.u32 4788187, %v3588
        %v3590 = vand.u32 2147483647, %v3589
        %v3592 = vcvt.s32.f32 %v3585
        %v3593 = vmul.f32 %v3592, %v3590
        %v3594 = vxor.u32 %v3593, 2147483648
        %v3595 = vsel %vm3512, %v3594, %v3593
        %v3596 = vsub.s32 4, %v3572
        %v3597 = vsel %vm3512, %v3596, %v3572
        %v3598 = vsel %vm3511, %v3386, %v3595
        %v3599 = vsel %vm3511, 0, %v3597
        %v3600 = vcosq.f32.pop %v3598
        %v3601 = vsinq.f32.pop %v3598
        %vm3602 = vweird.f32 %v3386
        %v3603 = vadd.s32 %v3599, 3
        %v3604 = vand.u32 %v3603, 3
        %vm3605 = vcmp.lt.s32.totalorder %v3604, 2
        %vm3606 = vcmp.eq.s32.totalorder %v3604, 0
        %v3607 = vxor.u32 %v3601, 2147483648
        %v3608 = vsel %vm3606, %v3600, %v3607
        %vm3609 = vcmp.eq.s32.totalorder %v3604, 2
        %v3610 = vxor.u32 %v3600, 2147483648
        %v3611 = vsel %vm3609, %v3610, %v3601
        %v3612 = vsel %vm3605, %v3608, %v3611
        %v3613 = vsel %vm3602, nan, %v3612
        %v3614 = vand.u32 2147483647, %v3390
        %vm3615 = vcmp.le.f32.partialorder %v3614, 0.7853982
        %vm3616 = vcmp.lt.s32.totalorder %v3390, 0
        %v3617 = vand.u32 %v3390, 2139095040
        %v3618 = vshrl.u32 %v3617, 23
        %v3619 = vsub.s32 %v3618, 127
        %v3620 = vand.u32 2147483647, %v3390
        %v3621 = vand.u32 %v3620, 8388607
        %v3622 = vor.u32 %v3621, 8388608
        %v3623 = vsub.s32 0, %v3622
        %v3624 = vadd.s32 %v3619, 1
        %vm3625 = vcmp.gt.s32.totalorder %v3624, 0
        %v3626 = vsel %vm3625, %v3624, 0
        %v3627 = vshrl.u32 %v3626, 5
        %v3628 = vand.u32 %v3626, 31
        %v3629 = vsub.s32 32, %v3628
        %v3630 = vshrl.u32 683565275, %v3629
        %v3631 = vshll.u32 683565275, %v3628
        %v3632 = vshrl.u32 2475754826, %v3629
        %v3633 = vor.u32 %v3631, %v3632
        %v3634 = vshll.u32 2475754826, %v3628
        %v3635 = vshrl.u32 2131351028, %v3629
        %v3636 = vor.u32 %v3634, %v3635
        %v3637 = vshll.u32 2131351028, %v3628
        %v3638 = vshrl.u32 2102212464, %v3629
        %v3639 = vor.u32 %v3637, %v3638
        %v3640 = vshll.u32 2102212464, %v3628
        %v3641 = vshrl.u32 920167782, %v3629
        %v3642 = vor.u32 %v3640, %v3641
        %v3643 = vshll.u32 920167782, %v3628
        %v3644 = vshrl.u32 1326507024, %v3629
        %v3645 = vor.u32 %v3643, %v3644
        %vm3646 = vcmp.lt.s32.totalorder %v3627, 1
        %vm3647 = vcmp.lt.s32.totalorder %v3627, 2
        %vm3648 = vcmp.lt.s32.totalorder %v3627, 3
        %vm3649 = vcmp.lt.s32.totalorder %v3627, 4
        %v3650 = vsel %vm3646, %v3630, %v3633
        %v3651 = vsel %vm3649, %v3639, 2102212464
        %v3652 = vsel %vm3648, %v3636, %v3651
        %v3653 = vsel %vm3647, %v3650, %v3652
        %v3654 = vsel %vm3646, %v3633, %v3636
        %v3655 = vsel %vm3649, %v3642, 920167782
        %v3656 = vsel %vm3648, %v3639, %v3655
        %v3657 = vsel %vm3647, %v3654, %v3656
        %v3658 = vsel %vm3646, %v3636, %v3639
        %v3659 = vsel %vm3649, %v3645, 1326507024
        %v3660 = vsel %vm3648, %v3642, %v3659
        %v3661 = vsel %vm3647, %v3658, %v3660
        %v3662 = vshll.u32 %v3622, 8
        %v3663 = vmul.u32.u64.compose %v3662, %v3661
        %v3664 = vextract.low.u32 %v3663
        %v3665 = vextract.high.u32 %v3663
        %v3666 = vmul.u32.u64.compose %v3662, %v3657
        %v3667 = vextract.low.u32 %v3666
        %v3668 = vextract.high.u32 %v3666
        %v3669 = vmul.u32 %v3662, %v3653
        %v3670 = vadd.s32 %v3665, %v3667
        %vm3671 = vc.u32 %v3665, %v3667
        %v3672 = vadd.s32 %v3668, 1
        %v3673 = vsel %vm3671, %v3672, %v3668
        %v3674 = vadd.s32 %v3669, %v3673
        %v3675 = vadd.s32 %v3674, 536870912
        %v3676 = vshrl.u32 %v3675, 30
        %v3677 = vshll.u32 %v3676, 30
        %v3678 = vsub.s32 %v3674, %v3677
        %vm3679 = vcmp.lt.s32.totalorder %v3678, 0
        %v3680 = vsub.s32 0, %v3678
        %v3681 = vsel %vm3679, %v3680, %v3678
        %v3682 = vclz %v3681
        %v3683 = vsub.s32 %v3682, 2
        %vm3684 = vcmp.gt.s32.totalorder 0, %v3683
        %v3685 = vsel %vm3684, 0, %v3683
        %v3686 = vsub.s32 32, %v3685
        %v3687 = vshll.u32 %v3678, %v3685
        %v3688 = vshrl.u32 %v3670, %v3686
        %v3689 = vor.u32 %v3687, %v3688
        %v3690 = vsub.s32 4294967266, %v3685
        %v3691 = vadd.s32 %v3690, 127
        %v3692 = vshll.u32 %v3691, 23
        %v3693 = vor.u32 4788187, %v3692
        %v3694 = vand.u32 2147483647, %v3693
        %v3696 = vcvt.s32.f32 %v3689
        %v3697 = vmul.f32 %v3696, %v3694
        %v3698 = vxor.u32 %v3697, 2147483648
        %v3699 = vsel %vm3616, %v3698, %v3697
        %v3700 = vsub.s32 4, %v3676
        %v3701 = vsel %vm3616, %v3700, %v3676
        %v3702 = vsel %vm3615, %v3390, %v3699
        %v3703 = vsel %vm3615, 0, %v3701
        %v3704 = vcosq.f32.pop %v3702
        %v3705 = vsinq.f32.pop %v3702
        %vm3706 = vweird.f32 %v3390
        %v3707 = vadd.s32 %v3703, 3
        %v3708 = vand.u32 %v3707, 3
        %vm3709 = vcmp.lt.s32.totalorder %v3708, 2
        %vm3710 = vcmp.eq.s32.totalorder %v3708, 0
        %v3711 = vxor.u32 %v3705, 2147483648
        %v3712 = vsel %vm3710, %v3704, %v3711
        %vm3713 = vcmp.eq.s32.totalorder %v3708, 2
        %v3714 = vxor.u32 %v3704, 2147483648
        %v3715 = vsel %vm3713, %v3714, %v3705
        %v3716 = vsel %vm3709, %v3712, %v3715
        %v3717 = vsel %vm3706, nan, %v3716
        %v3718 = vand.u32 2147483647, %v3392
        %vm3719 = vcmp.le.f32.partialorder %v3718, 0.7853982
        %vm3720 = vcmp.lt.s32.totalorder %v3392, 0
        %v3721 = vand.u32 %v3392, 2139095040
        %v3722 = vshrl.u32 %v3721, 23
        %v3723 = vsub.s32 %v3722, 127
        %v3724 = vand.u32 2147483647, %v3392
        %v3725 = vand.u32 %v3724, 8388607
        %v3726 = vor.u32 %v3725, 8388608
        %v3727 = vsub.s32 0, %v3726
        %v3728 = vadd.s32 %v3723, 1
        %vm3729 = vcmp.gt.s32.totalorder %v3728, 0
        %v3730 = vsel %vm3729, %v3728, 0
        %v3731 = vshrl.u32 %v3730, 5
        %v3732 = vand.u32 %v3730, 31
        %v3733 = vsub.s32 32, %v3732
        %v3734 = vshrl.u32 683565275, %v3733
        %v3735 = vshll.u32 683565275, %v3732
        %v3736 = vshrl.u32 2475754826, %v3733
        %v3737 = vor.u32 %v3735, %v3736
        %v3738 = vshll.u32 2475754826, %v3732
        %v3739 = vshrl.u32 2131351028, %v3733
        %v3740 = vor.u32 %v3738, %v3739
        %v3741 = vshll.u32 2131351028, %v3732
        %v3742 = vshrl.u32 2102212464, %v3733
        %v3743 = vor.u32 %v3741, %v3742
        %v3744 = vshll.u32 2102212464, %v3732
        %v3745 = vshrl.u32 920167782, %v3733
        %v3746 = vor.u32 %v3744, %v3745
        %v3747 = vshll.u32 920167782, %v3732
        %v3748 = vshrl.u32 1326507024, %v3733
        %v3749 = vor.u32 %v3747, %v3748
        %vm3750 = vcmp.lt.s32.totalorder %v3731, 1
        %vm3751 = vcmp.lt.s32.totalorder %v3731, 2
        %vm3752 = vcmp.lt.s32.totalorder %v3731, 3
        %vm3753 = vcmp.lt.s32.totalorder %v3731, 4
        %v3754 = vsel %vm3750, %v3734, %v3737
        %v3755 = vsel %vm3753, %v3743, 2102212464
        %v3756 = vsel %vm3752, %v3740, %v3755
        %v3757 = vsel %vm3751, %v3754, %v3756
        %v3758 = vsel %vm3750, %v3737, %v3740
        %v3759 = vsel %vm3753, %v3746, 920167782
        %v3760 = vsel %vm3752, %v3743, %v3759
        %v3761 = vsel %vm3751, %v3758, %v3760
        %v3762 = vsel %vm3750, %v3740, %v3743
        %v3763 = vsel %vm3753, %v3749, 1326507024
        %v3764 = vsel %vm3752, %v3746, %v3763
        %v3765 = vsel %vm3751, %v3762, %v3764
        %v3766 = vshll.u32 %v3726, 8
        %v3767 = vmul.u32.u64.compose %v3766, %v3765
        %v3768 = vextract.low.u32 %v3767
        %v3769 = vextract.high.u32 %v3767
        %v3770 = vmul.u32.u64.compose %v3766, %v3761
        %v3771 = vextract.low.u32 %v3770
        %v3772 = vextract.high.u32 %v3770
        %v3773 = vmul.u32 %v3766, %v3757
        %v3774 = vadd.s32 %v3769, %v3771
        %vm3775 = vc.u32 %v3769, %v3771
        %v3776 = vadd.s32 %v3772, 1
        %v3777 = vsel %vm3775, %v3776, %v3772
        %v3778 = vadd.s32 %v3773, %v3777
        %v3779 = vadd.s32 %v3778, 536870912
        %v3780 = vshrl.u32 %v3779, 30
        %v3781 = vshll.u32 %v3780, 30
        %v3782 = vsub.s32 %v3778, %v3781
        %vm3783 = vcmp.lt.s32.totalorder %v3782, 0
        %v3784 = vsub.s32 0, %v3782
        %v3785 = vsel %vm3783, %v3784, %v3782
        %v3786 = vclz %v3785
        %v3787 = vsub.s32 %v3786, 2
        %vm3788 = vcmp.gt.s32.totalorder 0, %v3787
        %v3789 = vsel %vm3788, 0, %v3787
        %v3790 = vsub.s32 32, %v3789
        %v3791 = vshll.u32 %v3782, %v3789
        %v3792 = vshrl.u32 %v3774, %v3790
        %v3793 = vor.u32 %v3791, %v3792
        %v3794 = vsub.s32 4294967266, %v3789
        %v3795 = vadd.s32 %v3794, 127
        %v3796 = vshll.u32 %v3795, 23
        %v3797 = vor.u32 4788187, %v3796
        %v3798 = vand.u32 2147483647, %v3797
        %v3800 = vcvt.s32.f32 %v3793
        %v3801 = vmul.f32 %v3800, %v3798
        %v3802 = vxor.u32 %v3801, 2147483648
        %v3803 = vsel %vm3720, %v3802, %v3801
        %v3804 = vsub.s32 4, %v3780
        %v3805 = vsel %vm3720, %v3804, %v3780
        %v3806 = vsel %vm3719, %v3392, %v3803
        %v3807 = vsel %vm3719, 0, %v3805
        %v3808 = vcosq.f32.pop %v3806
        %v3809 = vsinq.f32.pop %v3806
        %vm3810 = vweird.f32 %v3392
        %v3811 = vadd.s32 %v3807, 3
        %v3812 = vand.u32 %v3811, 3
        %vm3813 = vcmp.lt.s32.totalorder %v3812, 2
        %vm3814 = vcmp.eq.s32.totalorder %v3812, 0
        %v3815 = vxor.u32 %v3809, 2147483648
        %v3816 = vsel %vm3814, %v3808, %v3815
        %vm3817 = vcmp.eq.s32.totalorder %v3812, 2
        %v3818 = vxor.u32 %v3808, 2147483648
        %v3819 = vsel %vm3817, %v3818, %v3809
        %v3820 = vsel %vm3813, %v3816, %v3819
        %v3821 = vsel %vm3810, nan, %v3820
        %v3822 = vand.u32 2147483647, %v3396
        %vm3823 = vcmp.le.f32.partialorder %v3822, 0.7853982
        %vm3824 = vcmp.lt.s32.totalorder %v3396, 0
        %v3825 = vand.u32 %v3396, 2139095040
        %v3826 = vshrl.u32 %v3825, 23
        %v3827 = vsub.s32 %v3826, 127
        %v3828 = vand.u32 2147483647, %v3396
        %v3829 = vand.u32 %v3828, 8388607
        %v3830 = vor.u32 %v3829, 8388608
        %v3831 = vsub.s32 0, %v3830
        %v3832 = vadd.s32 %v3827, 1
        %vm3833 = vcmp.gt.s32.totalorder %v3832, 0
        %v3834 = vsel %vm3833, %v3832, 0
        %v3835 = vshrl.u32 %v3834, 5
        %v3836 = vand.u32 %v3834, 31
        %v3837 = vsub.s32 32, %v3836
        %v3838 = vshrl.u32 683565275, %v3837
        %v3839 = vshll.u32 683565275, %v3836
        %v3840 = vshrl.u32 2475754826, %v3837
        %v3841 = vor.u32 %v3839, %v3840
        %v3842 = vshll.u32 2475754826, %v3836
        %v3843 = vshrl.u32 2131351028, %v3837
        %v3844 = vor.u32 %v3842, %v3843
        %v3845 = vshll.u32 2131351028, %v3836
        %v3846 = vshrl.u32 2102212464, %v3837
        %v3847 = vor.u32 %v3845, %v3846
        %v3848 = vshll.u32 2102212464, %v3836
        %v3849 = vshrl.u32 920167782, %v3837
        %v3850 = vor.u32 %v3848, %v3849
        %v3851 = vshll.u32 920167782, %v3836
        %v3852 = vshrl.u32 1326507024, %v3837
        %v3853 = vor.u32 %v3851, %v3852
        %vm3854 = vcmp.lt.s32.totalorder %v3835, 1
        %vm3855 = vcmp.lt.s32.totalorder %v3835, 2
        %vm3856 = vcmp.lt.s32.totalorder %v3835, 3
        %vm3857 = vcmp.lt.s32.totalorder %v3835, 4
        %v3858 = vsel %vm3854, %v3838, %v3841
        %v3859 = vsel %vm3857, %v3847, 2102212464
        %v3860 = vsel %vm3856, %v3844, %v3859
        %v3861 = vsel %vm3855, %v3858, %v3860
        %v3862 = vsel %vm3854, %v3841, %v3844
        %v3863 = vsel %vm3857, %v3850, 920167782
        %v3864 = vsel %vm3856, %v3847, %v3863
        %v3865 = vsel %vm3855, %v3862, %v3864
        %v3866 = vsel %vm3854, %v3844, %v3847
        %v3867 = vsel %vm3857, %v3853, 1326507024
        %v3868 = vsel %vm3856, %v3850, %v3867
        %v3869 = vsel %vm3855, %v3866, %v3868
        %v3870 = vshll.u32 %v3830, 8
        %v3871 = vmul.u32.u64.compose %v3870, %v3869
        %v3872 = vextract.low.u32 %v3871
        %v3873 = vextract.high.u32 %v3871
        %v3874 = vmul.u32.u64.compose %v3870, %v3865
        %v3875 = vextract.low.u32 %v3874
        %v3876 = vextract.high.u32 %v3874
        %v3877 = vmul.u32 %v3870, %v3861
        %v3878 = vadd.s32 %v3873, %v3875
        %vm3879 = vc.u32 %v3873, %v3875
        %v3880 = vadd.s32 %v3876, 1
        %v3881 = vsel %vm3879, %v3880, %v3876
        %v3882 = vadd.s32 %v3877, %v3881
        %v3883 = vadd.s32 %v3882, 536870912
        %v3884 = vshrl.u32 %v3883, 30
        %v3885 = vshll.u32 %v3884, 30
        %v3886 = vsub.s32 %v3882, %v3885
        %vm3887 = vcmp.lt.s32.totalorder %v3886, 0
        %v3888 = vsub.s32 0, %v3886
        %v3889 = vsel %vm3887, %v3888, %v3886
        %v3890 = vclz %v3889
        %v3891 = vsub.s32 %v3890, 2
        %vm3892 = vcmp.gt.s32.totalorder 0, %v3891
        %v3893 = vsel %vm3892, 0, %v3891
        %v3894 = vsub.s32 32, %v3893
        %v3895 = vshll.u32 %v3886, %v3893
        %v3896 = vshrl.u32 %v3878, %v3894
        %v3897 = vor.u32 %v3895, %v3896
        %v3898 = vsub.s32 4294967266, %v3893
        %v3899 = vadd.s32 %v3898, 127
        %v3900 = vshll.u32 %v3899, 23
        %v3901 = vor.u32 4788187, %v3900
        %v3902 = vand.u32 2147483647, %v3901
        %v3904 = vcvt.s32.f32 %v3897
        %v3905 = vmul.f32 %v3904, %v3902
        %v3906 = vxor.u32 %v3905, 2147483648
        %v3907 = vsel %vm3824, %v3906, %v3905
        %v3908 = vsub.s32 4, %v3884
        %v3909 = vsel %vm3824, %v3908, %v3884
        %v3910 = vsel %vm3823, %v3396, %v3907
        %v3911 = vsel %vm3823, 0, %v3909
        %v3912 = vcosq.f32.pop %v3910
        %v3913 = vsinq.f32.pop %v3910
        %vm3914 = vweird.f32 %v3396
        %v3915 = vadd.s32 %v3911, 3
        %v3916 = vand.u32 %v3915, 3
        %vm3917 = vcmp.lt.s32.totalorder %v3916, 2
        %vm3918 = vcmp.eq.s32.totalorder %v3916, 0
        %v3919 = vxor.u32 %v3913, 2147483648
        %v3920 = vsel %vm3918, %v3912, %v3919
        %vm3921 = vcmp.eq.s32.totalorder %v3916, 2
        %v3922 = vxor.u32 %v3912, 2147483648
        %v3923 = vsel %vm3921, %v3922, %v3913
        %v3924 = vsel %vm3917, %v3920, %v3923
        %v3925 = vsel %vm3914, nan, %v3924
        %v3926 = vand.u32 2147483647, %v3398
        %vm3927 = vcmp.le.f32.partialorder %v3926, 0.7853982
        %vm3928 = vcmp.lt.s32.totalorder %v3398, 0
        %v3929 = vand.u32 %v3398, 2139095040
        %v3930 = vshrl.u32 %v3929, 23
        %v3931 = vsub.s32 %v3930, 127
        %v3932 = vand.u32 2147483647, %v3398
        %v3933 = vand.u32 %v3932, 8388607
        %v3934 = vor.u32 %v3933, 8388608
        %v3935 = vsub.s32 0, %v3934
        %v3936 = vadd.s32 %v3931, 1
        %vm3937 = vcmp.gt.s32.totalorder %v3936, 0
        %v3938 = vsel %vm3937, %v3936, 0
        %v3939 = vshrl.u32 %v3938, 5
        %v3940 = vand.u32 %v3938, 31
        %v3941 = vsub.s32 32, %v3940
        %v3942 = vshrl.u32 683565275, %v3941
        %v3943 = vshll.u32 683565275, %v3940
        %v3944 = vshrl.u32 2475754826, %v3941
        %v3945 = vor.u32 %v3943, %v3944
        %v3946 = vshll.u32 2475754826, %v3940
        %v3947 = vshrl.u32 2131351028, %v3941
        %v3948 = vor.u32 %v3946, %v3947
        %v3949 = vshll.u32 2131351028, %v3940
        %v3950 = vshrl.u32 2102212464, %v3941
        %v3951 = vor.u32 %v3949, %v3950
        %v3952 = vshll.u32 2102212464, %v3940
        %v3953 = vshrl.u32 920167782, %v3941
        %v3954 = vor.u32 %v3952, %v3953
        %v3955 = vshll.u32 920167782, %v3940
        %v3956 = vshrl.u32 1326507024, %v3941
        %v3957 = vor.u32 %v3955, %v3956
        %vm3958 = vcmp.lt.s32.totalorder %v3939, 1
        %vm3959 = vcmp.lt.s32.totalorder %v3939, 2
        %vm3960 = vcmp.lt.s32.totalorder %v3939, 3
        %vm3961 = vcmp.lt.s32.totalorder %v3939, 4
        %v3962 = vsel %vm3958, %v3942, %v3945
        %v3963 = vsel %vm3961, %v3951, 2102212464
        %v3964 = vsel %vm3960, %v3948, %v3963
        %v3965 = vsel %vm3959, %v3962, %v3964
        %v3966 = vsel %vm3958, %v3945, %v3948
        %v3967 = vsel %vm3961, %v3954, 920167782
        %v3968 = vsel %vm3960, %v3951, %v3967
        %v3969 = vsel %vm3959, %v3966, %v3968
        %v3970 = vsel %vm3958, %v3948, %v3951
        %v3971 = vsel %vm3961, %v3957, 1326507024
        %v3972 = vsel %vm3960, %v3954, %v3971
        %v3973 = vsel %vm3959, %v3970, %v3972
        %v3974 = vshll.u32 %v3934, 8
        %v3975 = vmul.u32.u64.compose %v3974, %v3973
        %v3976 = vextract.low.u32 %v3975
        %v3977 = vextract.high.u32 %v3975
        %v3978 = vmul.u32.u64.compose %v3974, %v3969
        %v3979 = vextract.low.u32 %v3978
        %v3980 = vextract.high.u32 %v3978
        %v3981 = vmul.u32 %v3974, %v3965
        %v3982 = vadd.s32 %v3977, %v3979
        %vm3983 = vc.u32 %v3977, %v3979
        %v3984 = vadd.s32 %v3980, 1
        %v3985 = vsel %vm3983, %v3984, %v3980
        %v3986 = vadd.s32 %v3981, %v3985
        %v3987 = vadd.s32 %v3986, 536870912
        %v3988 = vshrl.u32 %v3987, 30
        %v3989 = vshll.u32 %v3988, 30
        %v3990 = vsub.s32 %v3986, %v3989
        %vm3991 = vcmp.lt.s32.totalorder %v3990, 0
        %v3992 = vsub.s32 0, %v3990
        %v3993 = vsel %vm3991, %v3992, %v3990
        %v3994 = vclz %v3993
        %v3995 = vsub.s32 %v3994, 2
        %vm3996 = vcmp.gt.s32.totalorder 0, %v3995
        %v3997 = vsel %vm3996, 0, %v3995
        %v3998 = vsub.s32 32, %v3997
        %v3999 = vshll.u32 %v3990, %v3997
        %v4000 = vshrl.u32 %v3982, %v3998
        %v4001 = vor.u32 %v3999, %v4000
        %v4002 = vsub.s32 4294967266, %v3997
        %v4003 = vadd.s32 %v4002, 127
        %v4004 = vshll.u32 %v4003, 23
        %v4005 = vor.u32 4788187, %v4004
        %v4006 = vand.u32 2147483647, %v4005
        %v4008 = vcvt.s32.f32 %v4001
        %v4009 = vmul.f32 %v4008, %v4006
        %v4010 = vxor.u32 %v4009, 2147483648
        %v4011 = vsel %vm3928, %v4010, %v4009
        %v4012 = vsub.s32 4, %v3988
        %v4013 = vsel %vm3928, %v4012, %v3988
        %v4014 = vsel %vm3927, %v3398, %v4011
        %v4015 = vsel %vm3927, 0, %v4013
        %v4016 = vcosq.f32.pop %v4014
        %v4017 = vsinq.f32.pop %v4014
        %vm4018 = vweird.f32 %v3398
        %v4019 = vadd.s32 %v4015, 3
        %v4020 = vand.u32 %v4019, 3
        %vm4021 = vcmp.lt.s32.totalorder %v4020, 2
        %vm4022 = vcmp.eq.s32.totalorder %v4020, 0
        %v4023 = vxor.u32 %v4017, 2147483648
        %v4024 = vsel %vm4022, %v4016, %v4023
        %vm4025 = vcmp.eq.s32.totalorder %v4020, 2
        %v4026 = vxor.u32 %v4016, 2147483648
        %v4027 = vsel %vm4025, %v4026, %v4017
        %v4028 = vsel %vm4021, %v4024, %v4027
        %v4029 = vsel %vm4018, nan, %v4028
        %v4030 = vand.u32 2147483647, %v3402
        %vm4031 = vcmp.le.f32.partialorder %v4030, 0.7853982
        %vm4032 = vcmp.lt.s32.totalorder %v3402, 0
        %v4033 = vand.u32 %v3402, 2139095040
        %v4034 = vshrl.u32 %v4033, 23
        %v4035 = vsub.s32 %v4034, 127
        %v4036 = vand.u32 2147483647, %v3402
        %v4037 = vand.u32 %v4036, 8388607
        %v4038 = vor.u32 %v4037, 8388608
        %v4039 = vsub.s32 0, %v4038
        %v4040 = vadd.s32 %v4035, 1
        %vm4041 = vcmp.gt.s32.totalorder %v4040, 0
        %v4042 = vsel %vm4041, %v4040, 0
        %v4043 = vshrl.u32 %v4042, 5
        %v4044 = vand.u32 %v4042, 31
        %v4045 = vsub.s32 32, %v4044
        %v4046 = vshrl.u32 683565275, %v4045
        %v4047 = vshll.u32 683565275, %v4044
        %v4048 = vshrl.u32 2475754826, %v4045
        %v4049 = vor.u32 %v4047, %v4048
        %v4050 = vshll.u32 2475754826, %v4044
        %v4051 = vshrl.u32 2131351028, %v4045
        %v4052 = vor.u32 %v4050, %v4051
        %v4053 = vshll.u32 2131351028, %v4044
        %v4054 = vshrl.u32 2102212464, %v4045
        %v4055 = vor.u32 %v4053, %v4054
        %v4056 = vshll.u32 2102212464, %v4044
        %v4057 = vshrl.u32 920167782, %v4045
        %v4058 = vor.u32 %v4056, %v4057
        %v4059 = vshll.u32 920167782, %v4044
        %v4060 = vshrl.u32 1326507024, %v4045
        %v4061 = vor.u32 %v4059, %v4060
        %vm4062 = vcmp.lt.s32.totalorder %v4043, 1
        %vm4063 = vcmp.lt.s32.totalorder %v4043, 2
        %vm4064 = vcmp.lt.s32.totalorder %v4043, 3
        %vm4065 = vcmp.lt.s32.totalorder %v4043, 4
        %v4066 = vsel %vm4062, %v4046, %v4049
        %v4067 = vsel %vm4065, %v4055, 2102212464
        %v4068 = vsel %vm4064, %v4052, %v4067
        %v4069 = vsel %vm4063, %v4066, %v4068
        %v4070 = vsel %vm4062, %v4049, %v4052
        %v4071 = vsel %vm4065, %v4058, 920167782
        %v4072 = vsel %vm4064, %v4055, %v4071
        %v4073 = vsel %vm4063, %v4070, %v4072
        %v4074 = vsel %vm4062, %v4052, %v4055
        %v4075 = vsel %vm4065, %v4061, 1326507024
        %v4076 = vsel %vm4064, %v4058, %v4075
        %v4077 = vsel %vm4063, %v4074, %v4076
        %v4078 = vshll.u32 %v4038, 8
        %v4079 = vmul.u32.u64.compose %v4078, %v4077
        %v4080 = vextract.low.u32 %v4079
        %v4081 = vextract.high.u32 %v4079
        %v4082 = vmul.u32.u64.compose %v4078, %v4073
        %v4083 = vextract.low.u32 %v4082
        %v4084 = vextract.high.u32 %v4082
        %v4085 = vmul.u32 %v4078, %v4069
        %v4086 = vadd.s32 %v4081, %v4083
        %vm4087 = vc.u32 %v4081, %v4083
        %v4088 = vadd.s32 %v4084, 1
        %v4089 = vsel %vm4087, %v4088, %v4084
        %v4090 = vadd.s32 %v4085, %v4089
        %v4091 = vadd.s32 %v4090, 536870912
        %v4092 = vshrl.u32 %v4091, 30
        %v4093 = vshll.u32 %v4092, 30
        %v4094 = vsub.s32 %v4090, %v4093
        %vm4095 = vcmp.lt.s32.totalorder %v4094, 0
        %v4096 = vsub.s32 0, %v4094
        %v4097 = vsel %vm4095, %v4096, %v4094
        %v4098 = vclz %v4097
        %v4099 = vsub.s32 %v4098, 2
        %vm4100 = vcmp.gt.s32.totalorder 0, %v4099
        %v4101 = vsel %vm4100, 0, %v4099
        %v4102 = vsub.s32 32, %v4101
        %v4103 = vshll.u32 %v4094, %v4101
        %v4104 = vshrl.u32 %v4086, %v4102
        %v4105 = vor.u32 %v4103, %v4104
        %v4106 = vsub.s32 4294967266, %v4101
        %v4107 = vadd.s32 %v4106, 127
        %v4108 = vshll.u32 %v4107, 23
        %v4109 = vor.u32 4788187, %v4108
        %v4110 = vand.u32 2147483647, %v4109
        %v4112 = vcvt.s32.f32 %v4105
        %v4113 = vmul.f32 %v4112, %v4110
        %v4114 = vxor.u32 %v4113, 2147483648
        %v4115 = vsel %vm4032, %v4114, %v4113
        %v4116 = vsub.s32 4, %v4092
        %v4117 = vsel %vm4032, %v4116, %v4092
        %v4118 = vsel %vm4031, %v3402, %v4115
        %v4119 = vsel %vm4031, 0, %v4117
        %v4120 = vcosq.f32.pop %v4118
        %v4121 = vsinq.f32.pop %v4118
        %vm4122 = vweird.f32 %v3402
        %v4123 = vadd.s32 %v4119, 3
        %v4124 = vand.u32 %v4123, 3
        %vm4125 = vcmp.lt.s32.totalorder %v4124, 2
        %vm4126 = vcmp.eq.s32.totalorder %v4124, 0
        %v4127 = vxor.u32 %v4121, 2147483648
        %v4128 = vsel %vm4126, %v4120, %v4127
        %vm4129 = vcmp.eq.s32.totalorder %v4124, 2
        %v4130 = vxor.u32 %v4120, 2147483648
        %v4131 = vsel %vm4129, %v4130, %v4121
        %v4132 = vsel %vm4125, %v4128, %v4131
        %v4133 = vsel %vm4122, nan, %v4132
        %v4134 = vand.u32 2147483647, %v3404
        %vm4135 = vcmp.le.f32.partialorder %v4134, 0.7853982
        %vm4136 = vcmp.lt.s32.totalorder %v3404, 0
        %v4137 = vand.u32 %v3404, 2139095040
        %v4138 = vshrl.u32 %v4137, 23
        %v4139 = vsub.s32 %v4138, 127
        %v4140 = vand.u32 2147483647, %v3404
        %v4141 = vand.u32 %v4140, 8388607
        %v4142 = vor.u32 %v4141, 8388608
        %v4143 = vsub.s32 0, %v4142
        %v4144 = vadd.s32 %v4139, 1
        %vm4145 = vcmp.gt.s32.totalorder %v4144, 0
        %v4146 = vsel %vm4145, %v4144, 0
        %v4147 = vshrl.u32 %v4146, 5
        %v4148 = vand.u32 %v4146, 31
        %v4149 = vsub.s32 32, %v4148
        %v4150 = vshrl.u32 683565275, %v4149
        %v4151 = vshll.u32 683565275, %v4148
        %v4152 = vshrl.u32 2475754826, %v4149
        %v4153 = vor.u32 %v4151, %v4152
        %v4154 = vshll.u32 2475754826, %v4148
        %v4155 = vshrl.u32 2131351028, %v4149
        %v4156 = vor.u32 %v4154, %v4155
        %v4157 = vshll.u32 2131351028, %v4148
        %v4158 = vshrl.u32 2102212464, %v4149
        %v4159 = vor.u32 %v4157, %v4158
        %v4160 = vshll.u32 2102212464, %v4148
        %v4161 = vshrl.u32 920167782, %v4149
        %v4162 = vor.u32 %v4160, %v4161
        %v4163 = vshll.u32 920167782, %v4148
        %v4164 = vshrl.u32 1326507024, %v4149
        %v4165 = vor.u32 %v4163, %v4164
        %vm4166 = vcmp.lt.s32.totalorder %v4147, 1
        %vm4167 = vcmp.lt.s32.totalorder %v4147, 2
        %vm4168 = vcmp.lt.s32.totalorder %v4147, 3
        %vm4169 = vcmp.lt.s32.totalorder %v4147, 4
        %v4170 = vsel %vm4166, %v4150, %v4153
        %v4171 = vsel %vm4169, %v4159, 2102212464
        %v4172 = vsel %vm4168, %v4156, %v4171
        %v4173 = vsel %vm4167, %v4170, %v4172
        %v4174 = vsel %vm4166, %v4153, %v4156
        %v4175 = vsel %vm4169, %v4162, 920167782
        %v4176 = vsel %vm4168, %v4159, %v4175
        %v4177 = vsel %vm4167, %v4174, %v4176
        %v4178 = vsel %vm4166, %v4156, %v4159
        %v4179 = vsel %vm4169, %v4165, 1326507024
        %v4180 = vsel %vm4168, %v4162, %v4179
        %v4181 = vsel %vm4167, %v4178, %v4180
        %v4182 = vshll.u32 %v4142, 8
        %v4183 = vmul.u32.u64.compose %v4182, %v4181
        %v4184 = vextract.low.u32 %v4183
        %v4185 = vextract.high.u32 %v4183
        %v4186 = vmul.u32.u64.compose %v4182, %v4177
        %v4187 = vextract.low.u32 %v4186
        %v4188 = vextract.high.u32 %v4186
        %v4189 = vmul.u32 %v4182, %v4173
        %v4190 = vadd.s32 %v4185, %v4187
        %vm4191 = vc.u32 %v4185, %v4187
        %v4192 = vadd.s32 %v4188, 1
        %v4193 = vsel %vm4191, %v4192, %v4188
        %v4194 = vadd.s32 %v4189, %v4193
        %v4195 = vadd.s32 %v4194, 536870912
        %v4196 = vshrl.u32 %v4195, 30
        %v4197 = vshll.u32 %v4196, 30
        %v4198 = vsub.s32 %v4194, %v4197
        %vm4199 = vcmp.lt.s32.totalorder %v4198, 0
        %v4200 = vsub.s32 0, %v4198
        %v4201 = vsel %vm4199, %v4200, %v4198
        %v4202 = vclz %v4201
        %v4203 = vsub.s32 %v4202, 2
        %vm4204 = vcmp.gt.s32.totalorder 0, %v4203
        %v4205 = vsel %vm4204, 0, %v4203
        %v4206 = vsub.s32 32, %v4205
        %v4207 = vshll.u32 %v4198, %v4205
        %v4208 = vshrl.u32 %v4190, %v4206
        %v4209 = vor.u32 %v4207, %v4208
        %v4210 = vsub.s32 4294967266, %v4205
        %v4211 = vadd.s32 %v4210, 127
        %v4212 = vshll.u32 %v4211, 23
        %v4213 = vor.u32 4788187, %v4212
        %v4214 = vand.u32 2147483647, %v4213
        %v4216 = vcvt.s32.f32 %v4209
        %v4217 = vmul.f32 %v4216, %v4214
        %v4218 = vxor.u32 %v4217, 2147483648
        %v4219 = vsel %vm4136, %v4218, %v4217
        %v4220 = vsub.s32 4, %v4196
        %v4221 = vsel %vm4136, %v4220, %v4196
        %v4222 = vsel %vm4135, %v3404, %v4219
        %v4223 = vsel %vm4135, 0, %v4221
        %v4224 = vcosq.f32.pop %v4222
        %v4225 = vsinq.f32.pop %v4222
        %vm4226 = vweird.f32 %v3404
        %v4227 = vadd.s32 %v4223, 3
        %v4228 = vand.u32 %v4227, 3
        %vm4229 = vcmp.lt.s32.totalorder %v4228, 2
        %vm4230 = vcmp.eq.s32.totalorder %v4228, 0
        %v4231 = vxor.u32 %v4225, 2147483648
        %v4232 = vsel %vm4230, %v4224, %v4231
        %vm4233 = vcmp.eq.s32.totalorder %v4228, 2
        %v4234 = vxor.u32 %v4224, 2147483648
        %v4235 = vsel %vm4233, %v4234, %v4225
        %v4236 = vsel %vm4229, %v4232, %v4235
        %v4237 = vsel %vm4226, nan, %v4236
        %v4238 = vld [vmem:[%s9] sm:$0x7]
        %v4239 = vld [vmem:[%s10] sm:$0x7]
        %4241 = vset.pattern.permute.xlu0 0
        %4242 = vperm.xlu0 %4241, %v4239
        %v4243 = vpop.permute.xlu0 %4242
        %v4246 = vsel %vm1382, %v4238, 0
        %4248 = vmatprep.subr.mxu0 %v3613
        %4249 = vmatpush1.msra.mxu0 %v3509
        %4250 = vmatprep.subr.mxu0 %v3821
        %4251 = vmatpush1.msra.mxu0 %v3717
        %4252 = vmatprep.subr.mxu0 %v4029
        %4253 = vmatpush1.msra.mxu0 %v3925
        %4254 = vmatprep.subr.mxu0 %v4237
        %4255 = vmatpush1.msra.mxu0 %v4133
        %4256 = vmatprep.subr.mxu0 0.0
        %4257 = vmatpush1.msra.mxu0 0.0
        %4258 = vmatprep.subr.mxu0 0.0
        %4259 = vmatpush1.msra.mxu0 0.0
        %4260 = vmatprep.subr.mxu0 0.0
        %4261 = vmatpush1.msra.mxu0 0.0
        %4262 = vmatprep.subr.mxu0 0.0
        %4263 = vmatpush1.msra.mxu0 0.0
        %4264 = vmatprep.subr.mxu0 0.0
        %4265 = vmatpush1.msra.mxu0 0.0
        %4266 = vmatprep.subr.mxu0 0.0
        %4267 = vmatpush1.msra.mxu0 0.0
        %4268 = vmatprep.subr.mxu0 0.0
        %4269 = vmatpush1.msra.mxu0 0.0
        %4270 = vmatprep.subr.mxu0 0.0
        %4271 = vmatpush1.msra.mxu0 0.0
        %4272 = vmatprep.subr.mxu0 0.0
        %4273 = vmatpush1.msra.mxu0 0.0
        %4274 = vmatprep.subr.mxu0 0.0
        %4275 = vmatpush1.msra.mxu0 0.0
        %4276 = vmatprep.subr.mxu0 0.0
        %4277 = vmatpush1.msra.mxu0 0.0
        %4278 = vmatprep.subr.mxu0 0.0
        %4279 = vmatpush1.msra.mxu0 0.0
        %4280 = vmatprep.subr.mxu0 0.0
        %4281 = vmatpush1.msra.mxu0 0.0
        %4282 = vmatprep.subr.mxu0 0.0
        %4283 = vmatpush1.msra.mxu0 0.0
        %4284 = vmatprep.subr.mxu0 0.0
        %4285 = vmatpush1.msra.mxu0 0.0
        %4286 = vmatprep.subr.mxu0 0.0
        %4287 = vmatpush1.msra.mxu0 0.0
        %4288 = vmatprep.subr.mxu0 0.0
        %4289 = vmatpush1.msra.mxu0 0.0
        %4290 = vmatprep.subr.mxu0 0.0
        %4291 = vmatpush1.msra.mxu0 0.0
        %4292 = vmatprep.subr.mxu0 0.0
        %4293 = vmatpush1.msra.mxu0 0.0
        %4294 = vmatprep.subr.mxu0 0.0
        %4295 = vmatpush1.msra.mxu0 0.0
        %4296 = vmatprep.subr.mxu0 0.0
        %4297 = vmatpush1.msra.mxu0 0.0
        %4298 = vmatprep.subr.mxu0 0.0
        %4299 = vmatpush1.msra.mxu0 0.0
        %4300 = vmatprep.subr.mxu0 0.0
        %4301 = vmatpush1.msra.mxu0 0.0
        %4302 = vmatprep.subr.mxu0 0.0
        %4303 = vmatpush1.msra.mxu0 0.0
        %4304 = vmatprep.subr.mxu0 0.0
        %4305 = vmatpush1.msra.mxu0 0.0
        %4306 = vmatprep.subr.mxu0 0.0
        %4307 = vmatpush1.msra.mxu0 0.0
        %4308 = vmatprep.subr.mxu0 0.0
        %4309 = vmatpush1.msra.mxu0 0.0
        %4310 = vmatprep.subr.mxu0 0.0
        %4311 = vmatpush1.msra.mxu0 0.0
        %4312 = vmatprep.mubr.f32.mxu0 0.0
        %4313 = vmatmul.mubr.f32.gmra.mrb[0].mxu0 %v4246
        %v4314 = vpop.f32.mrb[0].mxu0
        %v4315 = vadd.f32 %v4243, %v4314
        %v4316 = vpop.f32.mrb[0].mxu0
        %v4317 = vadd.f32 %v4243, %v4316
        %4318 = vdwg.mxu0
        %v4321 = vcombine.low %v4315, %v4317
        %4323 = vst [vmem:[%s380] sm:$0x77] %v4321
        %s4324 = sand.u32 %s269, 1
        %s4325 = scalar_lea.sflag [#allocation3], %s4324
        %s4326 = sand.u32 %s269, 1
        %s4327 = smul.addr %s4326, 8
        %s4328 = scalar_lea.vmem [#allocation2], %s4327
        // Predicated region
        $region65: #{tpu_custom_call.1} parent=63 // pred_check
          %p4329 = pneg %p279
        $region66: #{tpu_custom_call.1} parent=63 // pred_check_branch
          %4331 = sbr.rel (%p4329) target = $region68
        $region67: #{tpu_custom_call.1} parent=63 // pred_region
          %s4332 = smul.u32 2, %s25
          %s4334 = ssub.s32 128, 128
          %4335 = vsyncadd %s4325, %s4334
          %s4336 = smul.addr %s4332, 64
          %s4337 = scalar_lea.hbm %s11, %s4336
          %s4339 = sshll.u32 %s4328, 4
          %s4340 = int_to_ptr.vmem [resolvable:$true] %s4339
          %4342 = dma.vmem_to_hbm [thread:$0]  %s4340, 128, %s4337, %s4325
        $region68: #{tpu_custom_call.1} parent=63 // pred_fallthru
          _
      $region64: #{tpu_custom_call.1} parent=5 // pred_fallthru
        _
      %p4343 = scmp.le.s32.totalorder 2, %s20
      // Predicated region
      $region69: #{tpu_custom_call.1} parent=5 // pred_check
        %p4344 = pneg %p4343
      $region70: #{tpu_custom_call.1} parent=5 // pred_check_branch
        %4346 = sbr.rel (%p4344) target = $region72
      $region71: #{tpu_custom_call.1} parent=5 // pred_region
        %s4347 = ssub.s32 %s20, 2
        // Predicated region
        $region73: #{tpu_custom_call.1} parent=71 // pred_check
          %p4348 = pneg %p285
        $region74: #{tpu_custom_call.1} parent=71 // pred_check_branch
          %4350 = sbr.rel (%p4348) target = $region76
        $region75: #{tpu_custom_call.1} parent=71 // pred_region
          %s4351 = sand.u32 %s270, 1
          %s4352 = scalar_lea.sflag [#allocation3], %s4351
          %s4353 = sand.u32 %s270, 1
          %s4354 = smul.addr %s4353, 8
          %s4355 = scalar_lea.vmem [#allocation2], %s4354
          %4356 = dma.done %s4352, 128
        $region76: #{tpu_custom_call.1} parent=71 // pred_fallthru
          _
      $region72: #{tpu_custom_call.1} parent=5 // pred_fallthru
        _
    $region6: #{tpu_custom_call.1} parent=1 // loop_footer
      %s24 = sadd.s32 1, %s20
    $region7: #{tpu_custom_call.1} parent=1 // loop_footer_branch
      %19 = sbr.rel target = $region3
    $region8: #{tpu_custom_call.1} parent=1 // loop_exit
      _
    %4357 = vsyncpa [#allocation3], 1
    %s4358 = scalar_lea.sflag [#allocation3], 1
    %4359 = vsyncpa %s4358, 1

</llo_original>
